<compile_context>
chip_gen: v7x
topology: tpu7x:2x2x1
jax: 0.10.0
libtpu: 0.0.40
codegen_flags: <defaults>
</compile_context>

<pallas_src>
import functools

import jax
import jax.numpy as jnp
from jax import lax
from jax.experimental import pallas as pl
from jax.experimental.pallas import tpu as pltpu

EPS = 1e-5


def conv_odef_kernel(xh_ref, bw1_ref, bw2_ref, tb1_ref, tb2_ref, p_ref,
                     g1_ref, b1_ref, g2_ref, b2_ref, out_ref, hpad_ref, *,
                     num_px):
    # xh_ref   : (B, H+2, W*C) f32  x in NHWC, zero-padded along H, (W,C) merged on lanes
    # bw*_ref  : (3, W*C, W*C) bf16 banded conv weights (one matrix per ky; kx shifts
    #                               and W zero-padding folded in)
    # tb*_ref  : (B*H, W*C)    f32  precomputed time-channel conv contribution
    # p_ref    : (W*C, W*C)    f32  0/1 matrix, P[i, j] = (i % C == j % C)
    # g*/b*    : (1, W*C)      f32  per-channel gamma/beta tiled along lanes
    # out_ref  : (B*H, W*C)    f32
    # hpad_ref : (B, H+2, W*C) f32  scratch: h with zero border rows along H
    B, Hp, WC = xh_ref.shape
    H = Hp - 2
    BH = B * H
    inv_n = 1.0 / num_px

    def conv3x3(src_ref, bw_ref, tbias):
        # 3x3 conv (pad=1, no bias) = sum over ky of (H-shifted rows) @ banded weight.
        # bf16 operands, f32 accumulation -> single-pass MXU.
        acc = tbias
        for ky in range(3):
            lhs = src_ref[:, ky:ky + H, :].reshape(BH, WC).astype(jnp.bfloat16)
            acc = acc + jnp.dot(lhs, bw_ref[ky],
                                preferred_element_type=jnp.float32)
        return acc

    def relu_bn(y, gamma_wc, beta_wc):
        # PyTorch BatchNorm2d training forward: per-channel batch mean, biased
        # centered variance, eps=1e-5, affine.  All BN/ReLU math stays in f32.
        # The per-channel lane reduce/broadcast is a tiny (1,WC)x(WC,WC) dot with
        # a 0/1 matrix; HIGHEST here is negligible MXU work and keeps the batch
        # statistics in full f32 (the big conv matmuls above are bf16).
        y = jnp.maximum(y, 0.0)
        s = jnp.sum(y, axis=0, keepdims=True)                       # (1, WC)
        mean = jnp.dot(s, p_ref[...], preferred_element_type=jnp.float32,
                       precision=lax.Precision.HIGHEST) * inv_n
        d = y - mean
        ss = jnp.sum(d * d, axis=0, keepdims=True)
        var = jnp.dot(ss, p_ref[...], preferred_element_type=jnp.float32,
                      precision=lax.Precision.HIGHEST) * inv_n
        return d * lax.rsqrt(var + EPS) * gamma_wc + beta_wc

    # ---- stage 1: h = BN1(relu(conv1([x | t]))) ----
    h = relu_bn(conv3x3(xh_ref, bw1_ref, tb1_ref[...]),
                g1_ref[...], b1_ref[...])

    # ---- re-pad h along H only (W padding lives inside the banded weights):
    #      zero just the two border rows, then write the interior (lane-aligned). ----
    hpad_ref[:, 0:1, :] = jnp.zeros((B, 1, WC), hpad_ref.dtype)
    hpad_ref[:, Hp - 1:Hp, :] = jnp.zeros((B, 1, WC), hpad_ref.dtype)
    hpad_ref[:, 1:H + 1, :] = h.reshape(B, H, WC)

    # ---- stage 2: dxdt = BN2(relu(conv2([h | t]))) ----
    dxdt = relu_bn(conv3x3(hpad_ref, bw2_ref, tb2_ref[...]),
                   g2_ref[...], b2_ref[...])
    out_ref[...] = dxdt.astype(out_ref.dtype)


def _banded_weights(w, width):
    # w: (Cout, Cin, 3, 3) conv weights over the non-time channels.
    # Returns (3, width*Cin, width*Cout): for each ky a banded matrix applying the
    # kx taps with the W-side zero padding folded in:
    #   M[ky][w_in*Cin + ci, w_out*Cout + co] = w[co, ci, ky, kx]
    #   with w_in = w_out + kx - 1 (entries falling outside [0, width) are dropped).
    mats = []
    for ky in range(3):
        terms = []
        for kx in range(3):
            tap = jnp.transpose(w[:, :, ky, kx])                  # (Cin, Cout)
            band = jnp.eye(width, k=1 - kx, dtype=jnp.float32)    # w_out = w_in + 1 - kx
            terms.append(jnp.kron(band, tap))
        mats.append(terms[0] + terms[1] + terms[2])
    return jnp.stack(mats, axis=0)


def _time_bias(wt, t, B, H, W):
    # wt: (Cout, 3, 3) -- conv weights of the constant-t input channel.
    # Returns the conv contribution of the zero-padded t plane, broadcast to the
    # kernel's lane-dense (B*H, W*Cout) row layout.
    cout = wt.shape[0]
    t_plane = jnp.broadcast_to(jnp.asarray(t, jnp.float32), (H, W))
    tpad = jnp.pad(t_plane, ((1, 1), (1, 1)))
    tb = jnp.zeros((H, W, cout), jnp.float32)
    for ky in range(3):
        for kx in range(3):
            tb = tb + tpad[ky:ky + H, kx:kx + W, None] * wt[:, ky, kx][None, None, :]
    tb = tb.reshape(1, H, W * cout)
    return jnp.broadcast_to(tb, (B, H, W * cout)).reshape(B * H, W * cout)


def conv_odef_forward(x_nchw, t, params):
    """Forward of ConvODEF. x_nchw: (B, C, H, W) float32 (PyTorch layout), t: scalar."""
    B, C, H, W = x_nchw.shape
    WC = W * C

    # x -> NHWC, zero-pad H only, merge (W, C) onto the lane axis.
    x_nhwc = jnp.transpose(x_nchw, (0, 2, 3, 1)).astype(jnp.float32)
    xh = jnp.pad(x_nhwc, ((0, 0), (1, 1), (0, 0), (0, 0))).reshape(B, H + 2, WC)

    w1 = params["w1"].astype(jnp.float32)                       # (C, C+1, 3, 3)
    w2 = params["w2"].astype(jnp.float32)
    bw1 = _banded_weights(w1[:, :C], W).astype(jnp.bfloat16)    # (3, WC, WC)
    bw2 = _banded_weights(w2[:, :C], W).astype(jnp.bfloat16)
    tb1 = _time_bias(w1[:, C], t, B, H, W)                      # (B*H, WC) f32
    tb2 = _time_bias(w2[:, C], t, B, H, W)

    # 0/1 channel-congruence matrix for per-channel BN reductions/broadcasts.
    p_mat = jnp.kron(jnp.ones((W, W), jnp.float32), jnp.eye(C, dtype=jnp.float32))

    def tile_lanes(v):
        return jnp.tile(v.reshape(1, C).astype(jnp.float32), (1, W))

    g1, b1 = tile_lanes(params["gamma1"]), tile_lanes(params["beta1"])
    g2, b2 = tile_lanes(params["gamma2"]), tile_lanes(params["beta2"])

    vmem = pl.BlockSpec(memory_space=pltpu.MemorySpace.VMEM)
    out = pl.pallas_call(
        functools.partial(conv_odef_kernel, num_px=B * H * W),
        out_shape=jax.ShapeDtypeStruct((B * H, WC), jnp.float32),
        in_specs=[vmem] * 10,
        out_specs=vmem,
        scratch_shapes=[pltpu.VMEM((B, H + 2, WC), jnp.float32)],
    )(xh, bw1, bw2, tb1, tb2, p_mat, g1, b1, g2, b2)
    # TODO(synk): for large B*H*W, add a grid (tile over B/H, mark it "parallel" for
    # the v7x dual TensorCores, set vmem_limit_bytes) and switch BatchNorm to a
    # two-pass sum/sum-sq accumulator across the grid so whole-batch statistics are
    # preserved; unnecessary at these fully-VMEM-resident sizes.

    return jnp.transpose(out.reshape(B, H, W, C), (0, 3, 1, 2))   # back to NCHW


# ---------------- pure-JAX reference (mirrors the PyTorch module) ----------------
def _bn_ref(y_nchw, gamma, beta):
    mean = jnp.mean(y_nchw, axis=(0, 2, 3), keepdims=True)
    var = jnp.mean((y_nchw - mean) ** 2, axis=(0, 2, 3), keepdims=True)  # biased
    gamma = gamma.reshape(1, -1, 1, 1)
    beta = beta.reshape(1, -1, 1, 1)
    return (y_nchw - mean) * lax.rsqrt(var + EPS) * gamma + beta


def reference_forward(x_nchw, t, params):
    B, C, H, W = x_nchw.shape
    tch = jnp.full((B, 1, H, W), jnp.float32(t))

    def conv(inp, w):
        return lax.conv_general_dilated(
            inp, w, window_strides=(1, 1), padding=((1, 1), (1, 1)),
            dimension_numbers=("NCHW", "OIHW", "NCHW"),
            precision=lax.Precision.HIGHEST)

    xt = jnp.concatenate([x_nchw, tch], axis=1)
    h = _bn_ref(jnp.maximum(conv(xt, params["w1"]), 0.0),
                params["gamma1"], params["beta1"])
    ht = jnp.concatenate([h, tch], axis=1)
    return _bn_ref(jnp.maximum(conv(ht, params["w2"]), 0.0),
                   params["gamma2"], params["beta2"])


def init_params(key, dim):
    k1, k2 = jax.random.split(key)
    cin = dim + 1
    return {
        # conv3x3(dim+1 -> dim), bias=False; deterministic synthetic init
        "w1": 0.1 * jax.random.normal(k1, (dim, cin, 3, 3), jnp.float32),
        "w2": 0.1 * jax.random.normal(k2, (dim, cin, 3, 3), jnp.float32),
        # BatchNorm2d default init: weight=1, bias=0
        "gamma1": jnp.ones((dim,), jnp.float32),
        "beta1": jnp.zeros((dim,), jnp.float32),
        "gamma2": jnp.ones((dim,), jnp.float32),
        "beta2": jnp.zeros((dim,), jnp.float32),
    }
    # TODO(synk): BatchNorm running_mean/running_var buffer updates (training side
    # effects) are not modeled; forward output uses batch statistics, as PyTorch does.


if __name__ == "__main__":
    key = jax.random.PRNGKey(0)
    kx, kp = jax.random.split(key)
    B, C, H, W = 2, 4, 16, 16                    # dim = 4
    x = jax.random.normal(kx, (B, C, H, W), jnp.float32)
    t = jnp.float32(0.5)
    params = init_params(kp, C)

    fwd = jax.jit(lambda xx, tt: conv_odef_forward(xx, tt, params))
    out = jax.block_until_ready(fwd(x, t))
    assert out.shape == (B, C, H, W) and out.dtype == jnp.float32

    ref = reference_forward(x, t, params)
    err = float(jnp.max(jnp.abs(out - ref)))
    # Kernel uses bf16 MXU operands with f32 accumulation (per perf guidance); the
    # reference is full-f32 HIGHEST, so allow bf16-rounding-level deviation on the
    # BN-normalized (unit-std) outputs.
    assert err < 1e-1, f"max abs err {err}"
    print("KERNEL_OK")
</pallas_src>

<mosaic_0001>
module attributes {stable_mosaic.version = 11 : i64} {
  func.func @conv_odef_kernel(%arg0: memref<2x18x64xf32, #tpu.memory_space<vmem>>, %arg1: memref<3x64x64xbf16, #tpu.memory_space<vmem>>, %arg2: memref<3x64x64xbf16, #tpu.memory_space<vmem>>, %arg3: memref<32x64xf32, #tpu.memory_space<vmem>>, %arg4: memref<32x64xf32, #tpu.memory_space<vmem>>, %arg5: memref<64x64xf32, #tpu.memory_space<vmem>>, %arg6: memref<1x64xf32, #tpu.memory_space<vmem>>, %arg7: memref<1x64xf32, #tpu.memory_space<vmem>>, %arg8: memref<1x64xf32, #tpu.memory_space<vmem>>, %arg9: memref<1x64xf32, #tpu.memory_space<vmem>>, %arg10: memref<32x64xf32, #tpu.memory_space<vmem>>, %arg11: memref<2x18x64xf32, #tpu.memory_space<vmem>>) attributes {dimension_semantics = [], scalar_prefetch = 0 : i64, scratch_operands = 1 : i64, tpu.core_type = #tpu.core_type<tc>} {
    %c0 = arith.constant 0 : index
    %c0_0 = arith.constant 0 : index
    %0 = vector.load %arg3[%c0, %c0_0] : memref<32x64xf32, #tpu.memory_space<vmem>>, vector<32x64xf32>
    %c0_1 = arith.constant 0 : index
    %c0_2 = arith.constant 0 : index
    %c0_3 = arith.constant 0 : index
    %1 = vector.load %arg0[%c0_1, %c0_2, %c0_3] : memref<2x18x64xf32, #tpu.memory_space<vmem>>, vector<2x16x64xf32>
    %2 = vector.shape_cast %1 : vector<2x16x64xf32> to vector<32x64xf32>
    %3 = arith.truncf %2 : vector<32x64xf32> to vector<32x64xbf16>
    %c0_4 = arith.constant 0 : index
    %c0_5 = arith.constant 0 : index
    %c0_6 = arith.constant 0 : index
    %4 = vector.load %arg1[%c0_4, %c0_5, %c0_6] : memref<3x64x64xbf16, #tpu.memory_space<vmem>>, vector<1x64x64xbf16>
    %5 = vector.shape_cast %4 : vector<1x64x64xbf16> to vector<64x64xbf16>
    %cst = arith.constant dense<0.000000e+00> : vector<32x64xf32>
    %6 = tpu.matmul %3, %5, %cst {dimension_numbers = #tpu.dot_dimension_numbers<[1], [0], [0], [1], [0, 0, 1, 1], [], []>} : vector<32x64xbf16>, vector<64x64xbf16>, vector<32x64xf32> -> vector<32x64xf32>
    %7 = arith.addf %0, %6 : vector<32x64xf32>
    %c0_7 = arith.constant 0 : index
    %c1 = arith.constant 1 : index
    %c0_8 = arith.constant 0 : index
    %8 = vector.load %arg0[%c0_7, %c1, %c0_8] : memref<2x18x64xf32, #tpu.memory_space<vmem>>, vector<2x16x64xf32>
    %9 = vector.shape_cast %8 : vector<2x16x64xf32> to vector<32x64xf32>
    %10 = arith.truncf %9 : vector<32x64xf32> to vector<32x64xbf16>
    %c1_9 = arith.constant 1 : index
    %c0_10 = arith.constant 0 : index
    %c0_11 = arith.constant 0 : index
    %11 = vector.load %arg1[%c1_9, %c0_10, %c0_11] : memref<3x64x64xbf16, #tpu.memory_space<vmem>>, vector<1x64x64xbf16>
    %12 = vector.shape_cast %11 : vector<1x64x64xbf16> to vector<64x64xbf16>
    %cst_12 = arith.constant dense<0.000000e+00> : vector<32x64xf32>
    %13 = tpu.matmul %10, %12, %cst_12 {dimension_numbers = #tpu.dot_dimension_numbers<[1], [0], [0], [1], [0, 0, 1, 1], [], []>} : vector<32x64xbf16>, vector<64x64xbf16>, vector<32x64xf32> -> vector<32x64xf32>
    %14 = arith.addf %7, %13 : vector<32x64xf32>
    %c0_13 = arith.constant 0 : index
    %c2 = arith.constant 2 : index
    %c0_14 = arith.constant 0 : index
    %15 = vector.load %arg0[%c0_13, %c2, %c0_14] : memref<2x18x64xf32, #tpu.memory_space<vmem>>, vector<2x16x64xf32>
    %16 = vector.shape_cast %15 : vector<2x16x64xf32> to vector<32x64xf32>
    %17 = arith.truncf %16 : vector<32x64xf32> to vector<32x64xbf16>
    %c2_15 = arith.constant 2 : index
    %c0_16 = arith.constant 0 : index
    %c0_17 = arith.constant 0 : index
    %18 = vector.load %arg1[%c2_15, %c0_16, %c0_17] : memref<3x64x64xbf16, #tpu.memory_space<vmem>>, vector<1x64x64xbf16>
    %19 = vector.shape_cast %18 : vector<1x64x64xbf16> to vector<64x64xbf16>
    %cst_18 = arith.constant dense<0.000000e+00> : vector<32x64xf32>
    %20 = tpu.matmul %17, %19, %cst_18 {dimension_numbers = #tpu.dot_dimension_numbers<[1], [0], [0], [1], [0, 0, 1, 1], [], []>} : vector<32x64xbf16>, vector<64x64xbf16>, vector<32x64xf32> -> vector<32x64xf32>
    %21 = arith.addf %14, %20 : vector<32x64xf32>
    %c0_19 = arith.constant 0 : index
    %c0_20 = arith.constant 0 : index
    %22 = vector.load %arg6[%c0_19, %c0_20] : memref<1x64xf32, #tpu.memory_space<vmem>>, vector<1x64xf32>
    %c0_21 = arith.constant 0 : index
    %c0_22 = arith.constant 0 : index
    %23 = vector.load %arg7[%c0_21, %c0_22] : memref<1x64xf32, #tpu.memory_space<vmem>>, vector<1x64xf32>
    %cst_23 = arith.constant 0.000000e+00 : f32
    %24 = vector.broadcast %cst_23 : f32 to vector<32x64xf32>
    %25 = arith.maximumf %21, %24 : vector<32x64xf32>
    %cst_24 = arith.constant dense<0.000000e+00> : vector<64xf32>
    %26 = vector.multi_reduction <add>, %25, %cst_24 [0] : vector<32x64xf32> to vector<64xf32>
    %27 = vector.shape_cast %26 : vector<64xf32> to vector<1x64xf32>
    %c0_25 = arith.constant 0 : index
    %c0_26 = arith.constant 0 : index
    %28 = vector.load %arg5[%c0_25, %c0_26] : memref<64x64xf32, #tpu.memory_space<vmem>>, vector<64x64xf32>
    %cst_27 = arith.constant dense<0.000000e+00> : vector<1x64xf32>
    %29 = tpu.matmul %27, %28, %cst_27 {dimension_numbers = #tpu.dot_dimension_numbers<[1], [0], [0], [1], [0, 0, 1, 1], [], []>, precision = #tpu.contract_precision<fp32>} : vector<1x64xf32>, vector<64x64xf32>, vector<1x64xf32> -> vector<1x64xf32>
    %cst_28 = arith.constant 0.001953125 : f32
    %30 = vector.broadcast %cst_28 : f32 to vector<1x64xf32>
    %31 = arith.mulf %29, %30 : vector<1x64xf32>
    %32 = vector.broadcast %31 : vector<1x64xf32> to vector<32x64xf32>
    %33 = arith.subf %25, %32 : vector<32x64xf32>
    %34 = arith.mulf %33, %33 : vector<32x64xf32>
    %cst_29 = arith.constant dense<0.000000e+00> : vector<64xf32>
    %35 = vector.multi_reduction <add>, %34, %cst_29 [0] : vector<32x64xf32> to vector<64xf32>
    %36 = vector.shape_cast %35 : vector<64xf32> to vector<1x64xf32>
    %c0_30 = arith.constant 0 : index
    %c0_31 = arith.constant 0 : index
    %37 = vector.load %arg5[%c0_30, %c0_31] : memref<64x64xf32, #tpu.memory_space<vmem>>, vector<64x64xf32>
    %cst_32 = arith.constant dense<0.000000e+00> : vector<1x64xf32>
    %38 = tpu.matmul %36, %37, %cst_32 {dimension_numbers = #tpu.dot_dimension_numbers<[1], [0], [0], [1], [0, 0, 1, 1], [], []>, precision = #tpu.contract_precision<fp32>} : vector<1x64xf32>, vector<64x64xf32>, vector<1x64xf32> -> vector<1x64xf32>
    %cst_33 = arith.constant 0.001953125 : f32
    %39 = vector.broadcast %cst_33 : f32 to vector<1x64xf32>
    %40 = arith.mulf %38, %39 : vector<1x64xf32>
    %cst_34 = arith.constant 9.99999974E-6 : f32
    %41 = vector.broadcast %cst_34 : f32 to vector<1x64xf32>
    %42 = arith.addf %40, %41 : vector<1x64xf32>
    %43 = math.rsqrt %42 : vector<1x64xf32>
    %44 = vector.broadcast %43 : vector<1x64xf32> to vector<32x64xf32>
    %45 = arith.mulf %33, %44 : vector<32x64xf32>
    %46 = vector.broadcast %22 : vector<1x64xf32> to vector<32x64xf32>
    %47 = arith.mulf %45, %46 : vector<32x64xf32>
    %48 = vector.broadcast %23 : vector<1x64xf32> to vector<32x64xf32>
    %49 = arith.addf %47, %48 : vector<32x64xf32>
    %cst_35 = arith.constant 0.000000e+00 : f32
    %50 = vector.broadcast %cst_35 : f32 to vector<2x1x64xf32>
    %c0_36 = arith.constant 0 : index
    %c0_37 = arith.constant 0 : index
    %c0_38 = arith.constant 0 : index
    %51 = vector.load %arg11[%c0_36, %c0_37, %c0_38] : memref<2x18x64xf32, #tpu.memory_space<vmem>>, vector<2x1x64xf32>
    tpu.vector_store %arg11[%c0_36, %c0_37, %c0_38], %50 {strides = array<i32>} : memref<2x18x64xf32, #tpu.memory_space<vmem>>, vector<2x1x64xf32>,
    %cst_39 = arith.constant 0.000000e+00 : f32
    %52 = vector.broadcast %cst_39 : f32 to vector<2x1x64xf32>
    %c0_40 = arith.constant 0 : index
    %c17 = arith.constant 17 : index
    %c0_41 = arith.constant 0 : index
    %53 = vector.load %arg11[%c0_40, %c17, %c0_41] : memref<2x18x64xf32, #tpu.memory_space<vmem>>, vector<2x1x64xf32>
    tpu.vector_store %arg11[%c0_40, %c17, %c0_41], %52 {strides = array<i32>} : memref<2x18x64xf32, #tpu.memory_space<vmem>>, vector<2x1x64xf32>,
    %54 = vector.shape_cast %49 : vector<32x64xf32> to vector<2x16x64xf32>
    %c0_42 = arith.constant 0 : index
    %c1_43 = arith.constant 1 : index
    %c0_44 = arith.constant 0 : index
    %55 = vector.load %arg11[%c0_42, %c1_43, %c0_44] : memref<2x18x64xf32, #tpu.memory_space<vmem>>, vector<2x16x64xf32>
    tpu.vector_store %arg11[%c0_42, %c1_43, %c0_44], %54 {strides = array<i32>} : memref<2x18x64xf32, #tpu.memory_space<vmem>>, vector<2x16x64xf32>,
    %c0_45 = arith.constant 0 : index
    %c0_46 = arith.constant 0 : index
    %56 = vector.load %arg4[%c0_45, %c0_46] : memref<32x64xf32, #tpu.memory_space<vmem>>, vector<32x64xf32>
    %c0_47 = arith.constant 0 : index
    %c0_48 = arith.constant 0 : index
    %c0_49 = arith.constant 0 : index
    %57 = vector.load %arg11[%c0_47, %c0_48, %c0_49] : memref<2x18x64xf32, #tpu.memory_space<vmem>>, vector<2x16x64xf32>
    %58 = vector.shape_cast %57 : vector<2x16x64xf32> to vector<32x64xf32>
    %59 = arith.truncf %58 : vector<32x64xf32> to vector<32x64xbf16>
    %c0_50 = arith.constant 0 : index
    %c0_51 = arith.constant 0 : index
    %c0_52 = arith.constant 0 : index
    %60 = vector.load %arg2[%c0_50, %c0_51, %c0_52] : memref<3x64x64xbf16, #tpu.memory_space<vmem>>, vector<1x64x64xbf16>
    %61 = vector.shape_cast %60 : vector<1x64x64xbf16> to vector<64x64xbf16>
    %cst_53 = arith.constant dense<0.000000e+00> : vector<32x64xf32>
    %62 = tpu.matmul %59, %61, %cst_53 {dimension_numbers = #tpu.dot_dimension_numbers<[1], [0], [0], [1], [0, 0, 1, 1], [], []>} : vector<32x64xbf16>, vector<64x64xbf16>, vector<32x64xf32> -> vector<32x64xf32>
    %63 = arith.addf %56, %62 : vector<32x64xf32>
    %c0_54 = arith.constant 0 : index
    %c1_55 = arith.constant 1 : index
    %c0_56 = arith.constant 0 : index
    %64 = vector.load %arg11[%c0_54, %c1_55, %c0_56] : memref<2x18x64xf32, #tpu.memory_space<vmem>>, vector<2x16x64xf32>
    %65 = vector.shape_cast %64 : vector<2x16x64xf32> to vector<32x64xf32>
    %66 = arith.truncf %65 : vector<32x64xf32> to vector<32x64xbf16>
    %c1_57 = arith.constant 1 : index
    %c0_58 = arith.constant 0 : index
    %c0_59 = arith.constant 0 : index
    %67 = vector.load %arg2[%c1_57, %c0_58, %c0_59] : memref<3x64x64xbf16, #tpu.memory_space<vmem>>, vector<1x64x64xbf16>
    %68 = vector.shape_cast %67 : vector<1x64x64xbf16> to vector<64x64xbf16>
    %cst_60 = arith.constant dense<0.000000e+00> : vector<32x64xf32>
    %69 = tpu.matmul %66, %68, %cst_60 {dimension_numbers = #tpu.dot_dimension_numbers<[1], [0], [0], [1], [0, 0, 1, 1], [], []>} : vector<32x64xbf16>, vector<64x64xbf16>, vector<32x64xf32> -> vector<32x64xf32>
    %70 = arith.addf %63, %69 : vector<32x64xf32>
    %c0_61 = arith.constant 0 : index
    %c2_62 = arith.constant 2 : index
    %c0_63 = arith.constant 0 : index
    %71 = vector.load %arg11[%c0_61, %c2_62, %c0_63] : memref<2x18x64xf32, #tpu.memory_space<vmem>>, vector<2x16x64xf32>
    %72 = vector.shape_cast %71 : vector<2x16x64xf32> to vector<32x64xf32>
    %73 = arith.truncf %72 : vector<32x64xf32> to vector<32x64xbf16>
    %c2_64 = arith.constant 2 : index
    %c0_65 = arith.constant 0 : index
    %c0_66 = arith.constant 0 : index
    %74 = vector.load %arg2[%c2_64, %c0_65, %c0_66] : memref<3x64x64xbf16, #tpu.memory_space<vmem>>, vector<1x64x64xbf16>
    %75 = vector.shape_cast %74 : vector<1x64x64xbf16> to vector<64x64xbf16>
    %cst_67 = arith.constant dense<0.000000e+00> : vector<32x64xf32>
    %76 = tpu.matmul %73, %75, %cst_67 {dimension_numbers = #tpu.dot_dimension_numbers<[1], [0], [0], [1], [0, 0, 1, 1], [], []>} : vector<32x64xbf16>, vector<64x64xbf16>, vector<32x64xf32> -> vector<32x64xf32>
    %77 = arith.addf %70, %76 : vector<32x64xf32>
    %c0_68 = arith.constant 0 : index
    %c0_69 = arith.constant 0 : index
    %78 = vector.load %arg8[%c0_68, %c0_69] : memref<1x64xf32, #tpu.memory_space<vmem>>, vector<1x64xf32>
    %c0_70 = arith.constant 0 : index
    %c0_71 = arith.constant 0 : index
    %79 = vector.load %arg9[%c0_70, %c0_71] : memref<1x64xf32, #tpu.memory_space<vmem>>, vector<1x64xf32>
    %cst_72 = arith.constant 0.000000e+00 : f32
    %80 = vector.broadcast %cst_72 : f32 to vector<32x64xf32>
    %81 = arith.maximumf %77, %80 : vector<32x64xf32>
    %cst_73 = arith.constant dense<0.000000e+00> : vector<64xf32>
    %82 = vector.multi_reduction <add>, %81, %cst_73 [0] : vector<32x64xf32> to vector<64xf32>
    %83 = vector.shape_cast %82 : vector<64xf32> to vector<1x64xf32>
    %c0_74 = arith.constant 0 : index
    %c0_75 = arith.constant 0 : index
    %84 = vector.load %arg5[%c0_74, %c0_75] : memref<64x64xf32, #tpu.memory_space<vmem>>, vector<64x64xf32>
    %cst_76 = arith.constant dense<0.000000e+00> : vector<1x64xf32>
    %85 = tpu.matmul %83, %84, %cst_76 {dimension_numbers = #tpu.dot_dimension_numbers<[1], [0], [0], [1], [0, 0, 1, 1], [], []>, precision = #tpu.contract_precision<fp32>} : vector<1x64xf32>, vector<64x64xf32>, vector<1x64xf32> -> vector<1x64xf32>
    %cst_77 = arith.constant 0.001953125 : f32
    %86 = vector.broadcast %cst_77 : f32 to vector<1x64xf32>
    %87 = arith.mulf %85, %86 : vector<1x64xf32>
    %88 = vector.broadcast %87 : vector<1x64xf32> to vector<32x64xf32>
    %89 = arith.subf %81, %88 : vector<32x64xf32>
    %90 = arith.mulf %89, %89 : vector<32x64xf32>
    %cst_78 = arith.constant dense<0.000000e+00> : vector<64xf32>
    %91 = vector.multi_reduction <add>, %90, %cst_78 [0] : vector<32x64xf32> to vector<64xf32>
    %92 = vector.shape_cast %91 : vector<64xf32> to vector<1x64xf32>
    %c0_79 = arith.constant 0 : index
    %c0_80 = arith.constant 0 : index
    %93 = vector.load %arg5[%c0_79, %c0_80] : memref<64x64xf32, #tpu.memory_space<vmem>>, vector<64x64xf32>
    %cst_81 = arith.constant dense<0.000000e+00> : vector<1x64xf32>
    %94 = tpu.matmul %92, %93, %cst_81 {dimension_numbers = #tpu.dot_dimension_numbers<[1], [0], [0], [1], [0, 0, 1, 1], [], []>, precision = #tpu.contract_precision<fp32>} : vector<1x64xf32>, vector<64x64xf32>, vector<1x64xf32> -> vector<1x64xf32>
    %cst_82 = arith.constant 0.001953125 : f32
    %95 = vector.broadcast %cst_82 : f32 to vector<1x64xf32>
    %96 = arith.mulf %94, %95 : vector<1x64xf32>
    %cst_83 = arith.constant 9.99999974E-6 : f32
    %97 = vector.broadcast %cst_83 : f32 to vector<1x64xf32>
    %98 = arith.addf %96, %97 : vector<1x64xf32>
    %99 = math.rsqrt %98 : vector<1x64xf32>
    %100 = vector.broadcast %99 : vector<1x64xf32> to vector<32x64xf32>
    %101 = arith.mulf %89, %100 : vector<32x64xf32>
    %102 = vector.broadcast %78 : vector<1x64xf32> to vector<32x64xf32>
    %103 = arith.mulf %101, %102 : vector<32x64xf32>
    %104 = vector.broadcast %79 : vector<1x64xf32> to vector<32x64xf32>
    %105 = arith.addf %103, %104 : vector<32x64xf32>
    %c0_84 = arith.constant 0 : index
    %c0_85 = arith.constant 0 : index
    %106 = vector.load %arg10[%c0_84, %c0_85] : memref<32x64xf32, #tpu.memory_space<vmem>>, vector<32x64xf32>
    tpu.vector_store %arg10[%c0_84, %c0_85], %105 {strides = array<i32>} : memref<32x64xf32, #tpu.memory_space<vmem>>, vector<32x64xf32>,
    return
  }
}

</mosaic_0001>

<llo_original>
// kernel: _lambda_.1
$region0: #{_lambda_.1}
  #allocation0 [shape = 'u32[]', space=smem, size = 0x4, offset = 0x4, fixed_abs, tag = 'smem constant byte address 0x4 - core index']
  #allocation1 [shape = 'u32[144,128]{1,0:T(1,128)}', space=vmem, size = 0x12000, scoped, tag = 'internal scratch']
  #allocation2 [shape = 'f32[2,18,64]{2,1,0:T(8,128)}', space=vmem, size = 0x6000, scoped, tag = 'scratch operand']
  %s0 = inlined_call_operand.vmem [shape: f32[2,18,64], index: 0, kind: input, shape index: {}]
  %s1 = inlined_call_operand.vmem [shape: bf16[3,64,64], index: 1, kind: input, shape index: {}]
  %s2 = inlined_call_operand.vmem [shape: bf16[3,64,64], index: 2, kind: input, shape index: {}]
  %s3 = inlined_call_operand.vmem [shape: f32[32,64], index: 3, kind: input, shape index: {}]
  %s4 = inlined_call_operand.vmem [shape: f32[32,64], index: 4, kind: input, shape index: {}]
  %s5 = inlined_call_operand.vmem [shape: f32[64,64], index: 5, kind: input, shape index: {}]
  %s6 = inlined_call_operand.vmem [shape: f32[1,64], index: 6, kind: input, shape index: {}, may-alias: {6,8}]
  %s7 = inlined_call_operand.vmem [shape: f32[1,64], index: 7, kind: input, shape index: {}, may-alias: {7,9}]
  %s8 = inlined_call_operand.vmem [shape: f32[1,64], index: 8, kind: input, shape index: {}, may-alias: {6,8}]
  %s9 = inlined_call_operand.vmem [shape: f32[1,64], index: 9, kind: input, shape index: {}, may-alias: {7,9}]
  %s10 = inlined_call_operand.vmem [shape: f32[32,64], index: 10, kind: output, shape index: {}]
  %s11 = sld [smem:[#allocation0]]
  $region50: #{_lambda_.1} parent=0
    _
  %s13 = ssub.s32 1, %s11
  %s14 = scalar_select 0, %s13, %s11
  // Predicated region
  $region2: #{_lambda_.1} parent=0 // pred_check
    _
  $region3: #{_lambda_.1} parent=0 // pred_check_branch
    %16 = sbr.rel (0) target = $region5
  $region4: #{_lambda_.1} parent=0 // pred_region
    _
  $region5: #{_lambda_.1} parent=0 // pred_fallthru
    _
  // Predicated region
  $region6: #{_lambda_.1} parent=0 // pred_check
    _
  $region7: #{_lambda_.1} parent=0 // pred_check_branch
    %18 = sbr.rel (0) target = $region9
  $region8: #{_lambda_.1} parent=0 // pred_region
    _
  $region9: #{_lambda_.1} parent=0 // pred_fallthru
    _
  // Predicated region
  $region10: #{_lambda_.1} parent=0 // pred_check
    _
  $region11: #{_lambda_.1} parent=0 // pred_check_branch
    %20 = sbr.rel (0) target = $region13
  $region12: #{_lambda_.1} parent=0 // pred_region
    _
  $region13: #{_lambda_.1} parent=0 // pred_fallthru
    _
  // Predicated region
  $region14: #{_lambda_.1} parent=0 // pred_check
    _
  $region15: #{_lambda_.1} parent=0 // pred_check_branch
    %22 = sbr.rel (0) target = $region17
  $region16: #{_lambda_.1} parent=0 // pred_region
    _
  $region17: #{_lambda_.1} parent=0 // pred_fallthru
    _
  // Predicated region
  $region18: #{_lambda_.1} parent=0 // pred_check
    _
  $region19: #{_lambda_.1} parent=0 // pred_check_branch
    %24 = sbr.rel (0) target = $region21
  $region20: #{_lambda_.1} parent=0 // pred_region
    _
  $region21: #{_lambda_.1} parent=0 // pred_fallthru
    _
  // Predicated region
  $region22: #{_lambda_.1} parent=0 // pred_check
    _
  $region23: #{_lambda_.1} parent=0 // pred_check_branch
    %26 = sbr.rel (0) target = $region25
  $region24: #{_lambda_.1} parent=0 // pred_region
    _
  $region25: #{_lambda_.1} parent=0 // pred_fallthru
    _
  // Predicated region
  $region26: #{_lambda_.1} parent=0 // pred_check
    _
  $region27: #{_lambda_.1} parent=0 // pred_check_branch
    %28 = sbr.rel (0) target = $region29
  $region28: #{_lambda_.1} parent=0 // pred_region
    _
  $region29: #{_lambda_.1} parent=0 // pred_fallthru
    _
  // Predicated region
  $region30: #{_lambda_.1} parent=0 // pred_check
    _
  $region31: #{_lambda_.1} parent=0 // pred_check_branch
    %30 = sbr.rel (0) target = $region33
  $region32: #{_lambda_.1} parent=0 // pred_region
    _
  $region33: #{_lambda_.1} parent=0 // pred_fallthru
    _
  // Predicated region
  $region34: #{_lambda_.1} parent=0 // pred_check
    _
  $region35: #{_lambda_.1} parent=0 // pred_check_branch
    %32 = sbr.rel (0) target = $region37
  $region36: #{_lambda_.1} parent=0 // pred_region
    _
  $region37: #{_lambda_.1} parent=0 // pred_fallthru
    _
  // Predicated region
  $region38: #{_lambda_.1} parent=0 // pred_check
    _
  $region39: #{_lambda_.1} parent=0 // pred_check_branch
    %34 = sbr.rel (0) target = $region41
  $region40: #{_lambda_.1} parent=0 // pred_region
    _
  $region41: #{_lambda_.1} parent=0 // pred_fallthru
    _
  %v36 = vld [vmem:[%s3] sm:$0xff]
  %v37 = vld [vmem:[%s3 + $0x8] sm:$0xff]
  %v38 = vld [vmem:[%s3 + $0x10] sm:$0xff]
  %v39 = vld [vmem:[%s3 + $0x18] sm:$0xff]
  %v40 = vld [vmem:[%s0] sm:$0xff]
  %v41 = vld [vmem:[%s0 + $0x8] sm:$0xff]
  %v42 = vld [vmem:[%s0 + $0x18] sm:$0xff]
  %v43 = vld [vmem:[%s0 + $0x20] sm:$0xff]
  %v44 = vpack.c.bf16 %v41, %v40
  %v45 = vpack.c.bf16 %v43, %v42
  %v46 = vld [vmem:[%s1] sm:$0xf]
  %v47 = vld [vmem:[%s1 + $0x4] sm:$0xf]
  %v48 = vld [vmem:[%s1 + $0x8] sm:$0xf]
  %v49 = vld [vmem:[%s1 + $0xc] sm:$0xf]
  %v50 = vld [vmem:[%s1 + $0x10] sm:$0xf]
  %v51 = vld [vmem:[%s1 + $0x14] sm:$0xf]
  %v52 = vld [vmem:[%s1 + $0x18] sm:$0xf]
  %v53 = vld [vmem:[%s1 + $0x1c] sm:$0xf]
  %v62 = vunpack.c.l.b16 %v46
  %v63 = vunpack.c.l.b16 %v47
  %v64 = vunpack.c.l.b16 %v48
  %v65 = vunpack.c.l.b16 %v49
  %v66 = vunpack.c.l.b16 %v50
  %v67 = vunpack.c.l.b16 %v51
  %v68 = vunpack.c.l.b16 %v52
  %v69 = vunpack.c.l.b16 %v53
  %v70 = vpack.c.b16 %v63, %v62
  %v71 = vpack.c.b16 %v65, %v64
  %v72 = vpack.c.b16 %v67, %v66
  %v73 = vpack.c.b16 %v69, %v68
  %vm78 = vcmask 523264
  %v80 = vsel %vm78, %v44, 0
  %v83 = vsel %vm78, %v45, 0
  %85 = vmatprep.subr.bf16.mxu0 0
  %86 = vmatpush1.bf16.msra.mxu0 %v70
  %87 = vmatprep.subr.bf16.mxu0 0
  %88 = vmatpush1.bf16.msra.mxu0 %v71
  %89 = vmatprep.subr.bf16.mxu0 0
  %90 = vmatpush1.bf16.msra.mxu0 %v72
  %91 = vmatprep.subr.bf16.mxu0 0
  %92 = vmatpush1.bf16.msra.mxu0 %v73
  %93 = vmatprep.subr.bf16.mxu0 0
  %94 = vmatpush1.bf16.msra.mxu0 0
  %95 = vmatprep.subr.bf16.mxu0 0
  %96 = vmatpush1.bf16.msra.mxu0 0
  %97 = vmatprep.subr.bf16.mxu0 0
  %98 = vmatpush1.bf16.msra.mxu0 0
  %99 = vmatprep.subr.bf16.mxu0 0
  %100 = vmatpush1.bf16.msra.mxu0 0
  %101 = vmatprep.subr.bf16.mxu0 0
  %102 = vmatpush1.bf16.msra.mxu0 0
  %103 = vmatprep.subr.bf16.mxu0 0
  %104 = vmatpush1.bf16.msra.mxu0 0
  %105 = vmatprep.subr.bf16.mxu0 0
  %106 = vmatpush1.bf16.msra.mxu0 0
  %107 = vmatprep.subr.bf16.mxu0 0
  %108 = vmatpush1.bf16.msra.mxu0 0
  %109 = vmatprep.subr.bf16.mxu0 0
  %110 = vmatpush1.bf16.msra.mxu0 0
  %111 = vmatprep.subr.bf16.mxu0 0
  %112 = vmatpush1.bf16.msra.mxu0 0
  %113 = vmatprep.subr.bf16.mxu0 0
  %114 = vmatpush1.bf16.msra.mxu0 0
  %115 = vmatprep.subr.bf16.mxu0 0
  %116 = vmatpush1.bf16.msra.mxu0 0
  %117 = vmatprep.mubr.bf16.mxu0 0
  %118 = vmatmul.mubr.bf16.gmra.mrb[0].mxu0 %v80
  %v119 = vpop.f32.mrb[0].mxu0
  %v120 = vadd.f32 0.0, %v119
  %v121 = vpop.f32.mrb[0].mxu0
  %v122 = vpop.f32.mrb[0].mxu0
  %v123 = vadd.f32 0.0, %v122
  %v124 = vpop.f32.mrb[0].mxu0
  %125 = vmatprep.mubr.bf16.mxu0 0
  %126 = vmatmul.mubr.bf16.gmra.mrb[0].mxu0 %v83
  %v127 = vpop.f32.mrb[0].mxu0
  %v128 = vadd.f32 0.0, %v127
  %v129 = vpop.f32.mrb[0].mxu0
  %v130 = vpop.f32.mrb[0].mxu0
  %v131 = vadd.f32 0.0, %v130
  %v132 = vpop.f32.mrb[0].mxu0
  %133 = vdwg.mxu0
  %v134 = vadd.f32 %v36, %v120
  %v135 = vadd.f32 %v37, %v123
  %v136 = vadd.f32 %v38, %v128
  %v137 = vadd.f32 %v39, %v131
  %v138 = vld [vmem:[%s0 + $0x1] sm:$0xff]
  %v139 = vld [vmem:[%s0 + $0x9] sm:$0xff]
  %v140 = vld [vmem:[%s0 + $0x19] sm:$0xff]
  %v141 = vld [vmem:[%s0 + $0x21] sm:$0xff]
  %v142 = vpack.c.bf16 %v139, %v138
  %v143 = vpack.c.bf16 %v141, %v140
  %s144 = scalar_lea.vmem %s1, 32
  %v145 = vld [vmem:[%s144] sm:$0xf]
  %v146 = vld [vmem:[%s144 + $0x4] sm:$0xf]
  %v147 = vld [vmem:[%s144 + $0x8] sm:$0xf]
  %v148 = vld [vmem:[%s144 + $0xc] sm:$0xf]
  %v149 = vld [vmem:[%s144 + $0x10] sm:$0xf]
  %v150 = vld [vmem:[%s144 + $0x14] sm:$0xf]
  %v151 = vld [vmem:[%s144 + $0x18] sm:$0xf]
  %v152 = vld [vmem:[%s144 + $0x1c] sm:$0xf]
  %v161 = vunpack.c.l.b16 %v145
  %v162 = vunpack.c.l.b16 %v146
  %v163 = vunpack.c.l.b16 %v147
  %v164 = vunpack.c.l.b16 %v148
  %v165 = vunpack.c.l.b16 %v149
  %v166 = vunpack.c.l.b16 %v150
  %v167 = vunpack.c.l.b16 %v151
  %v168 = vunpack.c.l.b16 %v152
  %v169 = vpack.c.b16 %v162, %v161
  %v170 = vpack.c.b16 %v164, %v163
  %v171 = vpack.c.b16 %v166, %v165
  %v172 = vpack.c.b16 %v168, %v167
  %v178 = vsel %vm78, %v142, 0
  %v181 = vsel %vm78, %v143, 0
  %183 = vmatprep.subr.bf16.mxu0 0
  %184 = vmatpush1.bf16.msra.mxu0 %v169
  %185 = vmatprep.subr.bf16.mxu0 0
  %186 = vmatpush1.bf16.msra.mxu0 %v170
  %187 = vmatprep.subr.bf16.mxu0 0
  %188 = vmatpush1.bf16.msra.mxu0 %v171
  %189 = vmatprep.subr.bf16.mxu0 0
  %190 = vmatpush1.bf16.msra.mxu0 %v172
  %191 = vmatprep.subr.bf16.mxu0 0
  %192 = vmatpush1.bf16.msra.mxu0 0
  %193 = vmatprep.subr.bf16.mxu0 0
  %194 = vmatpush1.bf16.msra.mxu0 0
  %195 = vmatprep.subr.bf16.mxu0 0
  %196 = vmatpush1.bf16.msra.mxu0 0
  %197 = vmatprep.subr.bf16.mxu0 0
  %198 = vmatpush1.bf16.msra.mxu0 0
  %199 = vmatprep.subr.bf16.mxu0 0
  %200 = vmatpush1.bf16.msra.mxu0 0
  %201 = vmatprep.subr.bf16.mxu0 0
  %202 = vmatpush1.bf16.msra.mxu0 0
  %203 = vmatprep.subr.bf16.mxu0 0
  %204 = vmatpush1.bf16.msra.mxu0 0
  %205 = vmatprep.subr.bf16.mxu0 0
  %206 = vmatpush1.bf16.msra.mxu0 0
  %207 = vmatprep.subr.bf16.mxu0 0
  %208 = vmatpush1.bf16.msra.mxu0 0
  %209 = vmatprep.subr.bf16.mxu0 0
  %210 = vmatpush1.bf16.msra.mxu0 0
  %211 = vmatprep.subr.bf16.mxu0 0
  %212 = vmatpush1.bf16.msra.mxu0 0
  %213 = vmatprep.subr.bf16.mxu0 0
  %214 = vmatpush1.bf16.msra.mxu0 0
  %215 = vmatprep.mubr.bf16.mxu0 0
  %216 = vmatmul.mubr.bf16.gmra.mrb[0].mxu0 %v178
  %v217 = vpop.f32.mrb[0].mxu0
  %v218 = vadd.f32 0.0, %v217
  %v219 = vpop.f32.mrb[0].mxu0
  %v220 = vpop.f32.mrb[0].mxu0
  %v221 = vadd.f32 0.0, %v220
  %v222 = vpop.f32.mrb[0].mxu0
  %223 = vmatprep.mubr.bf16.mxu0 0
  %224 = vmatmul.mubr.bf16.gmra.mrb[0].mxu0 %v181
  %v225 = vpop.f32.mrb[0].mxu0
  %v226 = vadd.f32 0.0, %v225
  %v227 = vpop.f32.mrb[0].mxu0
  %v228 = vpop.f32.mrb[0].mxu0
  %v229 = vadd.f32 0.0, %v228
  %v230 = vpop.f32.mrb[0].mxu0
  %231 = vdwg.mxu0
  %v232 = vadd.f32 %v134, %v218
  %v233 = vadd.f32 %v135, %v221
  %v234 = vadd.f32 %v136, %v226
  %v235 = vadd.f32 %v137, %v229
  %v236 = vld [vmem:[%s0 + $0x2] sm:$0xff]
  %v237 = vld [vmem:[%s0 + $0xa] sm:$0xff]
  %v238 = vld [vmem:[%s0 + $0x1a] sm:$0xff]
  %v239 = vld [vmem:[%s0 + $0x22] sm:$0xff]
  %v240 = vpack.c.bf16 %v237, %v236
  %v241 = vpack.c.bf16 %v239, %v238
  %s242 = scalar_lea.vmem %s1, 64
  %v243 = vld [vmem:[%s242] sm:$0xf]
  %v244 = vld [vmem:[%s242 + $0x4] sm:$0xf]
  %v245 = vld [vmem:[%s242 + $0x8] sm:$0xf]
  %v246 = vld [vmem:[%s242 + $0xc] sm:$0xf]
  %v247 = vld [vmem:[%s242 + $0x10] sm:$0xf]
  %v248 = vld [vmem:[%s242 + $0x14] sm:$0xf]
  %v249 = vld [vmem:[%s242 + $0x18] sm:$0xf]
  %v250 = vld [vmem:[%s242 + $0x1c] sm:$0xf]
  %v259 = vunpack.c.l.b16 %v243
  %v260 = vunpack.c.l.b16 %v244
  %v261 = vunpack.c.l.b16 %v245
  %v262 = vunpack.c.l.b16 %v246
  %v263 = vunpack.c.l.b16 %v247
  %v264 = vunpack.c.l.b16 %v248
  %v265 = vunpack.c.l.b16 %v249
  %v266 = vunpack.c.l.b16 %v250
  %v267 = vpack.c.b16 %v260, %v259
  %v268 = vpack.c.b16 %v262, %v261
  %v269 = vpack.c.b16 %v264, %v263
  %v270 = vpack.c.b16 %v266, %v265
  %v276 = vsel %vm78, %v240, 0
  %v279 = vsel %vm78, %v241, 0
  %281 = vmatprep.subr.bf16.mxu0 0
  %282 = vmatpush1.bf16.msra.mxu0 %v267
  %283 = vmatprep.subr.bf16.mxu0 0
  %284 = vmatpush1.bf16.msra.mxu0 %v268
  %285 = vmatprep.subr.bf16.mxu0 0
  %286 = vmatpush1.bf16.msra.mxu0 %v269
  %287 = vmatprep.subr.bf16.mxu0 0
  %288 = vmatpush1.bf16.msra.mxu0 %v270
  %289 = vmatprep.subr.bf16.mxu0 0
  %290 = vmatpush1.bf16.msra.mxu0 0
  %291 = vmatprep.subr.bf16.mxu0 0
  %292 = vmatpush1.bf16.msra.mxu0 0
  %293 = vmatprep.subr.bf16.mxu0 0
  %294 = vmatpush1.bf16.msra.mxu0 0
  %295 = vmatprep.subr.bf16.mxu0 0
  %296 = vmatpush1.bf16.msra.mxu0 0
  %297 = vmatprep.subr.bf16.mxu0 0
  %298 = vmatpush1.bf16.msra.mxu0 0
  %299 = vmatprep.subr.bf16.mxu0 0
  %300 = vmatpush1.bf16.msra.mxu0 0
  %301 = vmatprep.subr.bf16.mxu0 0
  %302 = vmatpush1.bf16.msra.mxu0 0
  %303 = vmatprep.subr.bf16.mxu0 0
  %304 = vmatpush1.bf16.msra.mxu0 0
  %305 = vmatprep.subr.bf16.mxu0 0
  %306 = vmatpush1.bf16.msra.mxu0 0
  %307 = vmatprep.subr.bf16.mxu0 0
  %308 = vmatpush1.bf16.msra.mxu0 0
  %309 = vmatprep.subr.bf16.mxu0 0
  %310 = vmatpush1.bf16.msra.mxu0 0
  %311 = vmatprep.subr.bf16.mxu0 0
  %312 = vmatpush1.bf16.msra.mxu0 0
  %313 = vmatprep.mubr.bf16.mxu0 0
  %314 = vmatmul.mubr.bf16.gmra.mrb[0].mxu0 %v276
  %v315 = vpop.f32.mrb[0].mxu0
  %v316 = vadd.f32 0.0, %v315
  %v317 = vpop.f32.mrb[0].mxu0
  %v318 = vpop.f32.mrb[0].mxu0
  %v319 = vadd.f32 0.0, %v318
  %v320 = vpop.f32.mrb[0].mxu0
  %321 = vmatprep.mubr.bf16.mxu0 0
  %322 = vmatmul.mubr.bf16.gmra.mrb[0].mxu0 %v279
  %v323 = vpop.f32.mrb[0].mxu0
  %v324 = vadd.f32 0.0, %v323
  %v325 = vpop.f32.mrb[0].mxu0
  %v326 = vpop.f32.mrb[0].mxu0
  %v327 = vadd.f32 0.0, %v326
  %v328 = vpop.f32.mrb[0].mxu0
  %329 = vdwg.mxu0
  %v330 = vadd.f32 %v232, %v316
  %v331 = vadd.f32 %v233, %v319
  %v332 = vadd.f32 %v234, %v324
  %v333 = vadd.f32 %v235, %v327
  %v334 = vld [vmem:[%s6] sm:$0x1]
  %v335 = vld [vmem:[%s7] sm:$0x1]
  %v336 = vmax.f32 %v330, 0.0
  %v337 = vmax.f32 %v331, 0.0
  %v338 = vmax.f32 %v332, 0.0
  %v339 = vmax.f32 %v333, 0.0
  %v340 = vsel %vm78, %v336, 0.0
  %v341 = vsel %vm78, %v337, 0.0
  %v342 = vadd.f32 %v340, %v341
  %v343 = vsel %vm78, %v338, 0.0
  %v344 = vadd.f32 %v342, %v343
  %v345 = vsel %vm78, %v339, 0.0
  %v346 = vadd.f32 %v344, %v345
  %v347 = vrot.slane %v346, 4
  %v348 = vadd.f32 %v346, %v347
  %v349 = vrot.slane %v348, 2
  %v350 = vadd.f32 %v348, %v349
  %v351 = vrot.slane %v350, 1
  %v352 = vadd.f32 %v350, %v351
  %v353 = vld [vmem:[%s5] sm:$0xff]
  %v354 = vld [vmem:[%s5 + $0x8] sm:$0xff]
  %v355 = vld [vmem:[%s5 + $0x10] sm:$0xff]
  %v356 = vld [vmem:[%s5 + $0x18] sm:$0xff]
  %v357 = vld [vmem:[%s5 + $0x20] sm:$0xff]
  %v358 = vld [vmem:[%s5 + $0x28] sm:$0xff]
  %v359 = vld [vmem:[%s5 + $0x30] sm:$0xff]
  %v360 = vld [vmem:[%s5 + $0x38] sm:$0xff]
  %v362 = vsel %vm78, %v352, 0
  %364 = vmatprep.subr.mxu0 0.0
  %v365 = vand.u32 %v353, 4294901760
  %366 = vmatpush1.msra.mxu0 %v365
  %367 = vmatprep.subr.mxu0 0.0
  %v368 = vand.u32 %v354, 4294901760
  %369 = vmatpush1.msra.mxu0 %v368
  %370 = vmatprep.subr.mxu0 0.0
  %v371 = vand.u32 %v355, 4294901760
  %372 = vmatpush1.msra.mxu0 %v371
  %373 = vmatprep.subr.mxu0 0.0
  %v374 = vand.u32 %v356, 4294901760
  %375 = vmatpush1.msra.mxu0 %v374
  %376 = vmatprep.subr.mxu0 0.0
  %v377 = vand.u32 %v357, 4294901760
  %378 = vmatpush1.msra.mxu0 %v377
  %379 = vmatprep.subr.mxu0 0.0
  %v380 = vand.u32 %v358, 4294901760
  %381 = vmatpush1.msra.mxu0 %v380
  %382 = vmatprep.subr.mxu0 0.0
  %v383 = vand.u32 %v359, 4294901760
  %384 = vmatpush1.msra.mxu0 %v383
  %385 = vmatprep.subr.mxu0 0.0
  %v386 = vand.u32 %v360, 4294901760
  %387 = vmatpush1.msra.mxu0 %v386
  %388 = vmatprep.subr.mxu0 0.0
  %389 = vmatpush1.msra.mxu0 0.0
  %390 = vmatprep.subr.mxu0 0.0
  %391 = vmatpush1.msra.mxu0 0.0
  %392 = vmatprep.subr.mxu0 0.0
  %393 = vmatpush1.msra.mxu0 0.0
  %394 = vmatprep.subr.mxu0 0.0
  %395 = vmatpush1.msra.mxu0 0.0
  %396 = vmatprep.subr.mxu0 0.0
  %397 = vmatpush1.msra.mxu0 0.0
  %398 = vmatprep.subr.mxu0 0.0
  %399 = vmatpush1.msra.mxu0 0.0
  %400 = vmatprep.subr.mxu0 0.0
  %401 = vmatpush1.msra.mxu0 0.0
  %402 = vmatprep.subr.mxu0 0.0
  %403 = vmatpush1.msra.mxu0 0.0
  %404 = vmatprep.subr.mxu0 0.0
  %405 = vmatpush1.msra.mxu0 0.0
  %406 = vmatprep.subr.mxu0 0.0
  %407 = vmatpush1.msra.mxu0 0.0
  %408 = vmatprep.subr.mxu0 0.0
  %409 = vmatpush1.msra.mxu0 0.0
  %410 = vmatprep.subr.mxu0 0.0
  %411 = vmatpush1.msra.mxu0 0.0
  %412 = vmatprep.subr.mxu0 0.0
  %413 = vmatpush1.msra.mxu0 0.0
  %414 = vmatprep.subr.mxu0 0.0
  %415 = vmatpush1.msra.mxu0 0.0
  %416 = vmatprep.subr.mxu0 0.0
  %417 = vmatpush1.msra.mxu0 0.0
  %418 = vmatprep.subr.mxu0 0.0
  %419 = vmatpush1.msra.mxu0 0.0
  %420 = vmatprep.subr.mxu0 0.0
  %421 = vmatpush1.msra.mxu0 0.0
  %422 = vmatprep.subr.mxu0 0.0
  %423 = vmatpush1.msra.mxu0 0.0
  %424 = vmatprep.subr.mxu0 0.0
  %425 = vmatpush1.msra.mxu0 0.0
  %426 = vmatprep.subr.mxu0 0.0
  %427 = vmatpush1.msra.mxu0 0.0
  %428 = vmatprep.subr.mxu0 0.0
  %429 = vmatpush1.msra.mxu0 0.0
  %430 = vmatprep.subr.mxu0 0.0
  %431 = vmatpush1.msra.mxu0 0.0
  %432 = vmatprep.subr.mxu0 0.0
  %433 = vmatpush1.msra.mxu0 0.0
  %434 = vmatprep.subr.mxu0 0.0
  %435 = vmatpush1.msra.mxu0 0.0
  %436 = vmatprep.mubr.f32.mxu0 0.0
  %v437 = vand.u32 %v362, 4294901760
  %v438 = vsub.f32 %v362, %v437
  %v439 = vand.u32 %v438, 4294901760
  %v440 = vsub.f32 %v438, %v439
  %v441 = vand.u32 %v440, 4294901760
  %442 = vmatmul.mubr.f32.gmra.mrb[0].mxu0 %v441
  %v443 = vpop.f32.mrb[0].mxu0
  %v444 = vadd.f32 0.0, %v443
  %v445 = vpop.f32.mrb[0].mxu0
  %446 = vdwg.mxu0
  %447 = vmatprep.subr.mxu0 0.0
  %v448 = vand.u32 %v353, 4294901760
  %v449 = vsub.f32 %v353, %v448
  %v450 = vand.u32 %v449, 4294901760
  %v451 = vsub.f32 %v449, %v450
  %v452 = vand.u32 %v451, 4294901760
  %453 = vmatpush1.msra.mxu0 %v452
  %454 = vmatprep.subr.mxu0 0.0
  %v455 = vand.u32 %v354, 4294901760
  %v456 = vsub.f32 %v354, %v455
  %v457 = vand.u32 %v456, 4294901760
  %v458 = vsub.f32 %v456, %v457
  %v459 = vand.u32 %v458, 4294901760
  %460 = vmatpush1.msra.mxu0 %v459
  %461 = vmatprep.subr.mxu0 0.0
  %v462 = vand.u32 %v355, 4294901760
  %v463 = vsub.f32 %v355, %v462
  %v464 = vand.u32 %v463, 4294901760
  %v465 = vsub.f32 %v463, %v464
  %v466 = vand.u32 %v465, 4294901760
  %467 = vmatpush1.msra.mxu0 %v466
  %468 = vmatprep.subr.mxu0 0.0
  %v469 = vand.u32 %v356, 4294901760
  %v470 = vsub.f32 %v356, %v469
  %v471 = vand.u32 %v470, 4294901760
  %v472 = vsub.f32 %v470, %v471
  %v473 = vand.u32 %v472, 4294901760
  %474 = vmatpush1.msra.mxu0 %v473
  %475 = vmatprep.subr.mxu0 0.0
  %v476 = vand.u32 %v357, 4294901760
  %v477 = vsub.f32 %v357, %v476
  %v478 = vand.u32 %v477, 4294901760
  %v479 = vsub.f32 %v477, %v478
  %v480 = vand.u32 %v479, 4294901760
  %481 = vmatpush1.msra.mxu0 %v480
  %482 = vmatprep.subr.mxu0 0.0
  %v483 = vand.u32 %v358, 4294901760
  %v484 = vsub.f32 %v358, %v483
  %v485 = vand.u32 %v484, 4294901760
  %v486 = vsub.f32 %v484, %v485
  %v487 = vand.u32 %v486, 4294901760
  %488 = vmatpush1.msra.mxu0 %v487
  %489 = vmatprep.subr.mxu0 0.0
  %v490 = vand.u32 %v359, 4294901760
  %v491 = vsub.f32 %v359, %v490
  %v492 = vand.u32 %v491, 4294901760
  %v493 = vsub.f32 %v491, %v492
  %v494 = vand.u32 %v493, 4294901760
  %495 = vmatpush1.msra.mxu0 %v494
  %496 = vmatprep.subr.mxu0 0.0
  %v497 = vand.u32 %v360, 4294901760
  %v498 = vsub.f32 %v360, %v497
  %v499 = vand.u32 %v498, 4294901760
  %v500 = vsub.f32 %v498, %v499
  %v501 = vand.u32 %v500, 4294901760
  %502 = vmatpush1.msra.mxu0 %v501
  %503 = vmatprep.subr.mxu0 0.0
  %504 = vmatpush1.msra.mxu0 0.0
  %505 = vmatprep.subr.mxu0 0.0
  %506 = vmatpush1.msra.mxu0 0.0
  %507 = vmatprep.subr.mxu0 0.0
  %508 = vmatpush1.msra.mxu0 0.0
  %509 = vmatprep.subr.mxu0 0.0
  %510 = vmatpush1.msra.mxu0 0.0
  %511 = vmatprep.subr.mxu0 0.0
  %512 = vmatpush1.msra.mxu0 0.0
  %513 = vmatprep.subr.mxu0 0.0
  %514 = vmatpush1.msra.mxu0 0.0
  %515 = vmatprep.subr.mxu0 0.0
  %516 = vmatpush1.msra.mxu0 0.0
  %517 = vmatprep.subr.mxu0 0.0
  %518 = vmatpush1.msra.mxu0 0.0
  %519 = vmatprep.subr.mxu0 0.0
  %520 = vmatpush1.msra.mxu0 0.0
  %521 = vmatprep.subr.mxu0 0.0
  %522 = vmatpush1.msra.mxu0 0.0
  %523 = vmatprep.subr.mxu0 0.0
  %524 = vmatpush1.msra.mxu0 0.0
  %525 = vmatprep.subr.mxu0 0.0
  %526 = vmatpush1.msra.mxu0 0.0
  %527 = vmatprep.subr.mxu0 0.0
  %528 = vmatpush1.msra.mxu0 0.0
  %529 = vmatprep.subr.mxu0 0.0
  %530 = vmatpush1.msra.mxu0 0.0
  %531 = vmatprep.subr.mxu0 0.0
  %532 = vmatpush1.msra.mxu0 0.0
  %533 = vmatprep.subr.mxu0 0.0
  %534 = vmatpush1.msra.mxu0 0.0
  %535 = vmatprep.subr.mxu0 0.0
  %536 = vmatpush1.msra.mxu0 0.0
  %537 = vmatprep.subr.mxu0 0.0
  %538 = vmatpush1.msra.mxu0 0.0
  %539 = vmatprep.subr.mxu0 0.0
  %540 = vmatpush1.msra.mxu0 0.0
  %541 = vmatprep.subr.mxu0 0.0
  %542 = vmatpush1.msra.mxu0 0.0
  %543 = vmatprep.subr.mxu0 0.0
  %544 = vmatpush1.msra.mxu0 0.0
  %545 = vmatprep.subr.mxu0 0.0
  %546 = vmatpush1.msra.mxu0 0.0
  %547 = vmatprep.subr.mxu0 0.0
  %548 = vmatpush1.msra.mxu0 0.0
  %549 = vmatprep.subr.mxu0 0.0
  %550 = vmatpush1.msra.mxu0 0.0
  %551 = vmatprep.mubr.f32.mxu0 0.0
  %v552 = vand.u32 %v362, 4294901760
  %553 = vmatmul.mubr.f32.gmra.mrb[0].mxu0 %v552
  %v554 = vpop.f32.mrb[0].mxu0
  %v555 = vadd.f32 %v444, %v554
  %v556 = vpop.f32.mrb[0].mxu0
  %557 = vdwg.mxu0
  %558 = vmatprep.subr.mxu0 0.0
  %v559 = vand.u32 %v353, 4294901760
  %v560 = vsub.f32 %v353, %v559
  %561 = vmatpush1.msra.mxu0 %v560
  %562 = vmatprep.subr.mxu0 0.0
  %v563 = vand.u32 %v354, 4294901760
  %v564 = vsub.f32 %v354, %v563
  %565 = vmatpush1.msra.mxu0 %v564
  %566 = vmatprep.subr.mxu0 0.0
  %v567 = vand.u32 %v355, 4294901760
  %v568 = vsub.f32 %v355, %v567
  %569 = vmatpush1.msra.mxu0 %v568
  %570 = vmatprep.subr.mxu0 0.0
  %v571 = vand.u32 %v356, 4294901760
  %v572 = vsub.f32 %v356, %v571
  %573 = vmatpush1.msra.mxu0 %v572
  %574 = vmatprep.subr.mxu0 0.0
  %v575 = vand.u32 %v357, 4294901760
  %v576 = vsub.f32 %v357, %v575
  %577 = vmatpush1.msra.mxu0 %v576
  %578 = vmatprep.subr.mxu0 0.0
  %v579 = vand.u32 %v358, 4294901760
  %v580 = vsub.f32 %v358, %v579
  %581 = vmatpush1.msra.mxu0 %v580
  %582 = vmatprep.subr.mxu0 0.0
  %v583 = vand.u32 %v359, 4294901760
  %v584 = vsub.f32 %v359, %v583
  %585 = vmatpush1.msra.mxu0 %v584
  %586 = vmatprep.subr.mxu0 0.0
  %v587 = vand.u32 %v360, 4294901760
  %v588 = vsub.f32 %v360, %v587
  %589 = vmatpush1.msra.mxu0 %v588
  %590 = vmatprep.subr.mxu0 0.0
  %591 = vmatpush1.msra.mxu0 0.0
  %592 = vmatprep.subr.mxu0 0.0
  %593 = vmatpush1.msra.mxu0 0.0
  %594 = vmatprep.subr.mxu0 0.0
  %595 = vmatpush1.msra.mxu0 0.0
  %596 = vmatprep.subr.mxu0 0.0
  %597 = vmatpush1.msra.mxu0 0.0
  %598 = vmatprep.subr.mxu0 0.0
  %599 = vmatpush1.msra.mxu0 0.0
  %600 = vmatprep.subr.mxu0 0.0
  %601 = vmatpush1.msra.mxu0 0.0
  %602 = vmatprep.subr.mxu0 0.0
  %603 = vmatpush1.msra.mxu0 0.0
  %604 = vmatprep.subr.mxu0 0.0
  %605 = vmatpush1.msra.mxu0 0.0
  %606 = vmatprep.subr.mxu0 0.0
  %607 = vmatpush1.msra.mxu0 0.0
  %608 = vmatprep.subr.mxu0 0.0
  %609 = vmatpush1.msra.mxu0 0.0
  %610 = vmatprep.subr.mxu0 0.0
  %611 = vmatpush1.msra.mxu0 0.0
  %612 = vmatprep.subr.mxu0 0.0
  %613 = vmatpush1.msra.mxu0 0.0
  %614 = vmatprep.subr.mxu0 0.0
  %615 = vmatpush1.msra.mxu0 0.0
  %616 = vmatprep.subr.mxu0 0.0
  %617 = vmatpush1.msra.mxu0 0.0
  %618 = vmatprep.subr.mxu0 0.0
  %619 = vmatpush1.msra.mxu0 0.0
  %620 = vmatprep.subr.mxu0 0.0
  %621 = vmatpush1.msra.mxu0 0.0
  %622 = vmatprep.subr.mxu0 0.0
  %623 = vmatpush1.msra.mxu0 0.0
  %624 = vmatprep.subr.mxu0 0.0
  %625 = vmatpush1.msra.mxu0 0.0
  %626 = vmatprep.subr.mxu0 0.0
  %627 = vmatpush1.msra.mxu0 0.0
  %628 = vmatprep.subr.mxu0 0.0
  %629 = vmatpush1.msra.mxu0 0.0
  %630 = vmatprep.subr.mxu0 0.0
  %631 = vmatpush1.msra.mxu0 0.0
  %632 = vmatprep.subr.mxu0 0.0
  %633 = vmatpush1.msra.mxu0 0.0
  %634 = vmatprep.subr.mxu0 0.0
  %635 = vmatpush1.msra.mxu0 0.0
  %636 = vmatprep.subr.mxu0 0.0
  %637 = vmatpush1.msra.mxu0 0.0
  %638 = vmatprep.mubr.f32.mxu0 0.0
  %v639 = vand.u32 %v362, 4294901760
  %v640 = vsub.f32 %v362, %v639
  %641 = vmatmul.mubr.f32.gmra.mrb[0].mxu0 %v640
  %v642 = vpop.f32.mrb[0].mxu0
  %v643 = vadd.f32 %v555, %v642
  %v644 = vpop.f32.mrb[0].mxu0
  %645 = vdwg.mxu0
  %646 = vmatprep.subr.mxu0 0.0
  %v647 = vand.u32 %v353, 4294901760
  %648 = vmatpush1.msra.mxu0 %v647
  %649 = vmatprep.subr.mxu0 0.0
  %v650 = vand.u32 %v354, 4294901760
  %651 = vmatpush1.msra.mxu0 %v650
  %652 = vmatprep.subr.mxu0 0.0
  %v653 = vand.u32 %v355, 4294901760
  %654 = vmatpush1.msra.mxu0 %v653
  %655 = vmatprep.subr.mxu0 0.0
  %v656 = vand.u32 %v356, 4294901760
  %657 = vmatpush1.msra.mxu0 %v656
  %658 = vmatprep.subr.mxu0 0.0
  %v659 = vand.u32 %v357, 4294901760
  %660 = vmatpush1.msra.mxu0 %v659
  %661 = vmatprep.subr.mxu0 0.0
  %v662 = vand.u32 %v358, 4294901760
  %663 = vmatpush1.msra.mxu0 %v662
  %664 = vmatprep.subr.mxu0 0.0
  %v665 = vand.u32 %v359, 4294901760
  %666 = vmatpush1.msra.mxu0 %v665
  %667 = vmatprep.subr.mxu0 0.0
  %v668 = vand.u32 %v360, 4294901760
  %669 = vmatpush1.msra.mxu0 %v668
  %670 = vmatprep.subr.mxu0 0.0
  %671 = vmatpush1.msra.mxu0 0.0
  %672 = vmatprep.subr.mxu0 0.0
  %673 = vmatpush1.msra.mxu0 0.0
  %674 = vmatprep.subr.mxu0 0.0
  %675 = vmatpush1.msra.mxu0 0.0
  %676 = vmatprep.subr.mxu0 0.0
  %677 = vmatpush1.msra.mxu0 0.0
  %678 = vmatprep.subr.mxu0 0.0
  %679 = vmatpush1.msra.mxu0 0.0
  %680 = vmatprep.subr.mxu0 0.0
  %681 = vmatpush1.msra.mxu0 0.0
  %682 = vmatprep.subr.mxu0 0.0
  %683 = vmatpush1.msra.mxu0 0.0
  %684 = vmatprep.subr.mxu0 0.0
  %685 = vmatpush1.msra.mxu0 0.0
  %686 = vmatprep.subr.mxu0 0.0
  %687 = vmatpush1.msra.mxu0 0.0
  %688 = vmatprep.subr.mxu0 0.0
  %689 = vmatpush1.msra.mxu0 0.0
  %690 = vmatprep.subr.mxu0 0.0
  %691 = vmatpush1.msra.mxu0 0.0
  %692 = vmatprep.subr.mxu0 0.0
  %693 = vmatpush1.msra.mxu0 0.0
  %694 = vmatprep.subr.mxu0 0.0
  %695 = vmatpush1.msra.mxu0 0.0
  %696 = vmatprep.subr.mxu0 0.0
  %697 = vmatpush1.msra.mxu0 0.0
  %698 = vmatprep.subr.mxu0 0.0
  %699 = vmatpush1.msra.mxu0 0.0
  %700 = vmatprep.subr.mxu0 0.0
  %701 = vmatpush1.msra.mxu0 0.0
  %702 = vmatprep.subr.mxu0 0.0
  %703 = vmatpush1.msra.mxu0 0.0
  %704 = vmatprep.subr.mxu0 0.0
  %705 = vmatpush1.msra.mxu0 0.0
  %706 = vmatprep.subr.mxu0 0.0
  %707 = vmatpush1.msra.mxu0 0.0
  %708 = vmatprep.subr.mxu0 0.0
  %709 = vmatpush1.msra.mxu0 0.0
  %710 = vmatprep.subr.mxu0 0.0
  %711 = vmatpush1.msra.mxu0 0.0
  %712 = vmatprep.subr.mxu0 0.0
  %713 = vmatpush1.msra.mxu0 0.0
  %714 = vmatprep.subr.mxu0 0.0
  %715 = vmatpush1.msra.mxu0 0.0
  %716 = vmatprep.subr.mxu0 0.0
  %717 = vmatpush1.msra.mxu0 0.0
  %718 = vmatprep.mubr.f32.mxu0 0.0
  %v719 = vand.u32 %v362, 4294901760
  %v720 = vsub.f32 %v362, %v719
  %v721 = vand.u32 %v720, 4294901760
  %722 = vmatmul.mubr.f32.gmra.mrb[0].mxu0 %v721
  %v723 = vpop.f32.mrb[0].mxu0
  %v724 = vadd.f32 %v643, %v723
  %v725 = vpop.f32.mrb[0].mxu0
  %726 = vdwg.mxu0
  %727 = vmatprep.subr.mxu0 0.0
  %v728 = vand.u32 %v353, 4294901760
  %v729 = vsub.f32 %v353, %v728
  %v730 = vand.u32 %v729, 4294901760
  %731 = vmatpush1.msra.mxu0 %v730
  %732 = vmatprep.subr.mxu0 0.0
  %v733 = vand.u32 %v354, 4294901760
  %v734 = vsub.f32 %v354, %v733
  %v735 = vand.u32 %v734, 4294901760
  %736 = vmatpush1.msra.mxu0 %v735
  %737 = vmatprep.subr.mxu0 0.0
  %v738 = vand.u32 %v355, 4294901760
  %v739 = vsub.f32 %v355, %v738
  %v740 = vand.u32 %v739, 4294901760
  %741 = vmatpush1.msra.mxu0 %v740
  %742 = vmatprep.subr.mxu0 0.0
  %v743 = vand.u32 %v356, 4294901760
  %v744 = vsub.f32 %v356, %v743
  %v745 = vand.u32 %v744, 4294901760
  %746 = vmatpush1.msra.mxu0 %v745
  %747 = vmatprep.subr.mxu0 0.0
  %v748 = vand.u32 %v357, 4294901760
  %v749 = vsub.f32 %v357, %v748
  %v750 = vand.u32 %v749, 4294901760
  %751 = vmatpush1.msra.mxu0 %v750
  %752 = vmatprep.subr.mxu0 0.0
  %v753 = vand.u32 %v358, 4294901760
  %v754 = vsub.f32 %v358, %v753
  %v755 = vand.u32 %v754, 4294901760
  %756 = vmatpush1.msra.mxu0 %v755
  %757 = vmatprep.subr.mxu0 0.0
  %v758 = vand.u32 %v359, 4294901760
  %v759 = vsub.f32 %v359, %v758
  %v760 = vand.u32 %v759, 4294901760
  %761 = vmatpush1.msra.mxu0 %v760
  %762 = vmatprep.subr.mxu0 0.0
  %v763 = vand.u32 %v360, 4294901760
  %v764 = vsub.f32 %v360, %v763
  %v765 = vand.u32 %v764, 4294901760
  %766 = vmatpush1.msra.mxu0 %v765
  %767 = vmatprep.subr.mxu0 0.0
  %768 = vmatpush1.msra.mxu0 0.0
  %769 = vmatprep.subr.mxu0 0.0
  %770 = vmatpush1.msra.mxu0 0.0
  %771 = vmatprep.subr.mxu0 0.0
  %772 = vmatpush1.msra.mxu0 0.0
  %773 = vmatprep.subr.mxu0 0.0
  %774 = vmatpush1.msra.mxu0 0.0
  %775 = vmatprep.subr.mxu0 0.0
  %776 = vmatpush1.msra.mxu0 0.0
  %777 = vmatprep.subr.mxu0 0.0
  %778 = vmatpush1.msra.mxu0 0.0
  %779 = vmatprep.subr.mxu0 0.0
  %780 = vmatpush1.msra.mxu0 0.0
  %781 = vmatprep.subr.mxu0 0.0
  %782 = vmatpush1.msra.mxu0 0.0
  %783 = vmatprep.subr.mxu0 0.0
  %784 = vmatpush1.msra.mxu0 0.0
  %785 = vmatprep.subr.mxu0 0.0
  %786 = vmatpush1.msra.mxu0 0.0
  %787 = vmatprep.subr.mxu0 0.0
  %788 = vmatpush1.msra.mxu0 0.0
  %789 = vmatprep.subr.mxu0 0.0
  %790 = vmatpush1.msra.mxu0 0.0
  %791 = vmatprep.subr.mxu0 0.0
  %792 = vmatpush1.msra.mxu0 0.0
  %793 = vmatprep.subr.mxu0 0.0
  %794 = vmatpush1.msra.mxu0 0.0
  %795 = vmatprep.subr.mxu0 0.0
  %796 = vmatpush1.msra.mxu0 0.0
  %797 = vmatprep.subr.mxu0 0.0
  %798 = vmatpush1.msra.mxu0 0.0
  %799 = vmatprep.subr.mxu0 0.0
  %800 = vmatpush1.msra.mxu0 0.0
  %801 = vmatprep.subr.mxu0 0.0
  %802 = vmatpush1.msra.mxu0 0.0
  %803 = vmatprep.subr.mxu0 0.0
  %804 = vmatpush1.msra.mxu0 0.0
  %805 = vmatprep.subr.mxu0 0.0
  %806 = vmatpush1.msra.mxu0 0.0
  %807 = vmatprep.subr.mxu0 0.0
  %808 = vmatpush1.msra.mxu0 0.0
  %809 = vmatprep.subr.mxu0 0.0
  %810 = vmatpush1.msra.mxu0 0.0
  %811 = vmatprep.subr.mxu0 0.0
  %812 = vmatpush1.msra.mxu0 0.0
  %813 = vmatprep.subr.mxu0 0.0
  %814 = vmatpush1.msra.mxu0 0.0
  %815 = vmatprep.mubr.f32.mxu0 0.0
  %v816 = vand.u32 %v362, 4294901760
  %817 = vmatmul.mubr.f32.gmra.mrb[0].mxu0 %v816
  %v818 = vpop.f32.mrb[0].mxu0
  %v819 = vadd.f32 %v724, %v818
  %v820 = vpop.f32.mrb[0].mxu0
  %821 = vdwg.mxu0
  %822 = vmatprep.subr.mxu0 0.0
  %v823 = vand.u32 %v353, 4294901760
  %824 = vmatpush1.msra.mxu0 %v823
  %825 = vmatprep.subr.mxu0 0.0
  %v826 = vand.u32 %v354, 4294901760
  %827 = vmatpush1.msra.mxu0 %v826
  %828 = vmatprep.subr.mxu0 0.0
  %v829 = vand.u32 %v355, 4294901760
  %830 = vmatpush1.msra.mxu0 %v829
  %831 = vmatprep.subr.mxu0 0.0
  %v832 = vand.u32 %v356, 4294901760
  %833 = vmatpush1.msra.mxu0 %v832
  %834 = vmatprep.subr.mxu0 0.0
  %v835 = vand.u32 %v357, 4294901760
  %836 = vmatpush1.msra.mxu0 %v835
  %837 = vmatprep.subr.mxu0 0.0
  %v838 = vand.u32 %v358, 4294901760
  %839 = vmatpush1.msra.mxu0 %v838
  %840 = vmatprep.subr.mxu0 0.0
  %v841 = vand.u32 %v359, 4294901760
  %842 = vmatpush1.msra.mxu0 %v841
  %843 = vmatprep.subr.mxu0 0.0
  %v844 = vand.u32 %v360, 4294901760
  %845 = vmatpush1.msra.mxu0 %v844
  %846 = vmatprep.subr.mxu0 0.0
  %847 = vmatpush1.msra.mxu0 0.0
  %848 = vmatprep.subr.mxu0 0.0
  %849 = vmatpush1.msra.mxu0 0.0
  %850 = vmatprep.subr.mxu0 0.0
  %851 = vmatpush1.msra.mxu0 0.0
  %852 = vmatprep.subr.mxu0 0.0
  %853 = vmatpush1.msra.mxu0 0.0
  %854 = vmatprep.subr.mxu0 0.0
  %855 = vmatpush1.msra.mxu0 0.0
  %856 = vmatprep.subr.mxu0 0.0
  %857 = vmatpush1.msra.mxu0 0.0
  %858 = vmatprep.subr.mxu0 0.0
  %859 = vmatpush1.msra.mxu0 0.0
  %860 = vmatprep.subr.mxu0 0.0
  %861 = vmatpush1.msra.mxu0 0.0
  %862 = vmatprep.subr.mxu0 0.0
  %863 = vmatpush1.msra.mxu0 0.0
  %864 = vmatprep.subr.mxu0 0.0
  %865 = vmatpush1.msra.mxu0 0.0
  %866 = vmatprep.subr.mxu0 0.0
  %867 = vmatpush1.msra.mxu0 0.0
  %868 = vmatprep.subr.mxu0 0.0
  %869 = vmatpush1.msra.mxu0 0.0
  %870 = vmatprep.subr.mxu0 0.0
  %871 = vmatpush1.msra.mxu0 0.0
  %872 = vmatprep.subr.mxu0 0.0
  %873 = vmatpush1.msra.mxu0 0.0
  %874 = vmatprep.subr.mxu0 0.0
  %875 = vmatpush1.msra.mxu0 0.0
  %876 = vmatprep.subr.mxu0 0.0
  %877 = vmatpush1.msra.mxu0 0.0
  %878 = vmatprep.subr.mxu0 0.0
  %879 = vmatpush1.msra.mxu0 0.0
  %880 = vmatprep.subr.mxu0 0.0
  %881 = vmatpush1.msra.mxu0 0.0
  %882 = vmatprep.subr.mxu0 0.0
  %883 = vmatpush1.msra.mxu0 0.0
  %884 = vmatprep.subr.mxu0 0.0
  %885 = vmatpush1.msra.mxu0 0.0
  %886 = vmatprep.subr.mxu0 0.0
  %887 = vmatpush1.msra.mxu0 0.0
  %888 = vmatprep.subr.mxu0 0.0
  %889 = vmatpush1.msra.mxu0 0.0
  %890 = vmatprep.subr.mxu0 0.0
  %891 = vmatpush1.msra.mxu0 0.0
  %892 = vmatprep.subr.mxu0 0.0
  %893 = vmatpush1.msra.mxu0 0.0
  %894 = vmatprep.mubr.f32.mxu0 0.0
  %v895 = vand.u32 %v362, 4294901760
  %896 = vmatmul.mubr.f32.gmra.mrb[0].mxu0 %v895
  %v897 = vpop.f32.mrb[0].mxu0
  %v898 = vadd.f32 %v819, %v897
  %v899 = vpop.f32.mrb[0].mxu0
  %900 = vdwg.mxu0
  %v901 = vmul.f32 %v898, 0.001953125
  %v902 = vlaneseq
  %v903 = vshrl.u32 %v902, 7
  %v904 = vsub.s32 0, %v903
  %v905 = vrot.slane %v901, %v904
  %v906 = vsub.f32 %v336, %v905
  %v907 = vsub.f32 %v337, %v905
  %v908 = vsub.f32 %v338, %v905
  %v909 = vsub.f32 %v339, %v905
  %v910 = vmul.f32 %v906, %v906
  %v911 = vmul.f32 %v907, %v907
  %v912 = vmul.f32 %v908, %v908
  %v913 = vmul.f32 %v909, %v909
  %v914 = vsel %vm78, %v910, 0.0
  %v915 = vsel %vm78, %v911, 0.0
  %v916 = vadd.f32 %v914, %v915
  %v917 = vsel %vm78, %v912, 0.0
  %v918 = vadd.f32 %v916, %v917
  %v919 = vsel %vm78, %v913, 0.0
  %v920 = vadd.f32 %v918, %v919
  %v921 = vrot.slane %v920, 4
  %v922 = vadd.f32 %v920, %v921
  %v923 = vrot.slane %v922, 2
  %v924 = vadd.f32 %v922, %v923
  %v925 = vrot.slane %v924, 1
  %v926 = vadd.f32 %v924, %v925
  %v928 = vsel %vm78, %v926, 0
  %930 = vmatprep.subr.mxu0 0.0
  %v931 = vand.u32 %v353, 4294901760
  %932 = vmatpush1.msra.mxu0 %v931
  %933 = vmatprep.subr.mxu0 0.0
  %v934 = vand.u32 %v354, 4294901760
  %935 = vmatpush1.msra.mxu0 %v934
  %936 = vmatprep.subr.mxu0 0.0
  %v937 = vand.u32 %v355, 4294901760
  %938 = vmatpush1.msra.mxu0 %v937
  %939 = vmatprep.subr.mxu0 0.0
  %v940 = vand.u32 %v356, 4294901760
  %941 = vmatpush1.msra.mxu0 %v940
  %942 = vmatprep.subr.mxu0 0.0
  %v943 = vand.u32 %v357, 4294901760
  %944 = vmatpush1.msra.mxu0 %v943
  %945 = vmatprep.subr.mxu0 0.0
  %v946 = vand.u32 %v358, 4294901760
  %947 = vmatpush1.msra.mxu0 %v946
  %948 = vmatprep.subr.mxu0 0.0
  %v949 = vand.u32 %v359, 4294901760
  %950 = vmatpush1.msra.mxu0 %v949
  %951 = vmatprep.subr.mxu0 0.0
  %v952 = vand.u32 %v360, 4294901760
  %953 = vmatpush1.msra.mxu0 %v952
  %954 = vmatprep.subr.mxu0 0.0
  %955 = vmatpush1.msra.mxu0 0.0
  %956 = vmatprep.subr.mxu0 0.0
  %957 = vmatpush1.msra.mxu0 0.0
  %958 = vmatprep.subr.mxu0 0.0
  %959 = vmatpush1.msra.mxu0 0.0
  %960 = vmatprep.subr.mxu0 0.0
  %961 = vmatpush1.msra.mxu0 0.0
  %962 = vmatprep.subr.mxu0 0.0
  %963 = vmatpush1.msra.mxu0 0.0
  %964 = vmatprep.subr.mxu0 0.0
  %965 = vmatpush1.msra.mxu0 0.0
  %966 = vmatprep.subr.mxu0 0.0
  %967 = vmatpush1.msra.mxu0 0.0
  %968 = vmatprep.subr.mxu0 0.0
  %969 = vmatpush1.msra.mxu0 0.0
  %970 = vmatprep.subr.mxu0 0.0
  %971 = vmatpush1.msra.mxu0 0.0
  %972 = vmatprep.subr.mxu0 0.0
  %973 = vmatpush1.msra.mxu0 0.0
  %974 = vmatprep.subr.mxu0 0.0
  %975 = vmatpush1.msra.mxu0 0.0
  %976 = vmatprep.subr.mxu0 0.0
  %977 = vmatpush1.msra.mxu0 0.0
  %978 = vmatprep.subr.mxu0 0.0
  %979 = vmatpush1.msra.mxu0 0.0
  %980 = vmatprep.subr.mxu0 0.0
  %981 = vmatpush1.msra.mxu0 0.0
  %982 = vmatprep.subr.mxu0 0.0
  %983 = vmatpush1.msra.mxu0 0.0
  %984 = vmatprep.subr.mxu0 0.0
  %985 = vmatpush1.msra.mxu0 0.0
  %986 = vmatprep.subr.mxu0 0.0
  %987 = vmatpush1.msra.mxu0 0.0
  %988 = vmatprep.subr.mxu0 0.0
  %989 = vmatpush1.msra.mxu0 0.0
  %990 = vmatprep.subr.mxu0 0.0
  %991 = vmatpush1.msra.mxu0 0.0
  %992 = vmatprep.subr.mxu0 0.0
  %993 = vmatpush1.msra.mxu0 0.0
  %994 = vmatprep.subr.mxu0 0.0
  %995 = vmatpush1.msra.mxu0 0.0
  %996 = vmatprep.subr.mxu0 0.0
  %997 = vmatpush1.msra.mxu0 0.0
  %998 = vmatprep.subr.mxu0 0.0
  %999 = vmatpush1.msra.mxu0 0.0
  %1000 = vmatprep.subr.mxu0 0.0
  %1001 = vmatpush1.msra.mxu0 0.0
  %1002 = vmatprep.mubr.f32.mxu0 0.0
  %v1003 = vand.u32 %v928, 4294901760
  %v1004 = vsub.f32 %v928, %v1003
  %v1005 = vand.u32 %v1004, 4294901760
  %v1006 = vsub.f32 %v1004, %v1005
  %v1007 = vand.u32 %v1006, 4294901760
  %1008 = vmatmul.mubr.f32.gmra.mrb[0].mxu0 %v1007
  %v1009 = vpop.f32.mrb[0].mxu0
  %v1010 = vadd.f32 0.0, %v1009
  %v1011 = vpop.f32.mrb[0].mxu0
  %1012 = vdwg.mxu0
  %1013 = vmatprep.subr.mxu0 0.0
  %v1014 = vand.u32 %v353, 4294901760
  %v1015 = vsub.f32 %v353, %v1014
  %v1016 = vand.u32 %v1015, 4294901760
  %v1017 = vsub.f32 %v1015, %v1016
  %v1018 = vand.u32 %v1017, 4294901760
  %1019 = vmatpush1.msra.mxu0 %v1018
  %1020 = vmatprep.subr.mxu0 0.0
  %v1021 = vand.u32 %v354, 4294901760
  %v1022 = vsub.f32 %v354, %v1021
  %v1023 = vand.u32 %v1022, 4294901760
  %v1024 = vsub.f32 %v1022, %v1023
  %v1025 = vand.u32 %v1024, 4294901760
  %1026 = vmatpush1.msra.mxu0 %v1025
  %1027 = vmatprep.subr.mxu0 0.0
  %v1028 = vand.u32 %v355, 4294901760
  %v1029 = vsub.f32 %v355, %v1028
  %v1030 = vand.u32 %v1029, 4294901760
  %v1031 = vsub.f32 %v1029, %v1030
  %v1032 = vand.u32 %v1031, 4294901760
  %1033 = vmatpush1.msra.mxu0 %v1032
  %1034 = vmatprep.subr.mxu0 0.0
  %v1035 = vand.u32 %v356, 4294901760
  %v1036 = vsub.f32 %v356, %v1035
  %v1037 = vand.u32 %v1036, 4294901760
  %v1038 = vsub.f32 %v1036, %v1037
  %v1039 = vand.u32 %v1038, 4294901760
  %1040 = vmatpush1.msra.mxu0 %v1039
  %1041 = vmatprep.subr.mxu0 0.0
  %v1042 = vand.u32 %v357, 4294901760
  %v1043 = vsub.f32 %v357, %v1042
  %v1044 = vand.u32 %v1043, 4294901760
  %v1045 = vsub.f32 %v1043, %v1044
  %v1046 = vand.u32 %v1045, 4294901760
  %1047 = vmatpush1.msra.mxu0 %v1046
  %1048 = vmatprep.subr.mxu0 0.0
  %v1049 = vand.u32 %v358, 4294901760
  %v1050 = vsub.f32 %v358, %v1049
  %v1051 = vand.u32 %v1050, 4294901760
  %v1052 = vsub.f32 %v1050, %v1051
  %v1053 = vand.u32 %v1052, 4294901760
  %1054 = vmatpush1.msra.mxu0 %v1053
  %1055 = vmatprep.subr.mxu0 0.0
  %v1056 = vand.u32 %v359, 4294901760
  %v1057 = vsub.f32 %v359, %v1056
  %v1058 = vand.u32 %v1057, 4294901760
  %v1059 = vsub.f32 %v1057, %v1058
  %v1060 = vand.u32 %v1059, 4294901760
  %1061 = vmatpush1.msra.mxu0 %v1060
  %1062 = vmatprep.subr.mxu0 0.0
  %v1063 = vand.u32 %v360, 4294901760
  %v1064 = vsub.f32 %v360, %v1063
  %v1065 = vand.u32 %v1064, 4294901760
  %v1066 = vsub.f32 %v1064, %v1065
  %v1067 = vand.u32 %v1066, 4294901760
  %1068 = vmatpush1.msra.mxu0 %v1067
  %1069 = vmatprep.subr.mxu0 0.0
  %1070 = vmatpush1.msra.mxu0 0.0
  %1071 = vmatprep.subr.mxu0 0.0
  %1072 = vmatpush1.msra.mxu0 0.0
  %1073 = vmatprep.subr.mxu0 0.0
  %1074 = vmatpush1.msra.mxu0 0.0
  %1075 = vmatprep.subr.mxu0 0.0
  %1076 = vmatpush1.msra.mxu0 0.0
  %1077 = vmatprep.subr.mxu0 0.0
  %1078 = vmatpush1.msra.mxu0 0.0
  %1079 = vmatprep.subr.mxu0 0.0
  %1080 = vmatpush1.msra.mxu0 0.0
  %1081 = vmatprep.subr.mxu0 0.0
  %1082 = vmatpush1.msra.mxu0 0.0
  %1083 = vmatprep.subr.mxu0 0.0
  %1084 = vmatpush1.msra.mxu0 0.0
  %1085 = vmatprep.subr.mxu0 0.0
  %1086 = vmatpush1.msra.mxu0 0.0
  %1087 = vmatprep.subr.mxu0 0.0
  %1088 = vmatpush1.msra.mxu0 0.0
  %1089 = vmatprep.subr.mxu0 0.0
  %1090 = vmatpush1.msra.mxu0 0.0
  %1091 = vmatprep.subr.mxu0 0.0
  %1092 = vmatpush1.msra.mxu0 0.0
  %1093 = vmatprep.subr.mxu0 0.0
  %1094 = vmatpush1.msra.mxu0 0.0
  %1095 = vmatprep.subr.mxu0 0.0
  %1096 = vmatpush1.msra.mxu0 0.0
  %1097 = vmatprep.subr.mxu0 0.0
  %1098 = vmatpush1.msra.mxu0 0.0
  %1099 = vmatprep.subr.mxu0 0.0
  %1100 = vmatpush1.msra.mxu0 0.0
  %1101 = vmatprep.subr.mxu0 0.0
  %1102 = vmatpush1.msra.mxu0 0.0
  %1103 = vmatprep.subr.mxu0 0.0
  %1104 = vmatpush1.msra.mxu0 0.0
  %1105 = vmatprep.subr.mxu0 0.0
  %1106 = vmatpush1.msra.mxu0 0.0
  %1107 = vmatprep.subr.mxu0 0.0
  %1108 = vmatpush1.msra.mxu0 0.0
  %1109 = vmatprep.subr.mxu0 0.0
  %1110 = vmatpush1.msra.mxu0 0.0
  %1111 = vmatprep.subr.mxu0 0.0
  %1112 = vmatpush1.msra.mxu0 0.0
  %1113 = vmatprep.subr.mxu0 0.0
  %1114 = vmatpush1.msra.mxu0 0.0
  %1115 = vmatprep.subr.mxu0 0.0
  %1116 = vmatpush1.msra.mxu0 0.0
  %1117 = vmatprep.mubr.f32.mxu0 0.0
  %v1118 = vand.u32 %v928, 4294901760
  %1119 = vmatmul.mubr.f32.gmra.mrb[0].mxu0 %v1118
  %v1120 = vpop.f32.mrb[0].mxu0
  %v1121 = vadd.f32 %v1010, %v1120
  %v1122 = vpop.f32.mrb[0].mxu0
  %1123 = vdwg.mxu0
  %1124 = vmatprep.subr.mxu0 0.0
  %v1125 = vand.u32 %v353, 4294901760
  %v1126 = vsub.f32 %v353, %v1125
  %1127 = vmatpush1.msra.mxu0 %v1126
  %1128 = vmatprep.subr.mxu0 0.0
  %v1129 = vand.u32 %v354, 4294901760
  %v1130 = vsub.f32 %v354, %v1129
  %1131 = vmatpush1.msra.mxu0 %v1130
  %1132 = vmatprep.subr.mxu0 0.0
  %v1133 = vand.u32 %v355, 4294901760
  %v1134 = vsub.f32 %v355, %v1133
  %1135 = vmatpush1.msra.mxu0 %v1134
  %1136 = vmatprep.subr.mxu0 0.0
  %v1137 = vand.u32 %v356, 4294901760
  %v1138 = vsub.f32 %v356, %v1137
  %1139 = vmatpush1.msra.mxu0 %v1138
  %1140 = vmatprep.subr.mxu0 0.0
  %v1141 = vand.u32 %v357, 4294901760
  %v1142 = vsub.f32 %v357, %v1141
  %1143 = vmatpush1.msra.mxu0 %v1142
  %1144 = vmatprep.subr.mxu0 0.0
  %v1145 = vand.u32 %v358, 4294901760
  %v1146 = vsub.f32 %v358, %v1145
  %1147 = vmatpush1.msra.mxu0 %v1146
  %1148 = vmatprep.subr.mxu0 0.0
  %v1149 = vand.u32 %v359, 4294901760
  %v1150 = vsub.f32 %v359, %v1149
  %1151 = vmatpush1.msra.mxu0 %v1150
  %1152 = vmatprep.subr.mxu0 0.0
  %v1153 = vand.u32 %v360, 4294901760
  %v1154 = vsub.f32 %v360, %v1153
  %1155 = vmatpush1.msra.mxu0 %v1154
  %1156 = vmatprep.subr.mxu0 0.0
  %1157 = vmatpush1.msra.mxu0 0.0
  %1158 = vmatprep.subr.mxu0 0.0
  %1159 = vmatpush1.msra.mxu0 0.0
  %1160 = vmatprep.subr.mxu0 0.0
  %1161 = vmatpush1.msra.mxu0 0.0
  %1162 = vmatprep.subr.mxu0 0.0
  %1163 = vmatpush1.msra.mxu0 0.0
  %1164 = vmatprep.subr.mxu0 0.0
  %1165 = vmatpush1.msra.mxu0 0.0
  %1166 = vmatprep.subr.mxu0 0.0
  %1167 = vmatpush1.msra.mxu0 0.0
  %1168 = vmatprep.subr.mxu0 0.0
  %1169 = vmatpush1.msra.mxu0 0.0
  %1170 = vmatprep.subr.mxu0 0.0
  %1171 = vmatpush1.msra.mxu0 0.0
  %1172 = vmatprep.subr.mxu0 0.0
  %1173 = vmatpush1.msra.mxu0 0.0
  %1174 = vmatprep.subr.mxu0 0.0
  %1175 = vmatpush1.msra.mxu0 0.0
  %1176 = vmatprep.subr.mxu0 0.0
  %1177 = vmatpush1.msra.mxu0 0.0
  %1178 = vmatprep.subr.mxu0 0.0
  %1179 = vmatpush1.msra.mxu0 0.0
  %1180 = vmatprep.subr.mxu0 0.0
  %1181 = vmatpush1.msra.mxu0 0.0
  %1182 = vmatprep.subr.mxu0 0.0
  %1183 = vmatpush1.msra.mxu0 0.0
  %1184 = vmatprep.subr.mxu0 0.0
  %1185 = vmatpush1.msra.mxu0 0.0
  %1186 = vmatprep.subr.mxu0 0.0
  %1187 = vmatpush1.msra.mxu0 0.0
  %1188 = vmatprep.subr.mxu0 0.0
  %1189 = vmatpush1.msra.mxu0 0.0
  %1190 = vmatprep.subr.mxu0 0.0
  %1191 = vmatpush1.msra.mxu0 0.0
  %1192 = vmatprep.subr.mxu0 0.0
  %1193 = vmatpush1.msra.mxu0 0.0
  %1194 = vmatprep.subr.mxu0 0.0
  %1195 = vmatpush1.msra.mxu0 0.0
  %1196 = vmatprep.subr.mxu0 0.0
  %1197 = vmatpush1.msra.mxu0 0.0
  %1198 = vmatprep.subr.mxu0 0.0
  %1199 = vmatpush1.msra.mxu0 0.0
  %1200 = vmatprep.subr.mxu0 0.0
  %1201 = vmatpush1.msra.mxu0 0.0
  %1202 = vmatprep.subr.mxu0 0.0
  %1203 = vmatpush1.msra.mxu0 0.0
  %1204 = vmatprep.mubr.f32.mxu0 0.0
  %v1205 = vand.u32 %v928, 4294901760
  %v1206 = vsub.f32 %v928, %v1205
  %1207 = vmatmul.mubr.f32.gmra.mrb[0].mxu0 %v1206
  %v1208 = vpop.f32.mrb[0].mxu0
  %v1209 = vadd.f32 %v1121, %v1208
  %v1210 = vpop.f32.mrb[0].mxu0
  %1211 = vdwg.mxu0
  %1212 = vmatprep.subr.mxu0 0.0
  %v1213 = vand.u32 %v353, 4294901760
  %1214 = vmatpush1.msra.mxu0 %v1213
  %1215 = vmatprep.subr.mxu0 0.0
  %v1216 = vand.u32 %v354, 4294901760
  %1217 = vmatpush1.msra.mxu0 %v1216
  %1218 = vmatprep.subr.mxu0 0.0
  %v1219 = vand.u32 %v355, 4294901760
  %1220 = vmatpush1.msra.mxu0 %v1219
  %1221 = vmatprep.subr.mxu0 0.0
  %v1222 = vand.u32 %v356, 4294901760
  %1223 = vmatpush1.msra.mxu0 %v1222
  %1224 = vmatprep.subr.mxu0 0.0
  %v1225 = vand.u32 %v357, 4294901760
  %1226 = vmatpush1.msra.mxu0 %v1225
  %1227 = vmatprep.subr.mxu0 0.0
  %v1228 = vand.u32 %v358, 4294901760
  %1229 = vmatpush1.msra.mxu0 %v1228
  %1230 = vmatprep.subr.mxu0 0.0
  %v1231 = vand.u32 %v359, 4294901760
  %1232 = vmatpush1.msra.mxu0 %v1231
  %1233 = vmatprep.subr.mxu0 0.0
  %v1234 = vand.u32 %v360, 4294901760
  %1235 = vmatpush1.msra.mxu0 %v1234
  %1236 = vmatprep.subr.mxu0 0.0
  %1237 = vmatpush1.msra.mxu0 0.0
  %1238 = vmatprep.subr.mxu0 0.0
  %1239 = vmatpush1.msra.mxu0 0.0
  %1240 = vmatprep.subr.mxu0 0.0
  %1241 = vmatpush1.msra.mxu0 0.0
  %1242 = vmatprep.subr.mxu0 0.0
  %1243 = vmatpush1.msra.mxu0 0.0
  %1244 = vmatprep.subr.mxu0 0.0
  %1245 = vmatpush1.msra.mxu0 0.0
  %1246 = vmatprep.subr.mxu0 0.0
  %1247 = vmatpush1.msra.mxu0 0.0
  %1248 = vmatprep.subr.mxu0 0.0
  %1249 = vmatpush1.msra.mxu0 0.0
  %1250 = vmatprep.subr.mxu0 0.0
  %1251 = vmatpush1.msra.mxu0 0.0
  %1252 = vmatprep.subr.mxu0 0.0
  %1253 = vmatpush1.msra.mxu0 0.0
  %1254 = vmatprep.subr.mxu0 0.0
  %1255 = vmatpush1.msra.mxu0 0.0
  %1256 = vmatprep.subr.mxu0 0.0
  %1257 = vmatpush1.msra.mxu0 0.0
  %1258 = vmatprep.subr.mxu0 0.0
  %1259 = vmatpush1.msra.mxu0 0.0
  %1260 = vmatprep.subr.mxu0 0.0
  %1261 = vmatpush1.msra.mxu0 0.0
  %1262 = vmatprep.subr.mxu0 0.0
  %1263 = vmatpush1.msra.mxu0 0.0
  %1264 = vmatprep.subr.mxu0 0.0
  %1265 = vmatpush1.msra.mxu0 0.0
  %1266 = vmatprep.subr.mxu0 0.0
  %1267 = vmatpush1.msra.mxu0 0.0
  %1268 = vmatprep.subr.mxu0 0.0
  %1269 = vmatpush1.msra.mxu0 0.0
  %1270 = vmatprep.subr.mxu0 0.0
  %1271 = vmatpush1.msra.mxu0 0.0
  %1272 = vmatprep.subr.mxu0 0.0
  %1273 = vmatpush1.msra.mxu0 0.0
  %1274 = vmatprep.subr.mxu0 0.0
  %1275 = vmatpush1.msra.mxu0 0.0
  %1276 = vmatprep.subr.mxu0 0.0
  %1277 = vmatpush1.msra.mxu0 0.0
  %1278 = vmatprep.subr.mxu0 0.0
  %1279 = vmatpush1.msra.mxu0 0.0
  %1280 = vmatprep.subr.mxu0 0.0
  %1281 = vmatpush1.msra.mxu0 0.0
  %1282 = vmatprep.subr.mxu0 0.0
  %1283 = vmatpush1.msra.mxu0 0.0
  %1284 = vmatprep.mubr.f32.mxu0 0.0
  %v1285 = vand.u32 %v928, 4294901760
  %v1286 = vsub.f32 %v928, %v1285
  %v1287 = vand.u32 %v1286, 4294901760
  %1288 = vmatmul.mubr.f32.gmra.mrb[0].mxu0 %v1287
  %v1289 = vpop.f32.mrb[0].mxu0
  %v1290 = vadd.f32 %v1209, %v1289
  %v1291 = vpop.f32.mrb[0].mxu0
  %1292 = vdwg.mxu0
  %1293 = vmatprep.subr.mxu0 0.0
  %v1294 = vand.u32 %v353, 4294901760
  %v1295 = vsub.f32 %v353, %v1294
  %v1296 = vand.u32 %v1295, 4294901760
  %1297 = vmatpush1.msra.mxu0 %v1296
  %1298 = vmatprep.subr.mxu0 0.0
  %v1299 = vand.u32 %v354, 4294901760
  %v1300 = vsub.f32 %v354, %v1299
  %v1301 = vand.u32 %v1300, 4294901760
  %1302 = vmatpush1.msra.mxu0 %v1301
  %1303 = vmatprep.subr.mxu0 0.0
  %v1304 = vand.u32 %v355, 4294901760
  %v1305 = vsub.f32 %v355, %v1304
  %v1306 = vand.u32 %v1305, 4294901760
  %1307 = vmatpush1.msra.mxu0 %v1306
  %1308 = vmatprep.subr.mxu0 0.0
  %v1309 = vand.u32 %v356, 4294901760
  %v1310 = vsub.f32 %v356, %v1309
  %v1311 = vand.u32 %v1310, 4294901760
  %1312 = vmatpush1.msra.mxu0 %v1311
  %1313 = vmatprep.subr.mxu0 0.0
  %v1314 = vand.u32 %v357, 4294901760
  %v1315 = vsub.f32 %v357, %v1314
  %v1316 = vand.u32 %v1315, 4294901760
  %1317 = vmatpush1.msra.mxu0 %v1316
  %1318 = vmatprep.subr.mxu0 0.0
  %v1319 = vand.u32 %v358, 4294901760
  %v1320 = vsub.f32 %v358, %v1319
  %v1321 = vand.u32 %v1320, 4294901760
  %1322 = vmatpush1.msra.mxu0 %v1321
  %1323 = vmatprep.subr.mxu0 0.0
  %v1324 = vand.u32 %v359, 4294901760
  %v1325 = vsub.f32 %v359, %v1324
  %v1326 = vand.u32 %v1325, 4294901760
  %1327 = vmatpush1.msra.mxu0 %v1326
  %1328 = vmatprep.subr.mxu0 0.0
  %v1329 = vand.u32 %v360, 4294901760
  %v1330 = vsub.f32 %v360, %v1329
  %v1331 = vand.u32 %v1330, 4294901760
  %1332 = vmatpush1.msra.mxu0 %v1331
  %1333 = vmatprep.subr.mxu0 0.0
  %1334 = vmatpush1.msra.mxu0 0.0
  %1335 = vmatprep.subr.mxu0 0.0
  %1336 = vmatpush1.msra.mxu0 0.0
  %1337 = vmatprep.subr.mxu0 0.0
  %1338 = vmatpush1.msra.mxu0 0.0
  %1339 = vmatprep.subr.mxu0 0.0
  %1340 = vmatpush1.msra.mxu0 0.0
  %1341 = vmatprep.subr.mxu0 0.0
  %1342 = vmatpush1.msra.mxu0 0.0
  %1343 = vmatprep.subr.mxu0 0.0
  %1344 = vmatpush1.msra.mxu0 0.0
  %1345 = vmatprep.subr.mxu0 0.0
  %1346 = vmatpush1.msra.mxu0 0.0
  %1347 = vmatprep.subr.mxu0 0.0
  %1348 = vmatpush1.msra.mxu0 0.0
  %1349 = vmatprep.subr.mxu0 0.0
  %1350 = vmatpush1.msra.mxu0 0.0
  %1351 = vmatprep.subr.mxu0 0.0
  %1352 = vmatpush1.msra.mxu0 0.0
  %1353 = vmatprep.subr.mxu0 0.0
  %1354 = vmatpush1.msra.mxu0 0.0
  %1355 = vmatprep.subr.mxu0 0.0
  %1356 = vmatpush1.msra.mxu0 0.0
  %1357 = vmatprep.subr.mxu0 0.0
  %1358 = vmatpush1.msra.mxu0 0.0
  %1359 = vmatprep.subr.mxu0 0.0
  %1360 = vmatpush1.msra.mxu0 0.0
  %1361 = vmatprep.subr.mxu0 0.0
  %1362 = vmatpush1.msra.mxu0 0.0
  %1363 = vmatprep.subr.mxu0 0.0
  %1364 = vmatpush1.msra.mxu0 0.0
  %1365 = vmatprep.subr.mxu0 0.0
  %1366 = vmatpush1.msra.mxu0 0.0
  %1367 = vmatprep.subr.mxu0 0.0
  %1368 = vmatpush1.msra.mxu0 0.0
  %1369 = vmatprep.subr.mxu0 0.0
  %1370 = vmatpush1.msra.mxu0 0.0
  %1371 = vmatprep.subr.mxu0 0.0
  %1372 = vmatpush1.msra.mxu0 0.0
  %1373 = vmatprep.subr.mxu0 0.0
  %1374 = vmatpush1.msra.mxu0 0.0
  %1375 = vmatprep.subr.mxu0 0.0
  %1376 = vmatpush1.msra.mxu0 0.0
  %1377 = vmatprep.subr.mxu0 0.0
  %1378 = vmatpush1.msra.mxu0 0.0
  %1379 = vmatprep.subr.mxu0 0.0
  %1380 = vmatpush1.msra.mxu0 0.0
  %1381 = vmatprep.mubr.f32.mxu0 0.0
  %v1382 = vand.u32 %v928, 4294901760
  %1383 = vmatmul.mubr.f32.gmra.mrb[0].mxu0 %v1382
  %v1384 = vpop.f32.mrb[0].mxu0
  %v1385 = vadd.f32 %v1290, %v1384
  %v1386 = vpop.f32.mrb[0].mxu0
  %1387 = vdwg.mxu0
  %1388 = vmatprep.subr.mxu0 0.0
  %v1389 = vand.u32 %v353, 4294901760
  %1390 = vmatpush1.msra.mxu0 %v1389
  %1391 = vmatprep.subr.mxu0 0.0
  %v1392 = vand.u32 %v354, 4294901760
  %1393 = vmatpush1.msra.mxu0 %v1392
  %1394 = vmatprep.subr.mxu0 0.0
  %v1395 = vand.u32 %v355, 4294901760
  %1396 = vmatpush1.msra.mxu0 %v1395
  %1397 = vmatprep.subr.mxu0 0.0
  %v1398 = vand.u32 %v356, 4294901760
  %1399 = vmatpush1.msra.mxu0 %v1398
  %1400 = vmatprep.subr.mxu0 0.0
  %v1401 = vand.u32 %v357, 4294901760
  %1402 = vmatpush1.msra.mxu0 %v1401
  %1403 = vmatprep.subr.mxu0 0.0
  %v1404 = vand.u32 %v358, 4294901760
  %1405 = vmatpush1.msra.mxu0 %v1404
  %1406 = vmatprep.subr.mxu0 0.0
  %v1407 = vand.u32 %v359, 4294901760
  %1408 = vmatpush1.msra.mxu0 %v1407
  %1409 = vmatprep.subr.mxu0 0.0
  %v1410 = vand.u32 %v360, 4294901760
  %1411 = vmatpush1.msra.mxu0 %v1410
  %1412 = vmatprep.subr.mxu0 0.0
  %1413 = vmatpush1.msra.mxu0 0.0
  %1414 = vmatprep.subr.mxu0 0.0
  %1415 = vmatpush1.msra.mxu0 0.0
  %1416 = vmatprep.subr.mxu0 0.0
  %1417 = vmatpush1.msra.mxu0 0.0
  %1418 = vmatprep.subr.mxu0 0.0
  %1419 = vmatpush1.msra.mxu0 0.0
  %1420 = vmatprep.subr.mxu0 0.0
  %1421 = vmatpush1.msra.mxu0 0.0
  %1422 = vmatprep.subr.mxu0 0.0
  %1423 = vmatpush1.msra.mxu0 0.0
  %1424 = vmatprep.subr.mxu0 0.0
  %1425 = vmatpush1.msra.mxu0 0.0
  %1426 = vmatprep.subr.mxu0 0.0
  %1427 = vmatpush1.msra.mxu0 0.0
  %1428 = vmatprep.subr.mxu0 0.0
  %1429 = vmatpush1.msra.mxu0 0.0
  %1430 = vmatprep.subr.mxu0 0.0
  %1431 = vmatpush1.msra.mxu0 0.0
  %1432 = vmatprep.subr.mxu0 0.0
  %1433 = vmatpush1.msra.mxu0 0.0
  %1434 = vmatprep.subr.mxu0 0.0
  %1435 = vmatpush1.msra.mxu0 0.0
  %1436 = vmatprep.subr.mxu0 0.0
  %1437 = vmatpush1.msra.mxu0 0.0
  %1438 = vmatprep.subr.mxu0 0.0
  %1439 = vmatpush1.msra.mxu0 0.0
  %1440 = vmatprep.subr.mxu0 0.0
  %1441 = vmatpush1.msra.mxu0 0.0
  %1442 = vmatprep.subr.mxu0 0.0
  %1443 = vmatpush1.msra.mxu0 0.0
  %1444 = vmatprep.subr.mxu0 0.0
  %1445 = vmatpush1.msra.mxu0 0.0
  %1446 = vmatprep.subr.mxu0 0.0
  %1447 = vmatpush1.msra.mxu0 0.0
  %1448 = vmatprep.subr.mxu0 0.0
  %1449 = vmatpush1.msra.mxu0 0.0
  %1450 = vmatprep.subr.mxu0 0.0
  %1451 = vmatpush1.msra.mxu0 0.0
  %1452 = vmatprep.subr.mxu0 0.0
  %1453 = vmatpush1.msra.mxu0 0.0
  %1454 = vmatprep.subr.mxu0 0.0
  %1455 = vmatpush1.msra.mxu0 0.0
  %1456 = vmatprep.subr.mxu0 0.0
  %1457 = vmatpush1.msra.mxu0 0.0
  %1458 = vmatprep.subr.mxu0 0.0
  %1459 = vmatpush1.msra.mxu0 0.0
  %1460 = vmatprep.mubr.f32.mxu0 0.0
  %v1461 = vand.u32 %v928, 4294901760
  %1462 = vmatmul.mubr.f32.gmra.mrb[0].mxu0 %v1461
  %v1463 = vpop.f32.mrb[0].mxu0
  %v1464 = vadd.f32 %v1385, %v1463
  %v1465 = vpop.f32.mrb[0].mxu0
  %1466 = vdwg.mxu0
  %v1467 = vmul.f32 %v1464, 0.001953125
  %v1468 = vadd.f32 %v1467, 1e-05
  %v1469 = vrsqrt.pop %v1468
  %v1470 = vlaneseq
  %v1471 = vshrl.u32 %v1470, 7
  %v1472 = vsub.s32 0, %v1471
  %v1473 = vrot.slane %v1469, %v1472
  %v1474 = vmul.f32 %v906, %v1473
  %v1475 = vmul.f32 %v907, %v1473
  %v1476 = vmul.f32 %v908, %v1473
  %v1477 = vmul.f32 %v909, %v1473
  %v1479 = vlaneseq
  %v1480 = vshrl.u32 %v1479, 7
  %v1481 = vsub.s32 0, %v1480
  %v1482 = vrot.slane %v334, %v1481
  %v1484 = vmul.f32 %v1474, %v1482
  %v1485 = vmul.f32 %v1475, %v1482
  %v1486 = vmul.f32 %v1476, %v1482
  %v1487 = vmul.f32 %v1477, %v1482
  %v1489 = vlaneseq
  %v1490 = vshrl.u32 %v1489, 7
  %v1491 = vsub.s32 0, %v1490
  %v1492 = vrot.slane %v335, %v1491
  %v1494 = vadd.f32 %v1484, %v1492
  %v1495 = vadd.f32 %v1485, %v1492
  %v1496 = vadd.f32 %v1486, %v1492
  %v1497 = vadd.f32 %v1487, %v1492
  %vm1498 = vcmask 516096
  %1499 = vst.msk [vmem:[#allocation2] sm:$0x1] %vm1498, 0.0
  %1500 = vst.msk [vmem:[#allocation2 + $0x18] sm:$0x1] %vm1498, 0.0
  %1501 = vst.msk [vmem:[#allocation2 + $0x11] sm:$0x1] %vm1498, 0.0
  %1502 = vst.msk [vmem:[#allocation2 + $0x29] sm:$0x1] %vm1498, 0.0
  %1503 = vst.msk [vmem:[#allocation2 + $0x1] sm:$0xff] %vm78, %v1494
  %1504 = vst.msk [vmem:[#allocation2 + $0x9] sm:$0xff] %vm78, %v1495
  %1505 = vst.msk [vmem:[#allocation2 + $0x19] sm:$0xff] %vm78, %v1496
  %1506 = vst.msk [vmem:[#allocation2 + $0x21] sm:$0xff] %vm78, %v1497
  %v1507 = vld [vmem:[%s4] sm:$0xff]
  %v1508 = vld [vmem:[%s4 + $0x8] sm:$0xff]
  %v1509 = vld [vmem:[%s4 + $0x10] sm:$0xff]
  %v1510 = vld [vmem:[%s4 + $0x18] sm:$0xff]
  %v1511 = vld [vmem:[#allocation2] sm:$0xff]
  %v1512 = vld [vmem:[#allocation2 + $0x8] sm:$0xff]
  %v1513 = vld [vmem:[#allocation2 + $0x18] sm:$0xff]
  %v1514 = vld [vmem:[#allocation2 + $0x20] sm:$0xff]
  %v1515 = vpack.c.bf16 %v1512, %v1511
  %v1516 = vpack.c.bf16 %v1514, %v1513
  %v1517 = vld [vmem:[%s2] sm:$0xf]
  %v1518 = vld [vmem:[%s2 + $0x4] sm:$0xf]
  %v1519 = vld [vmem:[%s2 + $0x8] sm:$0xf]
  %v1520 = vld [vmem:[%s2 + $0xc] sm:$0xf]
  %v1521 = vld [vmem:[%s2 + $0x10] sm:$0xf]
  %v1522 = vld [vmem:[%s2 + $0x14] sm:$0xf]
  %v1523 = vld [vmem:[%s2 + $0x18] sm:$0xf]
  %v1524 = vld [vmem:[%s2 + $0x1c] sm:$0xf]
  %v1533 = vunpack.c.l.b16 %v1517
  %v1534 = vunpack.c.l.b16 %v1518
  %v1535 = vunpack.c.l.b16 %v1519
  %v1536 = vunpack.c.l.b16 %v1520
  %v1537 = vunpack.c.l.b16 %v1521
  %v1538 = vunpack.c.l.b16 %v1522
  %v1539 = vunpack.c.l.b16 %v1523
  %v1540 = vunpack.c.l.b16 %v1524
  %v1541 = vpack.c.b16 %v1534, %v1533
  %v1542 = vpack.c.b16 %v1536, %v1535
  %v1543 = vpack.c.b16 %v1538, %v1537
  %v1544 = vpack.c.b16 %v1540, %v1539
  %v1550 = vsel %vm78, %v1515, 0
  %v1553 = vsel %vm78, %v1516, 0
  %1555 = vmatprep.subr.bf16.mxu0 0
  %1556 = vmatpush1.bf16.msra.mxu0 %v1541
  %1557 = vmatprep.subr.bf16.mxu0 0
  %1558 = vmatpush1.bf16.msra.mxu0 %v1542
  %1559 = vmatprep.subr.bf16.mxu0 0
  %1560 = vmatpush1.bf16.msra.mxu0 %v1543
  %1561 = vmatprep.subr.bf16.mxu0 0
  %1562 = vmatpush1.bf16.msra.mxu0 %v1544
  %1563 = vmatprep.subr.bf16.mxu0 0
  %1564 = vmatpush1.bf16.msra.mxu0 0
  %1565 = vmatprep.subr.bf16.mxu0 0
  %1566 = vmatpush1.bf16.msra.mxu0 0
  %1567 = vmatprep.subr.bf16.mxu0 0
  %1568 = vmatpush1.bf16.msra.mxu0 0
  %1569 = vmatprep.subr.bf16.mxu0 0
  %1570 = vmatpush1.bf16.msra.mxu0 0
  %1571 = vmatprep.subr.bf16.mxu0 0
  %1572 = vmatpush1.bf16.msra.mxu0 0
  %1573 = vmatprep.subr.bf16.mxu0 0
  %1574 = vmatpush1.bf16.msra.mxu0 0
  %1575 = vmatprep.subr.bf16.mxu0 0
  %1576 = vmatpush1.bf16.msra.mxu0 0
  %1577 = vmatprep.subr.bf16.mxu0 0
  %1578 = vmatpush1.bf16.msra.mxu0 0
  %1579 = vmatprep.subr.bf16.mxu0 0
  %1580 = vmatpush1.bf16.msra.mxu0 0
  %1581 = vmatprep.subr.bf16.mxu0 0
  %1582 = vmatpush1.bf16.msra.mxu0 0
  %1583 = vmatprep.subr.bf16.mxu0 0
  %1584 = vmatpush1.bf16.msra.mxu0 0
  %1585 = vmatprep.subr.bf16.mxu0 0
  %1586 = vmatpush1.bf16.msra.mxu0 0
  %1587 = vmatprep.mubr.bf16.mxu0 0
  %1588 = vmatmul.mubr.bf16.gmra.mrb[0].mxu0 %v1550
  %v1589 = vpop.f32.mrb[0].mxu0
  %v1590 = vadd.f32 0.0, %v1589
  %v1591 = vpop.f32.mrb[0].mxu0
  %v1592 = vpop.f32.mrb[0].mxu0
  %v1593 = vadd.f32 0.0, %v1592
  %v1594 = vpop.f32.mrb[0].mxu0
  %1595 = vmatprep.mubr.bf16.mxu0 0
  %1596 = vmatmul.mubr.bf16.gmra.mrb[0].mxu0 %v1553
  %v1597 = vpop.f32.mrb[0].mxu0
  %v1598 = vadd.f32 0.0, %v1597
  %v1599 = vpop.f32.mrb[0].mxu0
  %v1600 = vpop.f32.mrb[0].mxu0
  %v1601 = vadd.f32 0.0, %v1600
  %v1602 = vpop.f32.mrb[0].mxu0
  %1603 = vdwg.mxu0
  %v1604 = vadd.f32 %v1507, %v1590
  %v1605 = vadd.f32 %v1508, %v1593
  %v1606 = vadd.f32 %v1509, %v1598
  %v1607 = vadd.f32 %v1510, %v1601
  %v1608 = vld [vmem:[#allocation2 + $0x1] sm:$0xff]
  %v1609 = vld [vmem:[#allocation2 + $0x9] sm:$0xff]
  %v1610 = vld [vmem:[#allocation2 + $0x19] sm:$0xff]
  %v1611 = vld [vmem:[#allocation2 + $0x21] sm:$0xff]
  %v1612 = vpack.c.bf16 %v1609, %v1608
  %v1613 = vpack.c.bf16 %v1611, %v1610
  %s1614 = scalar_lea.vmem %s2, 32
  %v1615 = vld [vmem:[%s1614] sm:$0xf]
  %v1616 = vld [vmem:[%s1614 + $0x4] sm:$0xf]
  %v1617 = vld [vmem:[%s1614 + $0x8] sm:$0xf]
  %v1618 = vld [vmem:[%s1614 + $0xc] sm:$0xf]
  %v1619 = vld [vmem:[%s1614 + $0x10] sm:$0xf]
  %v1620 = vld [vmem:[%s1614 + $0x14] sm:$0xf]
  %v1621 = vld [vmem:[%s1614 + $0x18] sm:$0xf]
  %v1622 = vld [vmem:[%s1614 + $0x1c] sm:$0xf]
  %v1631 = vunpack.c.l.b16 %v1615
  %v1632 = vunpack.c.l.b16 %v1616
  %v1633 = vunpack.c.l.b16 %v1617
  %v1634 = vunpack.c.l.b16 %v1618
  %v1635 = vunpack.c.l.b16 %v1619
  %v1636 = vunpack.c.l.b16 %v1620
  %v1637 = vunpack.c.l.b16 %v1621
  %v1638 = vunpack.c.l.b16 %v1622
  %v1639 = vpack.c.b16 %v1632, %v1631
  %v1640 = vpack.c.b16 %v1634, %v1633
  %v1641 = vpack.c.b16 %v1636, %v1635
  %v1642 = vpack.c.b16 %v1638, %v1637
  %v1648 = vsel %vm78, %v1612, 0
  %v1651 = vsel %vm78, %v1613, 0
  %1653 = vmatprep.subr.bf16.mxu0 0
  %1654 = vmatpush1.bf16.msra.mxu0 %v1639
  %1655 = vmatprep.subr.bf16.mxu0 0
  %1656 = vmatpush1.bf16.msra.mxu0 %v1640
  %1657 = vmatprep.subr.bf16.mxu0 0
  %1658 = vmatpush1.bf16.msra.mxu0 %v1641
  %1659 = vmatprep.subr.bf16.mxu0 0
  %1660 = vmatpush1.bf16.msra.mxu0 %v1642
  %1661 = vmatprep.subr.bf16.mxu0 0
  %1662 = vmatpush1.bf16.msra.mxu0 0
  %1663 = vmatprep.subr.bf16.mxu0 0
  %1664 = vmatpush1.bf16.msra.mxu0 0
  %1665 = vmatprep.subr.bf16.mxu0 0
  %1666 = vmatpush1.bf16.msra.mxu0 0
  %1667 = vmatprep.subr.bf16.mxu0 0
  %1668 = vmatpush1.bf16.msra.mxu0 0
  %1669 = vmatprep.subr.bf16.mxu0 0
  %1670 = vmatpush1.bf16.msra.mxu0 0
  %1671 = vmatprep.subr.bf16.mxu0 0
  %1672 = vmatpush1.bf16.msra.mxu0 0
  %1673 = vmatprep.subr.bf16.mxu0 0
  %1674 = vmatpush1.bf16.msra.mxu0 0
  %1675 = vmatprep.subr.bf16.mxu0 0
  %1676 = vmatpush1.bf16.msra.mxu0 0
  %1677 = vmatprep.subr.bf16.mxu0 0
  %1678 = vmatpush1.bf16.msra.mxu0 0
  %1679 = vmatprep.subr.bf16.mxu0 0
  %1680 = vmatpush1.bf16.msra.mxu0 0
  %1681 = vmatprep.subr.bf16.mxu0 0
  %1682 = vmatpush1.bf16.msra.mxu0 0
  %1683 = vmatprep.subr.bf16.mxu0 0
  %1684 = vmatpush1.bf16.msra.mxu0 0
  %1685 = vmatprep.mubr.bf16.mxu0 0
  %1686 = vmatmul.mubr.bf16.gmra.mrb[0].mxu0 %v1648
  %v1687 = vpop.f32.mrb[0].mxu0
  %v1688 = vadd.f32 0.0, %v1687
  %v1689 = vpop.f32.mrb[0].mxu0
  %v1690 = vpop.f32.mrb[0].mxu0
  %v1691 = vadd.f32 0.0, %v1690
  %v1692 = vpop.f32.mrb[0].mxu0
  %1693 = vmatprep.mubr.bf16.mxu0 0
  %1694 = vmatmul.mubr.bf16.gmra.mrb[0].mxu0 %v1651
  %v1695 = vpop.f32.mrb[0].mxu0
  %v1696 = vadd.f32 0.0, %v1695
  %v1697 = vpop.f32.mrb[0].mxu0
  %v1698 = vpop.f32.mrb[0].mxu0
  %v1699 = vadd.f32 0.0, %v1698
  %v1700 = vpop.f32.mrb[0].mxu0
  %1701 = vdwg.mxu0
  %v1702 = vadd.f32 %v1604, %v1688
  %v1703 = vadd.f32 %v1605, %v1691
  %v1704 = vadd.f32 %v1606, %v1696
  %v1705 = vadd.f32 %v1607, %v1699
  %v1706 = vld [vmem:[#allocation2 + $0x2] sm:$0xff]
  %v1707 = vld [vmem:[#allocation2 + $0xa] sm:$0xff]
  %v1708 = vld [vmem:[#allocation2 + $0x1a] sm:$0xff]
  %v1709 = vld [vmem:[#allocation2 + $0x22] sm:$0xff]
  %v1710 = vpack.c.bf16 %v1707, %v1706
  %v1711 = vpack.c.bf16 %v1709, %v1708
  %s1712 = scalar_lea.vmem %s2, 64
  %v1713 = vld [vmem:[%s1712] sm:$0xf]
  %v1714 = vld [vmem:[%s1712 + $0x4] sm:$0xf]
  %v1715 = vld [vmem:[%s1712 + $0x8] sm:$0xf]
  %v1716 = vld [vmem:[%s1712 + $0xc] sm:$0xf]
  %v1717 = vld [vmem:[%s1712 + $0x10] sm:$0xf]
  %v1718 = vld [vmem:[%s1712 + $0x14] sm:$0xf]
  %v1719 = vld [vmem:[%s1712 + $0x18] sm:$0xf]
  %v1720 = vld [vmem:[%s1712 + $0x1c] sm:$0xf]
  %v1729 = vunpack.c.l.b16 %v1713
  %v1730 = vunpack.c.l.b16 %v1714
  %v1731 = vunpack.c.l.b16 %v1715
  %v1732 = vunpack.c.l.b16 %v1716
  %v1733 = vunpack.c.l.b16 %v1717
  %v1734 = vunpack.c.l.b16 %v1718
  %v1735 = vunpack.c.l.b16 %v1719
  %v1736 = vunpack.c.l.b16 %v1720
  %v1737 = vpack.c.b16 %v1730, %v1729
  %v1738 = vpack.c.b16 %v1732, %v1731
  %v1739 = vpack.c.b16 %v1734, %v1733
  %v1740 = vpack.c.b16 %v1736, %v1735
  %v1746 = vsel %vm78, %v1710, 0
  %v1749 = vsel %vm78, %v1711, 0
  %1751 = vmatprep.subr.bf16.mxu0 0
  %1752 = vmatpush1.bf16.msra.mxu0 %v1737
  %1753 = vmatprep.subr.bf16.mxu0 0
  %1754 = vmatpush1.bf16.msra.mxu0 %v1738
  %1755 = vmatprep.subr.bf16.mxu0 0
  %1756 = vmatpush1.bf16.msra.mxu0 %v1739
  %1757 = vmatprep.subr.bf16.mxu0 0
  %1758 = vmatpush1.bf16.msra.mxu0 %v1740
  %1759 = vmatprep.subr.bf16.mxu0 0
  %1760 = vmatpush1.bf16.msra.mxu0 0
  %1761 = vmatprep.subr.bf16.mxu0 0
  %1762 = vmatpush1.bf16.msra.mxu0 0
  %1763 = vmatprep.subr.bf16.mxu0 0
  %1764 = vmatpush1.bf16.msra.mxu0 0
  %1765 = vmatprep.subr.bf16.mxu0 0
  %1766 = vmatpush1.bf16.msra.mxu0 0
  %1767 = vmatprep.subr.bf16.mxu0 0
  %1768 = vmatpush1.bf16.msra.mxu0 0
  %1769 = vmatprep.subr.bf16.mxu0 0
  %1770 = vmatpush1.bf16.msra.mxu0 0
  %1771 = vmatprep.subr.bf16.mxu0 0
  %1772 = vmatpush1.bf16.msra.mxu0 0
  %1773 = vmatprep.subr.bf16.mxu0 0
  %1774 = vmatpush1.bf16.msra.mxu0 0
  %1775 = vmatprep.subr.bf16.mxu0 0
  %1776 = vmatpush1.bf16.msra.mxu0 0
  %1777 = vmatprep.subr.bf16.mxu0 0
  %1778 = vmatpush1.bf16.msra.mxu0 0
  %1779 = vmatprep.subr.bf16.mxu0 0
  %1780 = vmatpush1.bf16.msra.mxu0 0
  %1781 = vmatprep.subr.bf16.mxu0 0
  %1782 = vmatpush1.bf16.msra.mxu0 0
  %1783 = vmatprep.mubr.bf16.mxu0 0
  %1784 = vmatmul.mubr.bf16.gmra.mrb[0].mxu0 %v1746
  %v1785 = vpop.f32.mrb[0].mxu0
  %v1786 = vadd.f32 0.0, %v1785
  %v1787 = vpop.f32.mrb[0].mxu0
  %v1788 = vpop.f32.mrb[0].mxu0
  %v1789 = vadd.f32 0.0, %v1788
  %v1790 = vpop.f32.mrb[0].mxu0
  %1791 = vmatprep.mubr.bf16.mxu0 0
  %1792 = vmatmul.mubr.bf16.gmra.mrb[0].mxu0 %v1749
  %v1793 = vpop.f32.mrb[0].mxu0
  %v1794 = vadd.f32 0.0, %v1793
  %v1795 = vpop.f32.mrb[0].mxu0
  %v1796 = vpop.f32.mrb[0].mxu0
  %v1797 = vadd.f32 0.0, %v1796
  %v1798 = vpop.f32.mrb[0].mxu0
  %1799 = vdwg.mxu0
  %v1800 = vadd.f32 %v1702, %v1786
  %v1801 = vadd.f32 %v1703, %v1789
  %v1802 = vadd.f32 %v1704, %v1794
  %v1803 = vadd.f32 %v1705, %v1797
  %v1804 = vld [vmem:[%s8] sm:$0x1]
  %v1805 = vld [vmem:[%s9] sm:$0x1]
  %v1806 = vmax.f32 %v1800, 0.0
  %v1807 = vmax.f32 %v1801, 0.0
  %v1808 = vmax.f32 %v1802, 0.0
  %v1809 = vmax.f32 %v1803, 0.0
  %v1810 = vsel %vm78, %v1806, 0.0
  %v1811 = vsel %vm78, %v1807, 0.0
  %v1812 = vadd.f32 %v1810, %v1811
  %v1813 = vsel %vm78, %v1808, 0.0
  %v1814 = vadd.f32 %v1812, %v1813
  %v1815 = vsel %vm78, %v1809, 0.0
  %v1816 = vadd.f32 %v1814, %v1815
  %v1817 = vrot.slane %v1816, 4
  %v1818 = vadd.f32 %v1816, %v1817
  %v1819 = vrot.slane %v1818, 2
  %v1820 = vadd.f32 %v1818, %v1819
  %v1821 = vrot.slane %v1820, 1
  %v1822 = vadd.f32 %v1820, %v1821
  %v1823 = vld [vmem:[%s5] sm:$0xff]
  %v1824 = vld [vmem:[%s5 + $0x8] sm:$0xff]
  %v1825 = vld [vmem:[%s5 + $0x10] sm:$0xff]
  %v1826 = vld [vmem:[%s5 + $0x18] sm:$0xff]
  %v1827 = vld [vmem:[%s5 + $0x20] sm:$0xff]
  %v1828 = vld [vmem:[%s5 + $0x28] sm:$0xff]
  %v1829 = vld [vmem:[%s5 + $0x30] sm:$0xff]
  %v1830 = vld [vmem:[%s5 + $0x38] sm:$0xff]
  %v1832 = vsel %vm78, %v1822, 0
  %1834 = vmatprep.subr.mxu0 0.0
  %v1835 = vand.u32 %v1823, 4294901760
  %1836 = vmatpush1.msra.mxu0 %v1835
  %1837 = vmatprep.subr.mxu0 0.0
  %v1838 = vand.u32 %v1824, 4294901760
  %1839 = vmatpush1.msra.mxu0 %v1838
  %1840 = vmatprep.subr.mxu0 0.0
  %v1841 = vand.u32 %v1825, 4294901760
  %1842 = vmatpush1.msra.mxu0 %v1841
  %1843 = vmatprep.subr.mxu0 0.0
  %v1844 = vand.u32 %v1826, 4294901760
  %1845 = vmatpush1.msra.mxu0 %v1844
  %1846 = vmatprep.subr.mxu0 0.0
  %v1847 = vand.u32 %v1827, 4294901760
  %1848 = vmatpush1.msra.mxu0 %v1847
  %1849 = vmatprep.subr.mxu0 0.0
  %v1850 = vand.u32 %v1828, 4294901760
  %1851 = vmatpush1.msra.mxu0 %v1850
  %1852 = vmatprep.subr.mxu0 0.0
  %v1853 = vand.u32 %v1829, 4294901760
  %1854 = vmatpush1.msra.mxu0 %v1853
  %1855 = vmatprep.subr.mxu0 0.0
  %v1856 = vand.u32 %v1830, 4294901760
  %1857 = vmatpush1.msra.mxu0 %v1856
  %1858 = vmatprep.subr.mxu0 0.0
  %1859 = vmatpush1.msra.mxu0 0.0
  %1860 = vmatprep.subr.mxu0 0.0
  %1861 = vmatpush1.msra.mxu0 0.0
  %1862 = vmatprep.subr.mxu0 0.0
  %1863 = vmatpush1.msra.mxu0 0.0
  %1864 = vmatprep.subr.mxu0 0.0
  %1865 = vmatpush1.msra.mxu0 0.0
  %1866 = vmatprep.subr.mxu0 0.0
  %1867 = vmatpush1.msra.mxu0 0.0
  %1868 = vmatprep.subr.mxu0 0.0
  %1869 = vmatpush1.msra.mxu0 0.0
  %1870 = vmatprep.subr.mxu0 0.0
  %1871 = vmatpush1.msra.mxu0 0.0
  %1872 = vmatprep.subr.mxu0 0.0
  %1873 = vmatpush1.msra.mxu0 0.0
  %1874 = vmatprep.subr.mxu0 0.0
  %1875 = vmatpush1.msra.mxu0 0.0
  %1876 = vmatprep.subr.mxu0 0.0
  %1877 = vmatpush1.msra.mxu0 0.0
  %1878 = vmatprep.subr.mxu0 0.0
  %1879 = vmatpush1.msra.mxu0 0.0
  %1880 = vmatprep.subr.mxu0 0.0
  %1881 = vmatpush1.msra.mxu0 0.0
  %1882 = vmatprep.subr.mxu0 0.0
  %1883 = vmatpush1.msra.mxu0 0.0
  %1884 = vmatprep.subr.mxu0 0.0
  %1885 = vmatpush1.msra.mxu0 0.0
  %1886 = vmatprep.subr.mxu0 0.0
  %1887 = vmatpush1.msra.mxu0 0.0
  %1888 = vmatprep.subr.mxu0 0.0
  %1889 = vmatpush1.msra.mxu0 0.0
  %1890 = vmatprep.subr.mxu0 0.0
  %1891 = vmatpush1.msra.mxu0 0.0
  %1892 = vmatprep.subr.mxu0 0.0
  %1893 = vmatpush1.msra.mxu0 0.0
  %1894 = vmatprep.subr.mxu0 0.0
  %1895 = vmatpush1.msra.mxu0 0.0
  %1896 = vmatprep.subr.mxu0 0.0
  %1897 = vmatpush1.msra.mxu0 0.0
  %1898 = vmatprep.subr.mxu0 0.0
  %1899 = vmatpush1.msra.mxu0 0.0
  %1900 = vmatprep.subr.mxu0 0.0
  %1901 = vmatpush1.msra.mxu0 0.0
  %1902 = vmatprep.subr.mxu0 0.0
  %1903 = vmatpush1.msra.mxu0 0.0
  %1904 = vmatprep.subr.mxu0 0.0
  %1905 = vmatpush1.msra.mxu0 0.0
  %1906 = vmatprep.mubr.f32.mxu0 0.0
  %v1907 = vand.u32 %v1832, 4294901760
  %v1908 = vsub.f32 %v1832, %v1907
  %v1909 = vand.u32 %v1908, 4294901760
  %v1910 = vsub.f32 %v1908, %v1909
  %v1911 = vand.u32 %v1910, 4294901760
  %1912 = vmatmul.mubr.f32.gmra.mrb[0].mxu0 %v1911
  %v1913 = vpop.f32.mrb[0].mxu0
  %v1914 = vadd.f32 0.0, %v1913
  %v1915 = vpop.f32.mrb[0].mxu0
  %1916 = vdwg.mxu0
  %1917 = vmatprep.subr.mxu0 0.0
  %v1918 = vand.u32 %v1823, 4294901760
  %v1919 = vsub.f32 %v1823, %v1918
  %v1920 = vand.u32 %v1919, 4294901760
  %v1921 = vsub.f32 %v1919, %v1920
  %v1922 = vand.u32 %v1921, 4294901760
  %1923 = vmatpush1.msra.mxu0 %v1922
  %1924 = vmatprep.subr.mxu0 0.0
  %v1925 = vand.u32 %v1824, 4294901760
  %v1926 = vsub.f32 %v1824, %v1925
  %v1927 = vand.u32 %v1926, 4294901760
  %v1928 = vsub.f32 %v1926, %v1927
  %v1929 = vand.u32 %v1928, 4294901760
  %1930 = vmatpush1.msra.mxu0 %v1929
  %1931 = vmatprep.subr.mxu0 0.0
  %v1932 = vand.u32 %v1825, 4294901760
  %v1933 = vsub.f32 %v1825, %v1932
  %v1934 = vand.u32 %v1933, 4294901760
  %v1935 = vsub.f32 %v1933, %v1934
  %v1936 = vand.u32 %v1935, 4294901760
  %1937 = vmatpush1.msra.mxu0 %v1936
  %1938 = vmatprep.subr.mxu0 0.0
  %v1939 = vand.u32 %v1826, 4294901760
  %v1940 = vsub.f32 %v1826, %v1939
  %v1941 = vand.u32 %v1940, 4294901760
  %v1942 = vsub.f32 %v1940, %v1941
  %v1943 = vand.u32 %v1942, 4294901760
  %1944 = vmatpush1.msra.mxu0 %v1943
  %1945 = vmatprep.subr.mxu0 0.0
  %v1946 = vand.u32 %v1827, 4294901760
  %v1947 = vsub.f32 %v1827, %v1946
  %v1948 = vand.u32 %v1947, 4294901760
  %v1949 = vsub.f32 %v1947, %v1948
  %v1950 = vand.u32 %v1949, 4294901760
  %1951 = vmatpush1.msra.mxu0 %v1950
  %1952 = vmatprep.subr.mxu0 0.0
  %v1953 = vand.u32 %v1828, 4294901760
  %v1954 = vsub.f32 %v1828, %v1953
  %v1955 = vand.u32 %v1954, 4294901760
  %v1956 = vsub.f32 %v1954, %v1955
  %v1957 = vand.u32 %v1956, 4294901760
  %1958 = vmatpush1.msra.mxu0 %v1957
  %1959 = vmatprep.subr.mxu0 0.0
  %v1960 = vand.u32 %v1829, 4294901760
  %v1961 = vsub.f32 %v1829, %v1960
  %v1962 = vand.u32 %v1961, 4294901760
  %v1963 = vsub.f32 %v1961, %v1962
  %v1964 = vand.u32 %v1963, 4294901760
  %1965 = vmatpush1.msra.mxu0 %v1964
  %1966 = vmatprep.subr.mxu0 0.0
  %v1967 = vand.u32 %v1830, 4294901760
  %v1968 = vsub.f32 %v1830, %v1967
  %v1969 = vand.u32 %v1968, 4294901760
  %v1970 = vsub.f32 %v1968, %v1969
  %v1971 = vand.u32 %v1970, 4294901760
  %1972 = vmatpush1.msra.mxu0 %v1971
  %1973 = vmatprep.subr.mxu0 0.0
  %1974 = vmatpush1.msra.mxu0 0.0
  %1975 = vmatprep.subr.mxu0 0.0
  %1976 = vmatpush1.msra.mxu0 0.0
  %1977 = vmatprep.subr.mxu0 0.0
  %1978 = vmatpush1.msra.mxu0 0.0
  %1979 = vmatprep.subr.mxu0 0.0
  %1980 = vmatpush1.msra.mxu0 0.0
  %1981 = vmatprep.subr.mxu0 0.0
  %1982 = vmatpush1.msra.mxu0 0.0
  %1983 = vmatprep.subr.mxu0 0.0
  %1984 = vmatpush1.msra.mxu0 0.0
  %1985 = vmatprep.subr.mxu0 0.0
  %1986 = vmatpush1.msra.mxu0 0.0
  %1987 = vmatprep.subr.mxu0 0.0
  %1988 = vmatpush1.msra.mxu0 0.0
  %1989 = vmatprep.subr.mxu0 0.0
  %1990 = vmatpush1.msra.mxu0 0.0
  %1991 = vmatprep.subr.mxu0 0.0
  %1992 = vmatpush1.msra.mxu0 0.0
  %1993 = vmatprep.subr.mxu0 0.0
  %1994 = vmatpush1.msra.mxu0 0.0
  %1995 = vmatprep.subr.mxu0 0.0
  %1996 = vmatpush1.msra.mxu0 0.0
  %1997 = vmatprep.subr.mxu0 0.0
  %1998 = vmatpush1.msra.mxu0 0.0
  %1999 = vmatprep.subr.mxu0 0.0
  %2000 = vmatpush1.msra.mxu0 0.0
  %2001 = vmatprep.subr.mxu0 0.0
  %2002 = vmatpush1.msra.mxu0 0.0
  %2003 = vmatprep.subr.mxu0 0.0
  %2004 = vmatpush1.msra.mxu0 0.0
  %2005 = vmatprep.subr.mxu0 0.0
  %2006 = vmatpush1.msra.mxu0 0.0
  %2007 = vmatprep.subr.mxu0 0.0
  %2008 = vmatpush1.msra.mxu0 0.0
  %2009 = vmatprep.subr.mxu0 0.0
  %2010 = vmatpush1.msra.mxu0 0.0
  %2011 = vmatprep.subr.mxu0 0.0
  %2012 = vmatpush1.msra.mxu0 0.0
  %2013 = vmatprep.subr.mxu0 0.0
  %2014 = vmatpush1.msra.mxu0 0.0
  %2015 = vmatprep.subr.mxu0 0.0
  %2016 = vmatpush1.msra.mxu0 0.0
  %2017 = vmatprep.subr.mxu0 0.0
  %2018 = vmatpush1.msra.mxu0 0.0
  %2019 = vmatprep.subr.mxu0 0.0
  %2020 = vmatpush1.msra.mxu0 0.0
  %2021 = vmatprep.mubr.f32.mxu0 0.0
  %v2022 = vand.u32 %v1832, 4294901760
  %2023 = vmatmul.mubr.f32.gmra.mrb[0].mxu0 %v2022
  %v2024 = vpop.f32.mrb[0].mxu0
  %v2025 = vadd.f32 %v1914, %v2024
  %v2026 = vpop.f32.mrb[0].mxu0
  %2027 = vdwg.mxu0
  %2028 = vmatprep.subr.mxu0 0.0
  %v2029 = vand.u32 %v1823, 4294901760
  %v2030 = vsub.f32 %v1823, %v2029
  %2031 = vmatpush1.msra.mxu0 %v2030
  %2032 = vmatprep.subr.mxu0 0.0
  %v2033 = vand.u32 %v1824, 4294901760
  %v2034 = vsub.f32 %v1824, %v2033
  %2035 = vmatpush1.msra.mxu0 %v2034
  %2036 = vmatprep.subr.mxu0 0.0
  %v2037 = vand.u32 %v1825, 4294901760
  %v2038 = vsub.f32 %v1825, %v2037
  %2039 = vmatpush1.msra.mxu0 %v2038
  %2040 = vmatprep.subr.mxu0 0.0
  %v2041 = vand.u32 %v1826, 4294901760
  %v2042 = vsub.f32 %v1826, %v2041
  %2043 = vmatpush1.msra.mxu0 %v2042
  %2044 = vmatprep.subr.mxu0 0.0
  %v2045 = vand.u32 %v1827, 4294901760
  %v2046 = vsub.f32 %v1827, %v2045
  %2047 = vmatpush1.msra.mxu0 %v2046
  %2048 = vmatprep.subr.mxu0 0.0
  %v2049 = vand.u32 %v1828, 4294901760
  %v2050 = vsub.f32 %v1828, %v2049
  %2051 = vmatpush1.msra.mxu0 %v2050
  %2052 = vmatprep.subr.mxu0 0.0
  %v2053 = vand.u32 %v1829, 4294901760
  %v2054 = vsub.f32 %v1829, %v2053
  %2055 = vmatpush1.msra.mxu0 %v2054
  %2056 = vmatprep.subr.mxu0 0.0
  %v2057 = vand.u32 %v1830, 4294901760
  %v2058 = vsub.f32 %v1830, %v2057
  %2059 = vmatpush1.msra.mxu0 %v2058
  %2060 = vmatprep.subr.mxu0 0.0
  %2061 = vmatpush1.msra.mxu0 0.0
  %2062 = vmatprep.subr.mxu0 0.0
  %2063 = vmatpush1.msra.mxu0 0.0
  %2064 = vmatprep.subr.mxu0 0.0
  %2065 = vmatpush1.msra.mxu0 0.0
  %2066 = vmatprep.subr.mxu0 0.0
  %2067 = vmatpush1.msra.mxu0 0.0
  %2068 = vmatprep.subr.mxu0 0.0
  %2069 = vmatpush1.msra.mxu0 0.0
  %2070 = vmatprep.subr.mxu0 0.0
  %2071 = vmatpush1.msra.mxu0 0.0
  %2072 = vmatprep.subr.mxu0 0.0
  %2073 = vmatpush1.msra.mxu0 0.0
  %2074 = vmatprep.subr.mxu0 0.0
  %2075 = vmatpush1.msra.mxu0 0.0
  %2076 = vmatprep.subr.mxu0 0.0
  %2077 = vmatpush1.msra.mxu0 0.0
  %2078 = vmatprep.subr.mxu0 0.0
  %2079 = vmatpush1.msra.mxu0 0.0
  %2080 = vmatprep.subr.mxu0 0.0
  %2081 = vmatpush1.msra.mxu0 0.0
  %2082 = vmatprep.subr.mxu0 0.0
  %2083 = vmatpush1.msra.mxu0 0.0
  %2084 = vmatprep.subr.mxu0 0.0
  %2085 = vmatpush1.msra.mxu0 0.0
  %2086 = vmatprep.subr.mxu0 0.0
  %2087 = vmatpush1.msra.mxu0 0.0
  %2088 = vmatprep.subr.mxu0 0.0
  %2089 = vmatpush1.msra.mxu0 0.0
  %2090 = vmatprep.subr.mxu0 0.0
  %2091 = vmatpush1.msra.mxu0 0.0
  %2092 = vmatprep.subr.mxu0 0.0
  %2093 = vmatpush1.msra.mxu0 0.0
  %2094 = vmatprep.subr.mxu0 0.0
  %2095 = vmatpush1.msra.mxu0 0.0
  %2096 = vmatprep.subr.mxu0 0.0
  %2097 = vmatpush1.msra.mxu0 0.0
  %2098 = vmatprep.subr.mxu0 0.0
  %2099 = vmatpush1.msra.mxu0 0.0
  %2100 = vmatprep.subr.mxu0 0.0
  %2101 = vmatpush1.msra.mxu0 0.0
  %2102 = vmatprep.subr.mxu0 0.0
  %2103 = vmatpush1.msra.mxu0 0.0
  %2104 = vmatprep.subr.mxu0 0.0
  %2105 = vmatpush1.msra.mxu0 0.0
  %2106 = vmatprep.subr.mxu0 0.0
  %2107 = vmatpush1.msra.mxu0 0.0
  %2108 = vmatprep.mubr.f32.mxu0 0.0
  %v2109 = vand.u32 %v1832, 4294901760
  %v2110 = vsub.f32 %v1832, %v2109
  %2111 = vmatmul.mubr.f32.gmra.mrb[0].mxu0 %v2110
  %v2112 = vpop.f32.mrb[0].mxu0
  %v2113 = vadd.f32 %v2025, %v2112
  %v2114 = vpop.f32.mrb[0].mxu0
  %2115 = vdwg.mxu0
  %2116 = vmatprep.subr.mxu0 0.0
  %v2117 = vand.u32 %v1823, 4294901760
  %2118 = vmatpush1.msra.mxu0 %v2117
  %2119 = vmatprep.subr.mxu0 0.0
  %v2120 = vand.u32 %v1824, 4294901760
  %2121 = vmatpush1.msra.mxu0 %v2120
  %2122 = vmatprep.subr.mxu0 0.0
  %v2123 = vand.u32 %v1825, 4294901760
  %2124 = vmatpush1.msra.mxu0 %v2123
  %2125 = vmatprep.subr.mxu0 0.0
  %v2126 = vand.u32 %v1826, 4294901760
  %2127 = vmatpush1.msra.mxu0 %v2126
  %2128 = vmatprep.subr.mxu0 0.0
  %v2129 = vand.u32 %v1827, 4294901760
  %2130 = vmatpush1.msra.mxu0 %v2129
  %2131 = vmatprep.subr.mxu0 0.0
  %v2132 = vand.u32 %v1828, 4294901760
  %2133 = vmatpush1.msra.mxu0 %v2132
  %2134 = vmatprep.subr.mxu0 0.0
  %v2135 = vand.u32 %v1829, 4294901760
  %2136 = vmatpush1.msra.mxu0 %v2135
  %2137 = vmatprep.subr.mxu0 0.0
  %v2138 = vand.u32 %v1830, 4294901760
  %2139 = vmatpush1.msra.mxu0 %v2138
  %2140 = vmatprep.subr.mxu0 0.0
  %2141 = vmatpush1.msra.mxu0 0.0
  %2142 = vmatprep.subr.mxu0 0.0
  %2143 = vmatpush1.msra.mxu0 0.0
  %2144 = vmatprep.subr.mxu0 0.0
  %2145 = vmatpush1.msra.mxu0 0.0
  %2146 = vmatprep.subr.mxu0 0.0
  %2147 = vmatpush1.msra.mxu0 0.0
  %2148 = vmatprep.subr.mxu0 0.0
  %2149 = vmatpush1.msra.mxu0 0.0
  %2150 = vmatprep.subr.mxu0 0.0
  %2151 = vmatpush1.msra.mxu0 0.0
  %2152 = vmatprep.subr.mxu0 0.0
  %2153 = vmatpush1.msra.mxu0 0.0
  %2154 = vmatprep.subr.mxu0 0.0
  %2155 = vmatpush1.msra.mxu0 0.0
  %2156 = vmatprep.subr.mxu0 0.0
  %2157 = vmatpush1.msra.mxu0 0.0
  %2158 = vmatprep.subr.mxu0 0.0
  %2159 = vmatpush1.msra.mxu0 0.0
  %2160 = vmatprep.subr.mxu0 0.0
  %2161 = vmatpush1.msra.mxu0 0.0
  %2162 = vmatprep.subr.mxu0 0.0
  %2163 = vmatpush1.msra.mxu0 0.0
  %2164 = vmatprep.subr.mxu0 0.0
  %2165 = vmatpush1.msra.mxu0 0.0
  %2166 = vmatprep.subr.mxu0 0.0
  %2167 = vmatpush1.msra.mxu0 0.0
  %2168 = vmatprep.subr.mxu0 0.0
  %2169 = vmatpush1.msra.mxu0 0.0
  %2170 = vmatprep.subr.mxu0 0.0
  %2171 = vmatpush1.msra.mxu0 0.0
  %2172 = vmatprep.subr.mxu0 0.0
  %2173 = vmatpush1.msra.mxu0 0.0
  %2174 = vmatprep.subr.mxu0 0.0
  %2175 = vmatpush1.msra.mxu0 0.0
  %2176 = vmatprep.subr.mxu0 0.0
  %2177 = vmatpush1.msra.mxu0 0.0
  %2178 = vmatprep.subr.mxu0 0.0
  %2179 = vmatpush1.msra.mxu0 0.0
  %2180 = vmatprep.subr.mxu0 0.0
  %2181 = vmatpush1.msra.mxu0 0.0
  %2182 = vmatprep.subr.mxu0 0.0
  %2183 = vmatpush1.msra.mxu0 0.0
  %2184 = vmatprep.subr.mxu0 0.0
  %2185 = vmatpush1.msra.mxu0 0.0
  %2186 = vmatprep.subr.mxu0 0.0
  %2187 = vmatpush1.msra.mxu0 0.0
  %2188 = vmatprep.mubr.f32.mxu0 0.0
  %v2189 = vand.u32 %v1832, 4294901760
  %v2190 = vsub.f32 %v1832, %v2189
  %v2191 = vand.u32 %v2190, 4294901760
  %2192 = vmatmul.mubr.f32.gmra.mrb[0].mxu0 %v2191
  %v2193 = vpop.f32.mrb[0].mxu0
  %v2194 = vadd.f32 %v2113, %v2193
  %v2195 = vpop.f32.mrb[0].mxu0
  %2196 = vdwg.mxu0
  %2197 = vmatprep.subr.mxu0 0.0
  %v2198 = vand.u32 %v1823, 4294901760
  %v2199 = vsub.f32 %v1823, %v2198
  %v2200 = vand.u32 %v2199, 4294901760
  %2201 = vmatpush1.msra.mxu0 %v2200
  %2202 = vmatprep.subr.mxu0 0.0
  %v2203 = vand.u32 %v1824, 4294901760
  %v2204 = vsub.f32 %v1824, %v2203
  %v2205 = vand.u32 %v2204, 4294901760
  %2206 = vmatpush1.msra.mxu0 %v2205
  %2207 = vmatprep.subr.mxu0 0.0
  %v2208 = vand.u32 %v1825, 4294901760
  %v2209 = vsub.f32 %v1825, %v2208
  %v2210 = vand.u32 %v2209, 4294901760
  %2211 = vmatpush1.msra.mxu0 %v2210
  %2212 = vmatprep.subr.mxu0 0.0
  %v2213 = vand.u32 %v1826, 4294901760
  %v2214 = vsub.f32 %v1826, %v2213
  %v2215 = vand.u32 %v2214, 4294901760
  %2216 = vmatpush1.msra.mxu0 %v2215
  %2217 = vmatprep.subr.mxu0 0.0
  %v2218 = vand.u32 %v1827, 4294901760
  %v2219 = vsub.f32 %v1827, %v2218
  %v2220 = vand.u32 %v2219, 4294901760
  %2221 = vmatpush1.msra.mxu0 %v2220
  %2222 = vmatprep.subr.mxu0 0.0
  %v2223 = vand.u32 %v1828, 4294901760
  %v2224 = vsub.f32 %v1828, %v2223
  %v2225 = vand.u32 %v2224, 4294901760
  %2226 = vmatpush1.msra.mxu0 %v2225
  %2227 = vmatprep.subr.mxu0 0.0
  %v2228 = vand.u32 %v1829, 4294901760
  %v2229 = vsub.f32 %v1829, %v2228
  %v2230 = vand.u32 %v2229, 4294901760
  %2231 = vmatpush1.msra.mxu0 %v2230
  %2232 = vmatprep.subr.mxu0 0.0
  %v2233 = vand.u32 %v1830, 4294901760
  %v2234 = vsub.f32 %v1830, %v2233
  %v2235 = vand.u32 %v2234, 4294901760
  %2236 = vmatpush1.msra.mxu0 %v2235
  %2237 = vmatprep.subr.mxu0 0.0
  %2238 = vmatpush1.msra.mxu0 0.0
  %2239 = vmatprep.subr.mxu0 0.0
  %2240 = vmatpush1.msra.mxu0 0.0
  %2241 = vmatprep.subr.mxu0 0.0
  %2242 = vmatpush1.msra.mxu0 0.0
  %2243 = vmatprep.subr.mxu0 0.0
  %2244 = vmatpush1.msra.mxu0 0.0
  %2245 = vmatprep.subr.mxu0 0.0
  %2246 = vmatpush1.msra.mxu0 0.0
  %2247 = vmatprep.subr.mxu0 0.0
  %2248 = vmatpush1.msra.mxu0 0.0
  %2249 = vmatprep.subr.mxu0 0.0
  %2250 = vmatpush1.msra.mxu0 0.0
  %2251 = vmatprep.subr.mxu0 0.0
  %2252 = vmatpush1.msra.mxu0 0.0
  %2253 = vmatprep.subr.mxu0 0.0
  %2254 = vmatpush1.msra.mxu0 0.0
  %2255 = vmatprep.subr.mxu0 0.0
  %2256 = vmatpush1.msra.mxu0 0.0
  %2257 = vmatprep.subr.mxu0 0.0
  %2258 = vmatpush1.msra.mxu0 0.0
  %2259 = vmatprep.subr.mxu0 0.0
  %2260 = vmatpush1.msra.mxu0 0.0
  %2261 = vmatprep.subr.mxu0 0.0
  %2262 = vmatpush1.msra.mxu0 0.0
  %2263 = vmatprep.subr.mxu0 0.0
  %2264 = vmatpush1.msra.mxu0 0.0
  %2265 = vmatprep.subr.mxu0 0.0
  %2266 = vmatpush1.msra.mxu0 0.0
  %2267 = vmatprep.subr.mxu0 0.0
  %2268 = vmatpush1.msra.mxu0 0.0
  %2269 = vmatprep.subr.mxu0 0.0
  %2270 = vmatpush1.msra.mxu0 0.0
  %2271 = vmatprep.subr.mxu0 0.0
  %2272 = vmatpush1.msra.mxu0 0.0
  %2273 = vmatprep.subr.mxu0 0.0
  %2274 = vmatpush1.msra.mxu0 0.0
  %2275 = vmatprep.subr.mxu0 0.0
  %2276 = vmatpush1.msra.mxu0 0.0
  %2277 = vmatprep.subr.mxu0 0.0
  %2278 = vmatpush1.msra.mxu0 0.0
  %2279 = vmatprep.subr.mxu0 0.0
  %2280 = vmatpush1.msra.mxu0 0.0
  %2281 = vmatprep.subr.mxu0 0.0
  %2282 = vmatpush1.msra.mxu0 0.0
  %2283 = vmatprep.subr.mxu0 0.0
  %2284 = vmatpush1.msra.mxu0 0.0
  %2285 = vmatprep.mubr.f32.mxu0 0.0
  %v2286 = vand.u32 %v1832, 4294901760
  %2287 = vmatmul.mubr.f32.gmra.mrb[0].mxu0 %v2286
  %v2288 = vpop.f32.mrb[0].mxu0
  %v2289 = vadd.f32 %v2194, %v2288
  %v2290 = vpop.f32.mrb[0].mxu0
  %2291 = vdwg.mxu0
  %2292 = vmatprep.subr.mxu0 0.0
  %v2293 = vand.u32 %v1823, 4294901760
  %2294 = vmatpush1.msra.mxu0 %v2293
  %2295 = vmatprep.subr.mxu0 0.0
  %v2296 = vand.u32 %v1824, 4294901760
  %2297 = vmatpush1.msra.mxu0 %v2296
  %2298 = vmatprep.subr.mxu0 0.0
  %v2299 = vand.u32 %v1825, 4294901760
  %2300 = vmatpush1.msra.mxu0 %v2299
  %2301 = vmatprep.subr.mxu0 0.0
  %v2302 = vand.u32 %v1826, 4294901760
  %2303 = vmatpush1.msra.mxu0 %v2302
  %2304 = vmatprep.subr.mxu0 0.0
  %v2305 = vand.u32 %v1827, 4294901760
  %2306 = vmatpush1.msra.mxu0 %v2305
  %2307 = vmatprep.subr.mxu0 0.0
  %v2308 = vand.u32 %v1828, 4294901760
  %2309 = vmatpush1.msra.mxu0 %v2308
  %2310 = vmatprep.subr.mxu0 0.0
  %v2311 = vand.u32 %v1829, 4294901760
  %2312 = vmatpush1.msra.mxu0 %v2311
  %2313 = vmatprep.subr.mxu0 0.0
  %v2314 = vand.u32 %v1830, 4294901760
  %2315 = vmatpush1.msra.mxu0 %v2314
  %2316 = vmatprep.subr.mxu0 0.0
  %2317 = vmatpush1.msra.mxu0 0.0
  %2318 = vmatprep.subr.mxu0 0.0
  %2319 = vmatpush1.msra.mxu0 0.0
  %2320 = vmatprep.subr.mxu0 0.0
  %2321 = vmatpush1.msra.mxu0 0.0
  %2322 = vmatprep.subr.mxu0 0.0
  %2323 = vmatpush1.msra.mxu0 0.0
  %2324 = vmatprep.subr.mxu0 0.0
  %2325 = vmatpush1.msra.mxu0 0.0
  %2326 = vmatprep.subr.mxu0 0.0
  %2327 = vmatpush1.msra.mxu0 0.0
  %2328 = vmatprep.subr.mxu0 0.0
  %2329 = vmatpush1.msra.mxu0 0.0
  %2330 = vmatprep.subr.mxu0 0.0
  %2331 = vmatpush1.msra.mxu0 0.0
  %2332 = vmatprep.subr.mxu0 0.0
  %2333 = vmatpush1.msra.mxu0 0.0
  %2334 = vmatprep.subr.mxu0 0.0
  %2335 = vmatpush1.msra.mxu0 0.0
  %2336 = vmatprep.subr.mxu0 0.0
  %2337 = vmatpush1.msra.mxu0 0.0
  %2338 = vmatprep.subr.mxu0 0.0
  %2339 = vmatpush1.msra.mxu0 0.0
  %2340 = vmatprep.subr.mxu0 0.0
  %2341 = vmatpush1.msra.mxu0 0.0
  %2342 = vmatprep.subr.mxu0 0.0
  %2343 = vmatpush1.msra.mxu0 0.0
  %2344 = vmatprep.subr.mxu0 0.0
  %2345 = vmatpush1.msra.mxu0 0.0
  %2346 = vmatprep.subr.mxu0 0.0
  %2347 = vmatpush1.msra.mxu0 0.0
  %2348 = vmatprep.subr.mxu0 0.0
  %2349 = vmatpush1.msra.mxu0 0.0
  %2350 = vmatprep.subr.mxu0 0.0
  %2351 = vmatpush1.msra.mxu0 0.0
  %2352 = vmatprep.subr.mxu0 0.0
  %2353 = vmatpush1.msra.mxu0 0.0
  %2354 = vmatprep.subr.mxu0 0.0
  %2355 = vmatpush1.msra.mxu0 0.0
  %2356 = vmatprep.subr.mxu0 0.0
  %2357 = vmatpush1.msra.mxu0 0.0
  %2358 = vmatprep.subr.mxu0 0.0
  %2359 = vmatpush1.msra.mxu0 0.0
  %2360 = vmatprep.subr.mxu0 0.0
  %2361 = vmatpush1.msra.mxu0 0.0
  %2362 = vmatprep.subr.mxu0 0.0
  %2363 = vmatpush1.msra.mxu0 0.0
  %2364 = vmatprep.mubr.f32.mxu0 0.0
  %v2365 = vand.u32 %v1832, 4294901760
  %2366 = vmatmul.mubr.f32.gmra.mrb[0].mxu0 %v2365
  %v2367 = vpop.f32.mrb[0].mxu0
  %v2368 = vadd.f32 %v2289, %v2367
  %v2369 = vpop.f32.mrb[0].mxu0
  %2370 = vdwg.mxu0
  %v2371 = vmul.f32 %v2368, 0.001953125
  %v2372 = vlaneseq
  %v2373 = vshrl.u32 %v2372, 7
  %v2374 = vsub.s32 0, %v2373
  %v2375 = vrot.slane %v2371, %v2374
  %v2376 = vsub.f32 %v1806, %v2375
  %v2377 = vsub.f32 %v1807, %v2375
  %v2378 = vsub.f32 %v1808, %v2375
  %v2379 = vsub.f32 %v1809, %v2375
  %v2380 = vmul.f32 %v2376, %v2376
  %v2381 = vmul.f32 %v2377, %v2377
  %v2382 = vmul.f32 %v2378, %v2378
  %v2383 = vmul.f32 %v2379, %v2379
  %v2384 = vsel %vm78, %v2380, 0.0
  %v2385 = vsel %vm78, %v2381, 0.0
  %v2386 = vadd.f32 %v2384, %v2385
  %v2387 = vsel %vm78, %v2382, 0.0
  %v2388 = vadd.f32 %v2386, %v2387
  %v2389 = vsel %vm78, %v2383, 0.0
  %v2390 = vadd.f32 %v2388, %v2389
  %v2391 = vrot.slane %v2390, 4
  %v2392 = vadd.f32 %v2390, %v2391
  %v2393 = vrot.slane %v2392, 2
  %v2394 = vadd.f32 %v2392, %v2393
  %v2395 = vrot.slane %v2394, 1
  %v2396 = vadd.f32 %v2394, %v2395
  %v2398 = vsel %vm78, %v2396, 0
  %2400 = vmatprep.subr.mxu0 0.0
  %v2401 = vand.u32 %v1823, 4294901760
  %2402 = vmatpush1.msra.mxu0 %v2401
  %2403 = vmatprep.subr.mxu0 0.0
  %v2404 = vand.u32 %v1824, 4294901760
  %2405 = vmatpush1.msra.mxu0 %v2404
  %2406 = vmatprep.subr.mxu0 0.0
  %v2407 = vand.u32 %v1825, 4294901760
  %2408 = vmatpush1.msra.mxu0 %v2407
  %2409 = vmatprep.subr.mxu0 0.0
  %v2410 = vand.u32 %v1826, 4294901760
  %2411 = vmatpush1.msra.mxu0 %v2410
  %2412 = vmatprep.subr.mxu0 0.0
  %v2413 = vand.u32 %v1827, 4294901760
  %2414 = vmatpush1.msra.mxu0 %v2413
  %2415 = vmatprep.subr.mxu0 0.0
  %v2416 = vand.u32 %v1828, 4294901760
  %2417 = vmatpush1.msra.mxu0 %v2416
  %2418 = vmatprep.subr.mxu0 0.0
  %v2419 = vand.u32 %v1829, 4294901760
  %2420 = vmatpush1.msra.mxu0 %v2419
  %2421 = vmatprep.subr.mxu0 0.0
  %v2422 = vand.u32 %v1830, 4294901760
  %2423 = vmatpush1.msra.mxu0 %v2422
  %2424 = vmatprep.subr.mxu0 0.0
  %2425 = vmatpush1.msra.mxu0 0.0
  %2426 = vmatprep.subr.mxu0 0.0
  %2427 = vmatpush1.msra.mxu0 0.0
  %2428 = vmatprep.subr.mxu0 0.0
  %2429 = vmatpush1.msra.mxu0 0.0
  %2430 = vmatprep.subr.mxu0 0.0
  %2431 = vmatpush1.msra.mxu0 0.0
  %2432 = vmatprep.subr.mxu0 0.0
  %2433 = vmatpush1.msra.mxu0 0.0
  %2434 = vmatprep.subr.mxu0 0.0
  %2435 = vmatpush1.msra.mxu0 0.0
  %2436 = vmatprep.subr.mxu0 0.0
  %2437 = vmatpush1.msra.mxu0 0.0
  %2438 = vmatprep.subr.mxu0 0.0
  %2439 = vmatpush1.msra.mxu0 0.0
  %2440 = vmatprep.subr.mxu0 0.0
  %2441 = vmatpush1.msra.mxu0 0.0
  %2442 = vmatprep.subr.mxu0 0.0
  %2443 = vmatpush1.msra.mxu0 0.0
  %2444 = vmatprep.subr.mxu0 0.0
  %2445 = vmatpush1.msra.mxu0 0.0
  %2446 = vmatprep.subr.mxu0 0.0
  %2447 = vmatpush1.msra.mxu0 0.0
  %2448 = vmatprep.subr.mxu0 0.0
  %2449 = vmatpush1.msra.mxu0 0.0
  %2450 = vmatprep.subr.mxu0 0.0
  %2451 = vmatpush1.msra.mxu0 0.0
  %2452 = vmatprep.subr.mxu0 0.0
  %2453 = vmatpush1.msra.mxu0 0.0
  %2454 = vmatprep.subr.mxu0 0.0
  %2455 = vmatpush1.msra.mxu0 0.0
  %2456 = vmatprep.subr.mxu0 0.0
  %2457 = vmatpush1.msra.mxu0 0.0
  %2458 = vmatprep.subr.mxu0 0.0
  %2459 = vmatpush1.msra.mxu0 0.0
  %2460 = vmatprep.subr.mxu0 0.0
  %2461 = vmatpush1.msra.mxu0 0.0
  %2462 = vmatprep.subr.mxu0 0.0
  %2463 = vmatpush1.msra.mxu0 0.0
  %2464 = vmatprep.subr.mxu0 0.0
  %2465 = vmatpush1.msra.mxu0 0.0
  %2466 = vmatprep.subr.mxu0 0.0
  %2467 = vmatpush1.msra.mxu0 0.0
  %2468 = vmatprep.subr.mxu0 0.0
  %2469 = vmatpush1.msra.mxu0 0.0
  %2470 = vmatprep.subr.mxu0 0.0
  %2471 = vmatpush1.msra.mxu0 0.0
  %2472 = vmatprep.mubr.f32.mxu0 0.0
  %v2473 = vand.u32 %v2398, 4294901760
  %v2474 = vsub.f32 %v2398, %v2473
  %v2475 = vand.u32 %v2474, 4294901760
  %v2476 = vsub.f32 %v2474, %v2475
  %v2477 = vand.u32 %v2476, 4294901760
  %2478 = vmatmul.mubr.f32.gmra.mrb[0].mxu0 %v2477
  %v2479 = vpop.f32.mrb[0].mxu0
  %v2480 = vadd.f32 0.0, %v2479
  %v2481 = vpop.f32.mrb[0].mxu0
  %2482 = vdwg.mxu0
  %2483 = vmatprep.subr.mxu0 0.0
  %v2484 = vand.u32 %v1823, 4294901760
  %v2485 = vsub.f32 %v1823, %v2484
  %v2486 = vand.u32 %v2485, 4294901760
  %v2487 = vsub.f32 %v2485, %v2486
  %v2488 = vand.u32 %v2487, 4294901760
  %2489 = vmatpush1.msra.mxu0 %v2488
  %2490 = vmatprep.subr.mxu0 0.0
  %v2491 = vand.u32 %v1824, 4294901760
  %v2492 = vsub.f32 %v1824, %v2491
  %v2493 = vand.u32 %v2492, 4294901760
  %v2494 = vsub.f32 %v2492, %v2493
  %v2495 = vand.u32 %v2494, 4294901760
  %2496 = vmatpush1.msra.mxu0 %v2495
  %2497 = vmatprep.subr.mxu0 0.0
  %v2498 = vand.u32 %v1825, 4294901760
  %v2499 = vsub.f32 %v1825, %v2498
  %v2500 = vand.u32 %v2499, 4294901760
  %v2501 = vsub.f32 %v2499, %v2500
  %v2502 = vand.u32 %v2501, 4294901760
  %2503 = vmatpush1.msra.mxu0 %v2502
  %2504 = vmatprep.subr.mxu0 0.0
  %v2505 = vand.u32 %v1826, 4294901760
  %v2506 = vsub.f32 %v1826, %v2505
  %v2507 = vand.u32 %v2506, 4294901760
  %v2508 = vsub.f32 %v2506, %v2507
  %v2509 = vand.u32 %v2508, 4294901760
  %2510 = vmatpush1.msra.mxu0 %v2509
  %2511 = vmatprep.subr.mxu0 0.0
  %v2512 = vand.u32 %v1827, 4294901760
  %v2513 = vsub.f32 %v1827, %v2512
  %v2514 = vand.u32 %v2513, 4294901760
  %v2515 = vsub.f32 %v2513, %v2514
  %v2516 = vand.u32 %v2515, 4294901760
  %2517 = vmatpush1.msra.mxu0 %v2516
  %2518 = vmatprep.subr.mxu0 0.0
  %v2519 = vand.u32 %v1828, 4294901760
  %v2520 = vsub.f32 %v1828, %v2519
  %v2521 = vand.u32 %v2520, 4294901760
  %v2522 = vsub.f32 %v2520, %v2521
  %v2523 = vand.u32 %v2522, 4294901760
  %2524 = vmatpush1.msra.mxu0 %v2523
  %2525 = vmatprep.subr.mxu0 0.0
  %v2526 = vand.u32 %v1829, 4294901760
  %v2527 = vsub.f32 %v1829, %v2526
  %v2528 = vand.u32 %v2527, 4294901760
  %v2529 = vsub.f32 %v2527, %v2528
  %v2530 = vand.u32 %v2529, 4294901760
  %2531 = vmatpush1.msra.mxu0 %v2530
  %2532 = vmatprep.subr.mxu0 0.0
  %v2533 = vand.u32 %v1830, 4294901760
  %v2534 = vsub.f32 %v1830, %v2533
  %v2535 = vand.u32 %v2534, 4294901760
  %v2536 = vsub.f32 %v2534, %v2535
  %v2537 = vand.u32 %v2536, 4294901760
  %2538 = vmatpush1.msra.mxu0 %v2537
  %2539 = vmatprep.subr.mxu0 0.0
  %2540 = vmatpush1.msra.mxu0 0.0
  %2541 = vmatprep.subr.mxu0 0.0
  %2542 = vmatpush1.msra.mxu0 0.0
  %2543 = vmatprep.subr.mxu0 0.0
  %2544 = vmatpush1.msra.mxu0 0.0
  %2545 = vmatprep.subr.mxu0 0.0
  %2546 = vmatpush1.msra.mxu0 0.0
  %2547 = vmatprep.subr.mxu0 0.0
  %2548 = vmatpush1.msra.mxu0 0.0
  %2549 = vmatprep.subr.mxu0 0.0
  %2550 = vmatpush1.msra.mxu0 0.0
  %2551 = vmatprep.subr.mxu0 0.0
  %2552 = vmatpush1.msra.mxu0 0.0
  %2553 = vmatprep.subr.mxu0 0.0
  %2554 = vmatpush1.msra.mxu0 0.0
  %2555 = vmatprep.subr.mxu0 0.0
  %2556 = vmatpush1.msra.mxu0 0.0
  %2557 = vmatprep.subr.mxu0 0.0
  %2558 = vmatpush1.msra.mxu0 0.0
  %2559 = vmatprep.subr.mxu0 0.0
  %2560 = vmatpush1.msra.mxu0 0.0
  %2561 = vmatprep.subr.mxu0 0.0
  %2562 = vmatpush1.msra.mxu0 0.0
  %2563 = vmatprep.subr.mxu0 0.0
  %2564 = vmatpush1.msra.mxu0 0.0
  %2565 = vmatprep.subr.mxu0 0.0
  %2566 = vmatpush1.msra.mxu0 0.0
  %2567 = vmatprep.subr.mxu0 0.0
  %2568 = vmatpush1.msra.mxu0 0.0
  %2569 = vmatprep.subr.mxu0 0.0
  %2570 = vmatpush1.msra.mxu0 0.0
  %2571 = vmatprep.subr.mxu0 0.0
  %2572 = vmatpush1.msra.mxu0 0.0
  %2573 = vmatprep.subr.mxu0 0.0
  %2574 = vmatpush1.msra.mxu0 0.0
  %2575 = vmatprep.subr.mxu0 0.0
  %2576 = vmatpush1.msra.mxu0 0.0
  %2577 = vmatprep.subr.mxu0 0.0
  %2578 = vmatpush1.msra.mxu0 0.0
  %2579 = vmatprep.subr.mxu0 0.0
  %2580 = vmatpush1.msra.mxu0 0.0
  %2581 = vmatprep.subr.mxu0 0.0
  %2582 = vmatpush1.msra.mxu0 0.0
  %2583 = vmatprep.subr.mxu0 0.0
  %2584 = vmatpush1.msra.mxu0 0.0
  %2585 = vmatprep.subr.mxu0 0.0
  %2586 = vmatpush1.msra.mxu0 0.0
  %2587 = vmatprep.mubr.f32.mxu0 0.0
  %v2588 = vand.u32 %v2398, 4294901760
  %2589 = vmatmul.mubr.f32.gmra.mrb[0].mxu0 %v2588
  %v2590 = vpop.f32.mrb[0].mxu0
  %v2591 = vadd.f32 %v2480, %v2590
  %v2592 = vpop.f32.mrb[0].mxu0
  %2593 = vdwg.mxu0
  %2594 = vmatprep.subr.mxu0 0.0
  %v2595 = vand.u32 %v1823, 4294901760
  %v2596 = vsub.f32 %v1823, %v2595
  %2597 = vmatpush1.msra.mxu0 %v2596
  %2598 = vmatprep.subr.mxu0 0.0
  %v2599 = vand.u32 %v1824, 4294901760
  %v2600 = vsub.f32 %v1824, %v2599
  %2601 = vmatpush1.msra.mxu0 %v2600
  %2602 = vmatprep.subr.mxu0 0.0
  %v2603 = vand.u32 %v1825, 4294901760
  %v2604 = vsub.f32 %v1825, %v2603
  %2605 = vmatpush1.msra.mxu0 %v2604
  %2606 = vmatprep.subr.mxu0 0.0
  %v2607 = vand.u32 %v1826, 4294901760
  %v2608 = vsub.f32 %v1826, %v2607
  %2609 = vmatpush1.msra.mxu0 %v2608
  %2610 = vmatprep.subr.mxu0 0.0
  %v2611 = vand.u32 %v1827, 4294901760
  %v2612 = vsub.f32 %v1827, %v2611
  %2613 = vmatpush1.msra.mxu0 %v2612
  %2614 = vmatprep.subr.mxu0 0.0
  %v2615 = vand.u32 %v1828, 4294901760
  %v2616 = vsub.f32 %v1828, %v2615
  %2617 = vmatpush1.msra.mxu0 %v2616
  %2618 = vmatprep.subr.mxu0 0.0
  %v2619 = vand.u32 %v1829, 4294901760
  %v2620 = vsub.f32 %v1829, %v2619
  %2621 = vmatpush1.msra.mxu0 %v2620
  %2622 = vmatprep.subr.mxu0 0.0
  %v2623 = vand.u32 %v1830, 4294901760
  %v2624 = vsub.f32 %v1830, %v2623
  %2625 = vmatpush1.msra.mxu0 %v2624
  %2626 = vmatprep.subr.mxu0 0.0
  %2627 = vmatpush1.msra.mxu0 0.0
  %2628 = vmatprep.subr.mxu0 0.0
  %2629 = vmatpush1.msra.mxu0 0.0
  %2630 = vmatprep.subr.mxu0 0.0
  %2631 = vmatpush1.msra.mxu0 0.0
  %2632 = vmatprep.subr.mxu0 0.0
  %2633 = vmatpush1.msra.mxu0 0.0
  %2634 = vmatprep.subr.mxu0 0.0
  %2635 = vmatpush1.msra.mxu0 0.0
  %2636 = vmatprep.subr.mxu0 0.0
  %2637 = vmatpush1.msra.mxu0 0.0
  %2638 = vmatprep.subr.mxu0 0.0
  %2639 = vmatpush1.msra.mxu0 0.0
  %2640 = vmatprep.subr.mxu0 0.0
  %2641 = vmatpush1.msra.mxu0 0.0
  %2642 = vmatprep.subr.mxu0 0.0
  %2643 = vmatpush1.msra.mxu0 0.0
  %2644 = vmatprep.subr.mxu0 0.0
  %2645 = vmatpush1.msra.mxu0 0.0
  %2646 = vmatprep.subr.mxu0 0.0
  %2647 = vmatpush1.msra.mxu0 0.0
  %2648 = vmatprep.subr.mxu0 0.0
  %2649 = vmatpush1.msra.mxu0 0.0
  %2650 = vmatprep.subr.mxu0 0.0
  %2651 = vmatpush1.msra.mxu0 0.0
  %2652 = vmatprep.subr.mxu0 0.0
  %2653 = vmatpush1.msra.mxu0 0.0
  %2654 = vmatprep.subr.mxu0 0.0
  %2655 = vmatpush1.msra.mxu0 0.0
  %2656 = vmatprep.subr.mxu0 0.0
  %2657 = vmatpush1.msra.mxu0 0.0
  %2658 = vmatprep.subr.mxu0 0.0
  %2659 = vmatpush1.msra.mxu0 0.0
  %2660 = vmatprep.subr.mxu0 0.0
  %2661 = vmatpush1.msra.mxu0 0.0
  %2662 = vmatprep.subr.mxu0 0.0
  %2663 = vmatpush1.msra.mxu0 0.0
  %2664 = vmatprep.subr.mxu0 0.0
  %2665 = vmatpush1.msra.mxu0 0.0
  %2666 = vmatprep.subr.mxu0 0.0
  %2667 = vmatpush1.msra.mxu0 0.0
  %2668 = vmatprep.subr.mxu0 0.0
  %2669 = vmatpush1.msra.mxu0 0.0
  %2670 = vmatprep.subr.mxu0 0.0
  %2671 = vmatpush1.msra.mxu0 0.0
  %2672 = vmatprep.subr.mxu0 0.0
  %2673 = vmatpush1.msra.mxu0 0.0
  %2674 = vmatprep.mubr.f32.mxu0 0.0
  %v2675 = vand.u32 %v2398, 4294901760
  %v2676 = vsub.f32 %v2398, %v2675
  %2677 = vmatmul.mubr.f32.gmra.mrb[0].mxu0 %v2676
  %v2678 = vpop.f32.mrb[0].mxu0
  %v2679 = vadd.f32 %v2591, %v2678
  %v2680 = vpop.f32.mrb[0].mxu0
  %2681 = vdwg.mxu0
  %2682 = vmatprep.subr.mxu0 0.0
  %v2683 = vand.u32 %v1823, 4294901760
  %2684 = vmatpush1.msra.mxu0 %v2683
  %2685 = vmatprep.subr.mxu0 0.0
  %v2686 = vand.u32 %v1824, 4294901760
  %2687 = vmatpush1.msra.mxu0 %v2686
  %2688 = vmatprep.subr.mxu0 0.0
  %v2689 = vand.u32 %v1825, 4294901760
  %2690 = vmatpush1.msra.mxu0 %v2689
  %2691 = vmatprep.subr.mxu0 0.0
  %v2692 = vand.u32 %v1826, 4294901760
  %2693 = vmatpush1.msra.mxu0 %v2692
  %2694 = vmatprep.subr.mxu0 0.0
  %v2695 = vand.u32 %v1827, 4294901760
  %2696 = vmatpush1.msra.mxu0 %v2695
  %2697 = vmatprep.subr.mxu0 0.0
  %v2698 = vand.u32 %v1828, 4294901760
  %2699 = vmatpush1.msra.mxu0 %v2698
  %2700 = vmatprep.subr.mxu0 0.0
  %v2701 = vand.u32 %v1829, 4294901760
  %2702 = vmatpush1.msra.mxu0 %v2701
  %2703 = vmatprep.subr.mxu0 0.0
  %v2704 = vand.u32 %v1830, 4294901760
  %2705 = vmatpush1.msra.mxu0 %v2704
  %2706 = vmatprep.subr.mxu0 0.0
  %2707 = vmatpush1.msra.mxu0 0.0
  %2708 = vmatprep.subr.mxu0 0.0
  %2709 = vmatpush1.msra.mxu0 0.0
  %2710 = vmatprep.subr.mxu0 0.0
  %2711 = vmatpush1.msra.mxu0 0.0
  %2712 = vmatprep.subr.mxu0 0.0
  %2713 = vmatpush1.msra.mxu0 0.0
  %2714 = vmatprep.subr.mxu0 0.0
  %2715 = vmatpush1.msra.mxu0 0.0
  %2716 = vmatprep.subr.mxu0 0.0
  %2717 = vmatpush1.msra.mxu0 0.0
  %2718 = vmatprep.subr.mxu0 0.0
  %2719 = vmatpush1.msra.mxu0 0.0
  %2720 = vmatprep.subr.mxu0 0.0
  %2721 = vmatpush1.msra.mxu0 0.0
  %2722 = vmatprep.subr.mxu0 0.0
  %2723 = vmatpush1.msra.mxu0 0.0
  %2724 = vmatprep.subr.mxu0 0.0
  %2725 = vmatpush1.msra.mxu0 0.0
  %2726 = vmatprep.subr.mxu0 0.0
  %2727 = vmatpush1.msra.mxu0 0.0
  %2728 = vmatprep.subr.mxu0 0.0
  %2729 = vmatpush1.msra.mxu0 0.0
  %2730 = vmatprep.subr.mxu0 0.0
  %2731 = vmatpush1.msra.mxu0 0.0
  %2732 = vmatprep.subr.mxu0 0.0
  %2733 = vmatpush1.msra.mxu0 0.0
  %2734 = vmatprep.subr.mxu0 0.0
  %2735 = vmatpush1.msra.mxu0 0.0
  %2736 = vmatprep.subr.mxu0 0.0
  %2737 = vmatpush1.msra.mxu0 0.0
  %2738 = vmatprep.subr.mxu0 0.0
  %2739 = vmatpush1.msra.mxu0 0.0
  %2740 = vmatprep.subr.mxu0 0.0
  %2741 = vmatpush1.msra.mxu0 0.0
  %2742 = vmatprep.subr.mxu0 0.0
  %2743 = vmatpush1.msra.mxu0 0.0
  %2744 = vmatprep.subr.mxu0 0.0
  %2745 = vmatpush1.msra.mxu0 0.0
  %2746 = vmatprep.subr.mxu0 0.0
  %2747 = vmatpush1.msra.mxu0 0.0
  %2748 = vmatprep.subr.mxu0 0.0
  %2749 = vmatpush1.msra.mxu0 0.0
  %2750 = vmatprep.subr.mxu0 0.0
  %2751 = vmatpush1.msra.mxu0 0.0
  %2752 = vmatprep.subr.mxu0 0.0
  %2753 = vmatpush1.msra.mxu0 0.0
  %2754 = vmatprep.mubr.f32.mxu0 0.0
  %v2755 = vand.u32 %v2398, 4294901760
  %v2756 = vsub.f32 %v2398, %v2755
  %v2757 = vand.u32 %v2756, 4294901760
  %2758 = vmatmul.mubr.f32.gmra.mrb[0].mxu0 %v2757
  %v2759 = vpop.f32.mrb[0].mxu0
  %v2760 = vadd.f32 %v2679, %v2759
  %v2761 = vpop.f32.mrb[0].mxu0
  %2762 = vdwg.mxu0
  %2763 = vmatprep.subr.mxu0 0.0
  %v2764 = vand.u32 %v1823, 4294901760
  %v2765 = vsub.f32 %v1823, %v2764
  %v2766 = vand.u32 %v2765, 4294901760
  %2767 = vmatpush1.msra.mxu0 %v2766
  %2768 = vmatprep.subr.mxu0 0.0
  %v2769 = vand.u32 %v1824, 4294901760
  %v2770 = vsub.f32 %v1824, %v2769
  %v2771 = vand.u32 %v2770, 4294901760
  %2772 = vmatpush1.msra.mxu0 %v2771
  %2773 = vmatprep.subr.mxu0 0.0
  %v2774 = vand.u32 %v1825, 4294901760
  %v2775 = vsub.f32 %v1825, %v2774
  %v2776 = vand.u32 %v2775, 4294901760
  %2777 = vmatpush1.msra.mxu0 %v2776
  %2778 = vmatprep.subr.mxu0 0.0
  %v2779 = vand.u32 %v1826, 4294901760
  %v2780 = vsub.f32 %v1826, %v2779
  %v2781 = vand.u32 %v2780, 4294901760
  %2782 = vmatpush1.msra.mxu0 %v2781
  %2783 = vmatprep.subr.mxu0 0.0
  %v2784 = vand.u32 %v1827, 4294901760
  %v2785 = vsub.f32 %v1827, %v2784
  %v2786 = vand.u32 %v2785, 4294901760
  %2787 = vmatpush1.msra.mxu0 %v2786
  %2788 = vmatprep.subr.mxu0 0.0
  %v2789 = vand.u32 %v1828, 4294901760
  %v2790 = vsub.f32 %v1828, %v2789
  %v2791 = vand.u32 %v2790, 4294901760
  %2792 = vmatpush1.msra.mxu0 %v2791
  %2793 = vmatprep.subr.mxu0 0.0
  %v2794 = vand.u32 %v1829, 4294901760
  %v2795 = vsub.f32 %v1829, %v2794
  %v2796 = vand.u32 %v2795, 4294901760
  %2797 = vmatpush1.msra.mxu0 %v2796
  %2798 = vmatprep.subr.mxu0 0.0
  %v2799 = vand.u32 %v1830, 4294901760
  %v2800 = vsub.f32 %v1830, %v2799
  %v2801 = vand.u32 %v2800, 4294901760
  %2802 = vmatpush1.msra.mxu0 %v2801
  %2803 = vmatprep.subr.mxu0 0.0
  %2804 = vmatpush1.msra.mxu0 0.0
  %2805 = vmatprep.subr.mxu0 0.0
  %2806 = vmatpush1.msra.mxu0 0.0
  %2807 = vmatprep.subr.mxu0 0.0
  %2808 = vmatpush1.msra.mxu0 0.0
  %2809 = vmatprep.subr.mxu0 0.0
  %2810 = vmatpush1.msra.mxu0 0.0
  %2811 = vmatprep.subr.mxu0 0.0
  %2812 = vmatpush1.msra.mxu0 0.0
  %2813 = vmatprep.subr.mxu0 0.0
  %2814 = vmatpush1.msra.mxu0 0.0
  %2815 = vmatprep.subr.mxu0 0.0
  %2816 = vmatpush1.msra.mxu0 0.0
  %2817 = vmatprep.subr.mxu0 0.0
  %2818 = vmatpush1.msra.mxu0 0.0
  %2819 = vmatprep.subr.mxu0 0.0
  %2820 = vmatpush1.msra.mxu0 0.0
  %2821 = vmatprep.subr.mxu0 0.0
  %2822 = vmatpush1.msra.mxu0 0.0
  %2823 = vmatprep.subr.mxu0 0.0
  %2824 = vmatpush1.msra.mxu0 0.0
  %2825 = vmatprep.subr.mxu0 0.0
  %2826 = vmatpush1.msra.mxu0 0.0
  %2827 = vmatprep.subr.mxu0 0.0
  %2828 = vmatpush1.msra.mxu0 0.0
  %2829 = vmatprep.subr.mxu0 0.0
  %2830 = vmatpush1.msra.mxu0 0.0
  %2831 = vmatprep.subr.mxu0 0.0
  %2832 = vmatpush1.msra.mxu0 0.0
  %2833 = vmatprep.subr.mxu0 0.0
  %2834 = vmatpush1.msra.mxu0 0.0
  %2835 = vmatprep.subr.mxu0 0.0
  %2836 = vmatpush1.msra.mxu0 0.0
  %2837 = vmatprep.subr.mxu0 0.0
  %2838 = vmatpush1.msra.mxu0 0.0
  %2839 = vmatprep.subr.mxu0 0.0
  %2840 = vmatpush1.msra.mxu0 0.0
  %2841 = vmatprep.subr.mxu0 0.0
  %2842 = vmatpush1.msra.mxu0 0.0
  %2843 = vmatprep.subr.mxu0 0.0
  %2844 = vmatpush1.msra.mxu0 0.0
  %2845 = vmatprep.subr.mxu0 0.0
  %2846 = vmatpush1.msra.mxu0 0.0
  %2847 = vmatprep.subr.mxu0 0.0
  %2848 = vmatpush1.msra.mxu0 0.0
  %2849 = vmatprep.subr.mxu0 0.0
  %2850 = vmatpush1.msra.mxu0 0.0
  %2851 = vmatprep.mubr.f32.mxu0 0.0
  %v2852 = vand.u32 %v2398, 4294901760
  %2853 = vmatmul.mubr.f32.gmra.mrb[0].mxu0 %v2852
  %v2854 = vpop.f32.mrb[0].mxu0
  %v2855 = vadd.f32 %v2760, %v2854
  %v2856 = vpop.f32.mrb[0].mxu0
  %2857 = vdwg.mxu0
  %2858 = vmatprep.subr.mxu0 0.0
  %v2859 = vand.u32 %v1823, 4294901760
  %2860 = vmatpush1.msra.mxu0 %v2859
  %2861 = vmatprep.subr.mxu0 0.0
  %v2862 = vand.u32 %v1824, 4294901760
  %2863 = vmatpush1.msra.mxu0 %v2862
  %2864 = vmatprep.subr.mxu0 0.0
  %v2865 = vand.u32 %v1825, 4294901760
  %2866 = vmatpush1.msra.mxu0 %v2865
  %2867 = vmatprep.subr.mxu0 0.0
  %v2868 = vand.u32 %v1826, 4294901760
  %2869 = vmatpush1.msra.mxu0 %v2868
  %2870 = vmatprep.subr.mxu0 0.0
  %v2871 = vand.u32 %v1827, 4294901760
  %2872 = vmatpush1.msra.mxu0 %v2871
  %2873 = vmatprep.subr.mxu0 0.0
  %v2874 = vand.u32 %v1828, 4294901760
  %2875 = vmatpush1.msra.mxu0 %v2874
  %2876 = vmatprep.subr.mxu0 0.0
  %v2877 = vand.u32 %v1829, 4294901760
  %2878 = vmatpush1.msra.mxu0 %v2877
  %2879 = vmatprep.subr.mxu0 0.0
  %v2880 = vand.u32 %v1830, 4294901760
  %2881 = vmatpush1.msra.mxu0 %v2880
  %2882 = vmatprep.subr.mxu0 0.0
  %2883 = vmatpush1.msra.mxu0 0.0
  %2884 = vmatprep.subr.mxu0 0.0
  %2885 = vmatpush1.msra.mxu0 0.0
  %2886 = vmatprep.subr.mxu0 0.0
  %2887 = vmatpush1.msra.mxu0 0.0
  %2888 = vmatprep.subr.mxu0 0.0
  %2889 = vmatpush1.msra.mxu0 0.0
  %2890 = vmatprep.subr.mxu0 0.0
  %2891 = vmatpush1.msra.mxu0 0.0
  %2892 = vmatprep.subr.mxu0 0.0
  %2893 = vmatpush1.msra.mxu0 0.0
  %2894 = vmatprep.subr.mxu0 0.0
  %2895 = vmatpush1.msra.mxu0 0.0
  %2896 = vmatprep.subr.mxu0 0.0
  %2897 = vmatpush1.msra.mxu0 0.0
  %2898 = vmatprep.subr.mxu0 0.0
  %2899 = vmatpush1.msra.mxu0 0.0
  %2900 = vmatprep.subr.mxu0 0.0
  %2901 = vmatpush1.msra.mxu0 0.0
  %2902 = vmatprep.subr.mxu0 0.0
  %2903 = vmatpush1.msra.mxu0 0.0
  %2904 = vmatprep.subr.mxu0 0.0
  %2905 = vmatpush1.msra.mxu0 0.0
  %2906 = vmatprep.subr.mxu0 0.0
  %2907 = vmatpush1.msra.mxu0 0.0
  %2908 = vmatprep.subr.mxu0 0.0
  %2909 = vmatpush1.msra.mxu0 0.0
  %2910 = vmatprep.subr.mxu0 0.0
  %2911 = vmatpush1.msra.mxu0 0.0
  %2912 = vmatprep.subr.mxu0 0.0
  %2913 = vmatpush1.msra.mxu0 0.0
  %2914 = vmatprep.subr.mxu0 0.0
  %2915 = vmatpush1.msra.mxu0 0.0
  %2916 = vmatprep.subr.mxu0 0.0
  %2917 = vmatpush1.msra.mxu0 0.0
  %2918 = vmatprep.subr.mxu0 0.0
  %2919 = vmatpush1.msra.mxu0 0.0
  %2920 = vmatprep.subr.mxu0 0.0
  %2921 = vmatpush1.msra.mxu0 0.0
  %2922 = vmatprep.subr.mxu0 0.0
  %2923 = vmatpush1.msra.mxu0 0.0
  %2924 = vmatprep.subr.mxu0 0.0
  %2925 = vmatpush1.msra.mxu0 0.0
  %2926 = vmatprep.subr.mxu0 0.0
  %2927 = vmatpush1.msra.mxu0 0.0
  %2928 = vmatprep.subr.mxu0 0.0
  %2929 = vmatpush1.msra.mxu0 0.0
  %2930 = vmatprep.mubr.f32.mxu0 0.0
  %v2931 = vand.u32 %v2398, 4294901760
  %2932 = vmatmul.mubr.f32.gmra.mrb[0].mxu0 %v2931
  %v2933 = vpop.f32.mrb[0].mxu0
  %v2934 = vadd.f32 %v2855, %v2933
  %v2935 = vpop.f32.mrb[0].mxu0
  %2936 = vdwg.mxu0
  %v2937 = vmul.f32 %v2934, 0.001953125
  %v2938 = vadd.f32 %v2937, 1e-05
  %v2939 = vrsqrt.pop %v2938
  %v2940 = vlaneseq
  %v2941 = vshrl.u32 %v2940, 7
  %v2942 = vsub.s32 0, %v2941
  %v2943 = vrot.slane %v2939, %v2942
  %v2944 = vmul.f32 %v2376, %v2943
  %v2945 = vmul.f32 %v2377, %v2943
  %v2946 = vmul.f32 %v2378, %v2943
  %v2947 = vmul.f32 %v2379, %v2943
  %v2949 = vlaneseq
  %v2950 = vshrl.u32 %v2949, 7
  %v2951 = vsub.s32 0, %v2950
  %v2952 = vrot.slane %v1804, %v2951
  %v2954 = vmul.f32 %v2944, %v2952
  %v2955 = vmul.f32 %v2945, %v2952
  %v2956 = vmul.f32 %v2946, %v2952
  %v2957 = vmul.f32 %v2947, %v2952
  %v2959 = vlaneseq
  %v2960 = vshrl.u32 %v2959, 7
  %v2961 = vsub.s32 0, %v2960
  %v2962 = vrot.slane %v1805, %v2961
  %v2964 = vadd.f32 %v2954, %v2962
  %v2965 = vadd.f32 %v2955, %v2962
  %v2966 = vadd.f32 %v2956, %v2962
  %v2967 = vadd.f32 %v2957, %v2962
  %2968 = vst.msk [vmem:[%s10] sm:$0xff] %vm78, %v2964
  %2969 = vst.msk [vmem:[%s10 + $0x8] sm:$0xff] %vm78, %v2965
  %2970 = vst.msk [vmem:[%s10 + $0x10] sm:$0xff] %vm78, %v2966
  %2971 = vst.msk [vmem:[%s10 + $0x18] sm:$0xff] %vm78, %v2967
  // Predicated region
  $region42: #{_lambda_.1} parent=0 // pred_check
    _
  $region43: #{_lambda_.1} parent=0 // pred_check_branch
    %2973 = sbr.rel (0) target = $region45
  $region44: #{_lambda_.1} parent=0 // pred_region
    _
  $region45: #{_lambda_.1} parent=0 // pred_fallthru
    _
  // Predicated region
  $region46: #{_lambda_.1} parent=0 // pred_check
    _
  $region47: #{_lambda_.1} parent=0 // pred_check_branch
    %2975 = sbr.rel (0) target = $region49
  $region48: #{_lambda_.1} parent=0 // pred_region
    _
  $region49: #{_lambda_.1} parent=0 // pred_fallthru
    _

</llo_original>
